<compile_context>
chip_gen: v5e
topology: v5e:2x2
jax: 0.10.0
libtpu: 0.0.40
codegen_flags: <defaults>
</compile_context>

<pallas_src>
import functools

import jax
import jax.numpy as jnp
from jax.experimental import pallas as pl
from jax.experimental.pallas import tpu as pltpu


def _round_up(n, m):
    return (n + m - 1) // m * m


# ----------------------------------------------------------------------------
# Kernel
# ----------------------------------------------------------------------------
def _make_fused_block_kernel(TH, W, Wp, Cp, output_relu, compute_dtype):
    HY = TH + 2  # rows of the intermediate activation y computed per tile

    def conv3x3(pad_ref, w_ref, b_ref, rows):
        # Per-tap accumulation: 9 MXU dots with K = Cp, no im2col slab.
        acc = None
        for kh in range(3):
            for kw in range(3):
                tap = pad_ref[kh:kh + rows, kw:kw + W, :].reshape(rows * W, Cp)
                d = jnp.dot(tap, w_ref[kh * 3 + kw],
                            preferred_element_type=jnp.float32)
                acc = d if acc is None else acc + d
        return acc + b_ref[...]  # folded-BN bias (f32)

    def kernel(x_ref, w1_ref, b1_ref, w2_ref, b2_ref, o_ref, xpad_s, ypad_s):
        t = pl.program_id(1)
        last_t = pl.num_programs(1) - 1

        # Zero only the 1-column W halo (interior is fully overwritten below).
        zx = jnp.zeros((TH + 4, 1, Cp), compute_dtype)
        xpad_s[:, 0:1, :] = zx
        xpad_s[:, W + 1:W + 2, :] = zx
        zy = jnp.zeros((HY, 1, Cp), compute_dtype)
        ypad_s[:, 0:1, :] = zy
        ypad_s[:, W + 1:W + 2, :] = zy

        # x tile (TH+4 rows incl. the 2-row H halo), cast ONCE to compute dtype.
        x_tile = x_ref[0, 0]                                       # f32
        xpad_s[:, 1:W + 1, :] = x_tile.astype(compute_dtype)

        # conv1 -> bn1 (folded) -> relu on TH+2 rows (includes y's 1-row halo).
        y = jnp.maximum(conv3x3(xpad_s, w1_ref, b1_ref, HY), 0.0)  # (HY*W, Cp) f32

        # Intermediate activation stays in VMEM (no HBM round trip).
        ypad_s[:, 1:W + 1, :] = y.reshape(HY, W, Cp).astype(compute_dtype)

        # conv2's zero padding applies to y OUTSIDE the image: zero those rows.
        @pl.when(t == 0)
        def _():
            ypad_s[0:1, :, :] = jnp.zeros((1, Wp, Cp), compute_dtype)

        @pl.when(t == last_t)
        def _():
            ypad_s[HY - 1:HY, :, :] = jnp.zeros((1, Wp, Cp), compute_dtype)

        # conv2 -> bn2 (folded) -> + residual -> optional relu (all f32 math).
        z = conv3x3(ypad_s, w2_ref, b2_ref, TH)                    # (TH*W, Cp)
        z = z + x_tile[2:TH + 2].reshape(TH * W, Cp)               # residual (f32)
        if output_relu:
            z = jnp.maximum(z, 0.0)
        o_ref[0] = z.reshape(TH, W, Cp).astype(o_ref.dtype)

    return kernel


# ----------------------------------------------------------------------------
# Wrapper / parameter prep
# ----------------------------------------------------------------------------
def _fold_bn(gamma, beta, mean, var, eps=1e-5):
    scale = gamma / jnp.sqrt(var + eps)
    bias = beta - mean * scale
    return scale, bias


def _prep_conv_bn(w_hwio, gamma, beta, mean, var, Cp, compute_dtype):
    """Fold BN scale into HWIO weights, pad channels to Cp, flatten to (9,Cp,Cp)."""
    C = w_hwio.shape[-1]
    scale, bias = _fold_bn(gamma, beta, mean, var)
    w = w_hwio * scale                                        # scale output channels
    w = jnp.pad(w, ((0, 0), (0, 0), (0, Cp - C), (0, Cp - C)))
    w = w.reshape(9, Cp, Cp).astype(compute_dtype)            # tap-major (kh*3+kw)
    b = jnp.pad(bias, (0, Cp - C)).reshape(1, Cp).astype(jnp.float32)
    return w, b


_VMEM_BUDGET = 28 * 1024 * 1024


def _vmem_estimate(TH, W, Cp, cbytes, obytes):
    Wp = _round_up(W + 2, 8)
    x_blk = 2 * (TH + 4) * W * Cp * 4               # double-buffered input block (f32)
    o_blk = 2 * TH * W * Cp * obytes                # double-buffered output block
    wts = 2 * (9 * Cp * Cp * cbytes + Cp * 4)       # single-buffered w1/b1/w2/b2
    scratch = ((TH + 4) + (TH + 2)) * Wp * Cp * cbytes
    interm = 4 * (TH + 2) * W * Cp * 4              # y, accumulator, tap temps (f32)
    return x_blk + o_blk + wts + scratch + interm


def _pick_tile_h(N, H, W, Cp, cbytes, obytes):
    divisors = [th for th in range(1, H + 1) if H % th == 0]
    fitting = [th for th in divisors
               if _vmem_estimate(th, W, Cp, cbytes, obytes) <= _VMEM_BUDGET]
    if not fitting:
        return 1
    if N == 1:  # v7x: keep >= 2 parallel grid units so both TensorCores work
        multi = [th for th in fitting if H // th >= 2]
        if multi:
            return max(multi)
    return max(fitting)


def _invariant_spec(shape):
    """BlockSpec for a grid-invariant operand; single-buffered when supported."""
    index_map = lambda n, t: (0,) * len(shape)
    try:
        return pl.BlockSpec(shape, index_map, pipeline_mode=pl.Buffered(1))
    except (AttributeError, TypeError):
        return pl.BlockSpec(shape, index_map)


def basic_block_forward(x_nchw, params, output_relu=False,
                        compute_dtype=jnp.float32, out_dtype=jnp.float32,
                        tile_h=None):
    """Fused BasicBlock forward.  x_nchw: (N, C, H, W) f32 -> (N, C, H, W) out_dtype.

    compute_dtype selects the MXU-input / scratch dtype (bf16 works on all TPU
    generations incl. v5e; accumulation and elementwise math stay f32).
    """
    N, C, H, W = x_nchw.shape
    Cp = _round_up(C, 128)  # lane-dense channel axis
    cbytes = jnp.dtype(compute_dtype).itemsize
    obytes = jnp.dtype(out_dtype).itemsize

    if tile_h is None:
        tile_h = _pick_tile_h(N, H, W, Cp, cbytes, obytes)
    if H % tile_h != 0:
        raise ValueError(f"tile_h={tile_h} must divide H={H}")
    TH = tile_h
    num_t = H // TH
    Wp = _round_up(W + 2, 8)  # sublane-aligned scratch width

    # --- wrapper glue: NCHW -> NHWC, channel pad, overlapping H tiles (2-row halo).
    x = jnp.transpose(x_nchw, (0, 2, 3, 1))
    if Cp != C:
        x = jnp.pad(x, ((0, 0), (0, 0), (0, 0), (0, Cp - C)))
    x_pad2 = jnp.pad(x, ((0, 0), (2, 2), (0, 0), (0, 0)))
    x_halo = jnp.stack(
        [x_pad2[:, t * TH:t * TH + TH + 4] for t in range(num_t)], axis=1)
    # x_halo: (N, num_t, TH+4, W, Cp) f32

    w1, b1 = _prep_conv_bn(params["w1"], params["bn1_gamma"], params["bn1_beta"],
                           params["bn1_mean"], params["bn1_var"], Cp, compute_dtype)
    w2, b2 = _prep_conv_bn(params["w2"], params["bn2_gamma"], params["bn2_beta"],
                           params["bn2_mean"], params["bn2_var"], Cp, compute_dtype)

    kernel = _make_fused_block_kernel(TH, W, Wp, Cp, output_relu, compute_dtype)

    est = _vmem_estimate(TH, W, Cp, cbytes, obytes)
    vmem_limit = int(min(max(2 * est, 16 * 1024 * 1024), 60 * 1024 * 1024))

    out = pl.pallas_call(
        kernel,
        out_shape=jax.ShapeDtypeStruct((N, H, W, Cp), out_dtype),
        grid=(N, num_t),
        in_specs=[
            pl.BlockSpec((1, 1, TH + 4, W, Cp),
                         lambda n, t: (n, t, 0, 0, 0)),   # x tile (also residual)
            _invariant_spec((9, Cp, Cp)),                 # w1 (BN1-folded), 1-buffered
            _invariant_spec((1, Cp)),                     # b1
            _invariant_spec((9, Cp, Cp)),                 # w2 (BN2-folded), 1-buffered
            _invariant_spec((1, Cp)),                     # b2
        ],
        out_specs=pl.BlockSpec((1, TH, W, Cp), lambda n, t: (n, t, 0, 0)),
        scratch_shapes=[
            pltpu.VMEM((TH + 4, Wp, Cp), compute_dtype),  # padded x tile
            pltpu.VMEM((TH + 2, Wp, Cp), compute_dtype),  # padded y tile (VMEM only)
        ],
        compiler_params=pltpu.CompilerParams(
            dimension_semantics=("parallel", "parallel"),
            vmem_limit_bytes=vmem_limit),
    )(x_halo, w1, b1, w2, b2)

    # Drop channel padding, NHWC -> NCHW (glue).
    return jnp.transpose(out[..., :C], (0, 3, 1, 2))


# ----------------------------------------------------------------------------
# Pure-JAX reference & demo
# ----------------------------------------------------------------------------
def _reference_forward(x_nchw, params, output_relu=False):
    x = jnp.transpose(x_nchw, (0, 2, 3, 1))
    dn = ("NHWC", "HWIO", "NHWC")

    def conv(a, w):
        return jax.lax.conv_general_dilated(a, w, (1, 1), "SAME",
                                            dimension_numbers=dn)

    s1, b1 = _fold_bn(params["bn1_gamma"], params["bn1_beta"],
                      params["bn1_mean"], params["bn1_var"])
    s2, b2 = _fold_bn(params["bn2_gamma"], params["bn2_beta"],
                      params["bn2_mean"], params["bn2_var"])
    y = jnp.maximum(conv(x, params["w1"]) * s1 + b1, 0.0)
    out = conv(y, params["w2"]) * s2 + b2 + x
    if output_relu:
        out = jnp.maximum(out, 0.0)
    return jnp.transpose(out, (0, 3, 1, 2))


def make_params(key, channels):
    ks = jax.random.split(key, 10)
    c = channels
    return {
        # HWIO weights (PyTorch (O, I, 3, 3) transposed to (3, 3, I, O))
        "w1": 0.1 * jax.random.normal(ks[0], (3, 3, c, c), jnp.float32),
        "w2": 0.1 * jax.random.normal(ks[1], (3, 3, c, c), jnp.float32),
        "bn1_gamma": 1.0 + 0.1 * jax.random.normal(ks[2], (c,), jnp.float32),
        "bn1_beta": 0.1 * jax.random.normal(ks[3], (c,), jnp.float32),
        "bn1_mean": 0.1 * jax.random.normal(ks[4], (c,), jnp.float32),
        "bn1_var": 0.5 + jnp.abs(jax.random.normal(ks[5], (c,), jnp.float32)),
        "bn2_gamma": 1.0 + 0.1 * jax.random.normal(ks[6], (c,), jnp.float32),
        "bn2_beta": 0.1 * jax.random.normal(ks[7], (c,), jnp.float32),
        "bn2_mean": 0.1 * jax.random.normal(ks[8], (c,), jnp.float32),
        "bn2_var": 0.5 + jnp.abs(jax.random.normal(ks[9], (c,), jnp.float32)),
    }


if __name__ == "__main__":
    key = jax.random.PRNGKey(0)
    k_x, k_p = jax.random.split(key)

    N, C, H, W = 2, 8, 16, 16
    x = jax.random.normal(k_x, (N, C, H, W), jnp.float32)
    params = make_params(k_p, C)

    ref = _reference_forward(x, params, output_relu=False)

    # 1) f32, H-tiled (2 tiles of 8 rows): exercises the halo / boundary logic.
    fwd = jax.jit(functools.partial(basic_block_forward, output_relu=False,
                                    compute_dtype=jnp.float32, tile_h=8))
    out = jax.block_until_ready(fwd(x, params))
    assert out.shape == (N, C, H, W)
    assert jnp.allclose(out, ref, atol=1e-4, rtol=1e-4), (
        float(jnp.max(jnp.abs(out - ref))))

    # 2) f32, auto tile (single spatial tile), output_relu=True path.
    ref_r = _reference_forward(x, params, output_relu=True)
    fwd_r = jax.jit(functools.partial(basic_block_forward, output_relu=True,
                                      compute_dtype=jnp.float32))
    out_r = jax.block_until_ready(fwd_r(x, params))
    assert jnp.allclose(out_r, ref_r, atol=1e-4, rtol=1e-4), (
        float(jnp.max(jnp.abs(out_r - ref_r))))

    # 3) bf16 MXU-input path (valid on v5e/v6e/v7x; f32 accumulation / elementwise).
    fwd_bf16 = jax.jit(functools.partial(basic_block_forward, output_relu=False,
                                         compute_dtype=jnp.bfloat16, tile_h=8))
    out_bf16 = jax.block_until_ready(fwd_bf16(x, params))
    assert out_bf16.shape == (N, C, H, W)
    assert jnp.allclose(out_bf16, ref, atol=1e-1, rtol=1e-1), (
        float(jnp.max(jnp.abs(out_bf16 - ref))))

    print("KERNEL_OK")
</pallas_src>

<mosaic_0001>
module attributes {stable_mosaic.version = 11 : i64} {
  func.func @kernel(%arg0: i32, %arg1: i32, %arg2: memref<1x1x12x16x128xf32, #tpu.memory_space<vmem>>, %arg3: memref<9x128x128xf32, #tpu.memory_space<vmem>>, %arg4: memref<1x128xf32, #tpu.memory_space<vmem>>, %arg5: memref<9x128x128xf32, #tpu.memory_space<vmem>>, %arg6: memref<1x128xf32, #tpu.memory_space<vmem>>, %arg7: memref<1x8x16x128xf32, #tpu.memory_space<vmem>>, %arg8: memref<12x24x128xf32, #tpu.memory_space<vmem>>, %arg9: memref<10x24x128xf32, #tpu.memory_space<vmem>>) attributes {dimension_semantics = [#tpu.dimension_semantics<parallel>, #tpu.dimension_semantics<parallel>], iteration_bounds = array<i64: 2, 2>, scalar_prefetch = 0 : i64, scratch_operands = 2 : i64, tpu.core_type = #tpu.core_type<tc>, window_params = [{transform_indices = @transform_0, window_bounds = array<i64: 1, 1, 12, 16, 128>}, {pipeline_mode = #tpu.pipeline_mode<synchronous>, transform_indices = @transform_1, window_bounds = array<i64: 9, 128, 128>}, {pipeline_mode = #tpu.pipeline_mode<synchronous>, transform_indices = @transform_2, window_bounds = array<i64: 1, 128>}, {pipeline_mode = #tpu.pipeline_mode<synchronous>, transform_indices = @transform_3, window_bounds = array<i64: 9, 128, 128>}, {pipeline_mode = #tpu.pipeline_mode<synchronous>, transform_indices = @transform_4, window_bounds = array<i64: 1, 128>}, {transform_indices = @transform_5, window_bounds = array<i64: 1, 8, 16, 128>}]} {
    %cst = arith.constant 0.000000e+00 : f32
    %0 = vector.broadcast %cst : f32 to vector<12x1x128xf32>
    %c0 = arith.constant 0 : index
    %c0_0 = arith.constant 0 : index
    %c0_1 = arith.constant 0 : index
    %1 = vector.load %arg8[%c0, %c0_0, %c0_1] : memref<12x24x128xf32, #tpu.memory_space<vmem>>, vector<12x1x128xf32>
    tpu.vector_store %arg8[%c0, %c0_0, %c0_1], %0 {strides = array<i32>} : memref<12x24x128xf32, #tpu.memory_space<vmem>>, vector<12x1x128xf32>,
    %c0_2 = arith.constant 0 : index
    %c17 = arith.constant 17 : index
    %c0_3 = arith.constant 0 : index
    %2 = vector.load %arg8[%c0_2, %c17, %c0_3] : memref<12x24x128xf32, #tpu.memory_space<vmem>>, vector<12x1x128xf32>
    tpu.vector_store %arg8[%c0_2, %c17, %c0_3], %0 {strides = array<i32>} : memref<12x24x128xf32, #tpu.memory_space<vmem>>, vector<12x1x128xf32>,
    %cst_4 = arith.constant 0.000000e+00 : f32
    %3 = vector.broadcast %cst_4 : f32 to vector<10x1x128xf32>
    %c0_5 = arith.constant 0 : index
    %c0_6 = arith.constant 0 : index
    %c0_7 = arith.constant 0 : index
    %4 = vector.load %arg9[%c0_5, %c0_6, %c0_7] : memref<10x24x128xf32, #tpu.memory_space<vmem>>, vector<10x1x128xf32>
    tpu.vector_store %arg9[%c0_5, %c0_6, %c0_7], %3 {strides = array<i32>} : memref<10x24x128xf32, #tpu.memory_space<vmem>>, vector<10x1x128xf32>,
    %c0_8 = arith.constant 0 : index
    %c17_9 = arith.constant 17 : index
    %c0_10 = arith.constant 0 : index
    %5 = vector.load %arg9[%c0_8, %c17_9, %c0_10] : memref<10x24x128xf32, #tpu.memory_space<vmem>>, vector<10x1x128xf32>
    tpu.vector_store %arg9[%c0_8, %c17_9, %c0_10], %3 {strides = array<i32>} : memref<10x24x128xf32, #tpu.memory_space<vmem>>, vector<10x1x128xf32>,
    %c0_11 = arith.constant 0 : index
    %c0_12 = arith.constant 0 : index
    %c0_13 = arith.constant 0 : index
    %c0_14 = arith.constant 0 : index
    %c0_15 = arith.constant 0 : index
    %6 = vector.load %arg2[%c0_11, %c0_12, %c0_13, %c0_14, %c0_15] : memref<1x1x12x16x128xf32, #tpu.memory_space<vmem>>, vector<1x1x12x16x128xf32>
    %7 = vector.shape_cast %6 : vector<1x1x12x16x128xf32> to vector<12x16x128xf32>
    %c0_16 = arith.constant 0 : index
    %c1 = arith.constant 1 : index
    %c0_17 = arith.constant 0 : index
    %8 = vector.load %arg8[%c0_16, %c1, %c0_17] : memref<12x24x128xf32, #tpu.memory_space<vmem>>, vector<12x16x128xf32>
    tpu.vector_store %arg8[%c0_16, %c1, %c0_17], %7 {strides = array<i32>} : memref<12x24x128xf32, #tpu.memory_space<vmem>>, vector<12x16x128xf32>,
    %c0_18 = arith.constant 0 : index
    %c0_19 = arith.constant 0 : index
    %c0_20 = arith.constant 0 : index
    %9 = vector.load %arg8[%c0_18, %c0_19, %c0_20] : memref<12x24x128xf32, #tpu.memory_space<vmem>>, vector<10x16x128xf32>
    %10 = vector.shape_cast %9 : vector<10x16x128xf32> to vector<160x128xf32>
    %c0_21 = arith.constant 0 : index
    %c0_22 = arith.constant 0 : index
    %c0_23 = arith.constant 0 : index
    %11 = vector.load %arg3[%c0_21, %c0_22, %c0_23] : memref<9x128x128xf32, #tpu.memory_space<vmem>>, vector<1x128x128xf32>
    %12 = vector.shape_cast %11 : vector<1x128x128xf32> to vector<128x128xf32>
    %cst_24 = arith.constant dense<0.000000e+00> : vector<160x128xf32>
    %13 = tpu.matmul %10, %12, %cst_24 {dimension_numbers = #tpu.dot_dimension_numbers<[1], [0], [0], [1], [0, 0, 1, 1], [], []>} : vector<160x128xf32>, vector<128x128xf32>, vector<160x128xf32> -> vector<160x128xf32>
    %c0_25 = arith.constant 0 : index
    %c1_26 = arith.constant 1 : index
    %c0_27 = arith.constant 0 : index
    %14 = vector.load %arg8[%c0_25, %c1_26, %c0_27] : memref<12x24x128xf32, #tpu.memory_space<vmem>>, vector<10x16x128xf32>
    %15 = vector.shape_cast %14 : vector<10x16x128xf32> to vector<160x128xf32>
    %c1_28 = arith.constant 1 : index
    %c0_29 = arith.constant 0 : index
    %c0_30 = arith.constant 0 : index
    %16 = vector.load %arg3[%c1_28, %c0_29, %c0_30] : memref<9x128x128xf32, #tpu.memory_space<vmem>>, vector<1x128x128xf32>
    %17 = vector.shape_cast %16 : vector<1x128x128xf32> to vector<128x128xf32>
    %cst_31 = arith.constant dense<0.000000e+00> : vector<160x128xf32>
    %18 = tpu.matmul %15, %17, %cst_31 {dimension_numbers = #tpu.dot_dimension_numbers<[1], [0], [0], [1], [0, 0, 1, 1], [], []>} : vector<160x128xf32>, vector<128x128xf32>, vector<160x128xf32> -> vector<160x128xf32>
    %19 = arith.addf %13, %18 : vector<160x128xf32>
    %c0_32 = arith.constant 0 : index
    %c2 = arith.constant 2 : index
    %c0_33 = arith.constant 0 : index
    %20 = vector.load %arg8[%c0_32, %c2, %c0_33] : memref<12x24x128xf32, #tpu.memory_space<vmem>>, vector<10x16x128xf32>
    %21 = vector.shape_cast %20 : vector<10x16x128xf32> to vector<160x128xf32>
    %c2_34 = arith.constant 2 : index
    %c0_35 = arith.constant 0 : index
    %c0_36 = arith.constant 0 : index
    %22 = vector.load %arg3[%c2_34, %c0_35, %c0_36] : memref<9x128x128xf32, #tpu.memory_space<vmem>>, vector<1x128x128xf32>
    %23 = vector.shape_cast %22 : vector<1x128x128xf32> to vector<128x128xf32>
    %cst_37 = arith.constant dense<0.000000e+00> : vector<160x128xf32>
    %24 = tpu.matmul %21, %23, %cst_37 {dimension_numbers = #tpu.dot_dimension_numbers<[1], [0], [0], [1], [0, 0, 1, 1], [], []>} : vector<160x128xf32>, vector<128x128xf32>, vector<160x128xf32> -> vector<160x128xf32>
    %25 = arith.addf %19, %24 : vector<160x128xf32>
    %c1_38 = arith.constant 1 : index
    %c0_39 = arith.constant 0 : index
    %c0_40 = arith.constant 0 : index
    %26 = vector.load %arg8[%c1_38, %c0_39, %c0_40] : memref<12x24x128xf32, #tpu.memory_space<vmem>>, vector<10x16x128xf32>
    %27 = vector.shape_cast %26 : vector<10x16x128xf32> to vector<160x128xf32>
    %c3 = arith.constant 3 : index
    %c0_41 = arith.constant 0 : index
    %c0_42 = arith.constant 0 : index
    %28 = vector.load %arg3[%c3, %c0_41, %c0_42] : memref<9x128x128xf32, #tpu.memory_space<vmem>>, vector<1x128x128xf32>
    %29 = vector.shape_cast %28 : vector<1x128x128xf32> to vector<128x128xf32>
    %cst_43 = arith.constant dense<0.000000e+00> : vector<160x128xf32>
    %30 = tpu.matmul %27, %29, %cst_43 {dimension_numbers = #tpu.dot_dimension_numbers<[1], [0], [0], [1], [0, 0, 1, 1], [], []>} : vector<160x128xf32>, vector<128x128xf32>, vector<160x128xf32> -> vector<160x128xf32>
    %31 = arith.addf %25, %30 : vector<160x128xf32>
    %c1_44 = arith.constant 1 : index
    %c1_45 = arith.constant 1 : index
    %c0_46 = arith.constant 0 : index
    %32 = vector.load %arg8[%c1_44, %c1_45, %c0_46] : memref<12x24x128xf32, #tpu.memory_space<vmem>>, vector<10x16x128xf32>
    %33 = vector.shape_cast %32 : vector<10x16x128xf32> to vector<160x128xf32>
    %c4 = arith.constant 4 : index
    %c0_47 = arith.constant 0 : index
    %c0_48 = arith.constant 0 : index
    %34 = vector.load %arg3[%c4, %c0_47, %c0_48] : memref<9x128x128xf32, #tpu.memory_space<vmem>>, vector<1x128x128xf32>
    %35 = vector.shape_cast %34 : vector<1x128x128xf32> to vector<128x128xf32>
    %cst_49 = arith.constant dense<0.000000e+00> : vector<160x128xf32>
    %36 = tpu.matmul %33, %35, %cst_49 {dimension_numbers = #tpu.dot_dimension_numbers<[1], [0], [0], [1], [0, 0, 1, 1], [], []>} : vector<160x128xf32>, vector<128x128xf32>, vector<160x128xf32> -> vector<160x128xf32>
    %37 = arith.addf %31, %36 : vector<160x128xf32>
    %c1_50 = arith.constant 1 : index
    %c2_51 = arith.constant 2 : index
    %c0_52 = arith.constant 0 : index
    %38 = vector.load %arg8[%c1_50, %c2_51, %c0_52] : memref<12x24x128xf32, #tpu.memory_space<vmem>>, vector<10x16x128xf32>
    %39 = vector.shape_cast %38 : vector<10x16x128xf32> to vector<160x128xf32>
    %c5 = arith.constant 5 : index
    %c0_53 = arith.constant 0 : index
    %c0_54 = arith.constant 0 : index
    %40 = vector.load %arg3[%c5, %c0_53, %c0_54] : memref<9x128x128xf32, #tpu.memory_space<vmem>>, vector<1x128x128xf32>
    %41 = vector.shape_cast %40 : vector<1x128x128xf32> to vector<128x128xf32>
    %cst_55 = arith.constant dense<0.000000e+00> : vector<160x128xf32>
    %42 = tpu.matmul %39, %41, %cst_55 {dimension_numbers = #tpu.dot_dimension_numbers<[1], [0], [0], [1], [0, 0, 1, 1], [], []>} : vector<160x128xf32>, vector<128x128xf32>, vector<160x128xf32> -> vector<160x128xf32>
    %43 = arith.addf %37, %42 : vector<160x128xf32>
    %c2_56 = arith.constant 2 : index
    %c0_57 = arith.constant 0 : index
    %c0_58 = arith.constant 0 : index
    %44 = vector.load %arg8[%c2_56, %c0_57, %c0_58] : memref<12x24x128xf32, #tpu.memory_space<vmem>>, vector<10x16x128xf32>
    %45 = vector.shape_cast %44 : vector<10x16x128xf32> to vector<160x128xf32>
    %c6 = arith.constant 6 : index
    %c0_59 = arith.constant 0 : index
    %c0_60 = arith.constant 0 : index
    %46 = vector.load %arg3[%c6, %c0_59, %c0_60] : memref<9x128x128xf32, #tpu.memory_space<vmem>>, vector<1x128x128xf32>
    %47 = vector.shape_cast %46 : vector<1x128x128xf32> to vector<128x128xf32>
    %cst_61 = arith.constant dense<0.000000e+00> : vector<160x128xf32>
    %48 = tpu.matmul %45, %47, %cst_61 {dimension_numbers = #tpu.dot_dimension_numbers<[1], [0], [0], [1], [0, 0, 1, 1], [], []>} : vector<160x128xf32>, vector<128x128xf32>, vector<160x128xf32> -> vector<160x128xf32>
    %49 = arith.addf %43, %48 : vector<160x128xf32>
    %c2_62 = arith.constant 2 : index
    %c1_63 = arith.constant 1 : index
    %c0_64 = arith.constant 0 : index
    %50 = vector.load %arg8[%c2_62, %c1_63, %c0_64] : memref<12x24x128xf32, #tpu.memory_space<vmem>>, vector<10x16x128xf32>
    %51 = vector.shape_cast %50 : vector<10x16x128xf32> to vector<160x128xf32>
    %c7 = arith.constant 7 : index
    %c0_65 = arith.constant 0 : index
    %c0_66 = arith.constant 0 : index
    %52 = vector.load %arg3[%c7, %c0_65, %c0_66] : memref<9x128x128xf32, #tpu.memory_space<vmem>>, vector<1x128x128xf32>
    %53 = vector.shape_cast %52 : vector<1x128x128xf32> to vector<128x128xf32>
    %cst_67 = arith.constant dense<0.000000e+00> : vector<160x128xf32>
    %54 = tpu.matmul %51, %53, %cst_67 {dimension_numbers = #tpu.dot_dimension_numbers<[1], [0], [0], [1], [0, 0, 1, 1], [], []>} : vector<160x128xf32>, vector<128x128xf32>, vector<160x128xf32> -> vector<160x128xf32>
    %55 = arith.addf %49, %54 : vector<160x128xf32>
    %c2_68 = arith.constant 2 : index
    %c2_69 = arith.constant 2 : index
    %c0_70 = arith.constant 0 : index
    %56 = vector.load %arg8[%c2_68, %c2_69, %c0_70] : memref<12x24x128xf32, #tpu.memory_space<vmem>>, vector<10x16x128xf32>
    %57 = vector.shape_cast %56 : vector<10x16x128xf32> to vector<160x128xf32>
    %c8 = arith.constant 8 : index
    %c0_71 = arith.constant 0 : index
    %c0_72 = arith.constant 0 : index
    %58 = vector.load %arg3[%c8, %c0_71, %c0_72] : memref<9x128x128xf32, #tpu.memory_space<vmem>>, vector<1x128x128xf32>
    %59 = vector.shape_cast %58 : vector<1x128x128xf32> to vector<128x128xf32>
    %cst_73 = arith.constant dense<0.000000e+00> : vector<160x128xf32>
    %60 = tpu.matmul %57, %59, %cst_73 {dimension_numbers = #tpu.dot_dimension_numbers<[1], [0], [0], [1], [0, 0, 1, 1], [], []>} : vector<160x128xf32>, vector<128x128xf32>, vector<160x128xf32> -> vector<160x128xf32>
    %61 = arith.addf %55, %60 : vector<160x128xf32>
    %c0_74 = arith.constant 0 : index
    %c0_75 = arith.constant 0 : index
    %62 = vector.load %arg4[%c0_74, %c0_75] : memref<1x128xf32, #tpu.memory_space<vmem>>, vector<1x128xf32>
    %63 = vector.broadcast %62 : vector<1x128xf32> to vector<160x128xf32>
    %64 = arith.addf %61, %63 : vector<160x128xf32>
    %cst_76 = arith.constant 0.000000e+00 : f32
    %65 = vector.broadcast %cst_76 : f32 to vector<160x128xf32>
    %66 = arith.maximumf %64, %65 : vector<160x128xf32>
    %67 = vector.shape_cast %66 : vector<160x128xf32> to vector<10x16x128xf32>
    %c0_77 = arith.constant 0 : index
    %c1_78 = arith.constant 1 : index
    %c0_79 = arith.constant 0 : index
    %68 = vector.load %arg9[%c0_77, %c1_78, %c0_79] : memref<10x24x128xf32, #tpu.memory_space<vmem>>, vector<10x16x128xf32>
    tpu.vector_store %arg9[%c0_77, %c1_78, %c0_79], %67 {strides = array<i32>} : memref<10x24x128xf32, #tpu.memory_space<vmem>>, vector<10x16x128xf32>,
    %c0_i32 = arith.constant 0 : i32
    %69 = arith.cmpi eq, %arg1, %c0_i32 : i32
    %70 = arith.extui %69 : i1 to i32
    %c0_i32_80 = arith.constant 0 : i32
    %71 = arith.cmpi ne, %70, %c0_i32_80 : i32
    scf.if %71 {
      %cst_151 = arith.constant 0.000000e+00 : f32
      %138 = vector.broadcast %cst_151 : f32 to vector<1x24x128xf32>
      %c0_152 = arith.constant 0 : index
      %c0_153 = arith.constant 0 : index
      %c0_154 = arith.constant 0 : index
      %139 = vector.load %arg9[%c0_152, %c0_153, %c0_154] : memref<10x24x128xf32, #tpu.memory_space<vmem>>, vector<1x24x128xf32>
      tpu.vector_store %arg9[%c0_152, %c0_153, %c0_154], %138 {strides = array<i32>} : memref<10x24x128xf32, #tpu.memory_space<vmem>>, vector<1x24x128xf32>,
    } else {
    }
    %c1_i32 = arith.constant 1 : i32
    %72 = arith.cmpi eq, %arg1, %c1_i32 : i32
    %73 = arith.extui %72 : i1 to i32
    %c0_i32_81 = arith.constant 0 : i32
    %74 = arith.cmpi ne, %73, %c0_i32_81 : i32
    scf.if %74 {
      %cst_151 = arith.constant 0.000000e+00 : f32
      %138 = vector.broadcast %cst_151 : f32 to vector<1x24x128xf32>
      %c9 = arith.constant 9 : index
      %c0_152 = arith.constant 0 : index
      %c0_153 = arith.constant 0 : index
      %139 = vector.load %arg9[%c9, %c0_152, %c0_153] : memref<10x24x128xf32, #tpu.memory_space<vmem>>, vector<1x24x128xf32>
      tpu.vector_store %arg9[%c9, %c0_152, %c0_153], %138 {strides = array<i32>} : memref<10x24x128xf32, #tpu.memory_space<vmem>>, vector<1x24x128xf32>,
    } else {
    }
    %c0_82 = arith.constant 0 : index
    %c0_83 = arith.constant 0 : index
    %c0_84 = arith.constant 0 : index
    %75 = vector.load %arg9[%c0_82, %c0_83, %c0_84] : memref<10x24x128xf32, #tpu.memory_space<vmem>>, vector<8x16x128xf32>
    %76 = vector.shape_cast %75 : vector<8x16x128xf32> to vector<128x128xf32>
    %c0_85 = arith.constant 0 : index
    %c0_86 = arith.constant 0 : index
    %c0_87 = arith.constant 0 : index
    %77 = vector.load %arg5[%c0_85, %c0_86, %c0_87] : memref<9x128x128xf32, #tpu.memory_space<vmem>>, vector<1x128x128xf32>
    %78 = vector.shape_cast %77 : vector<1x128x128xf32> to vector<128x128xf32>
    %cst_88 = arith.constant dense<0.000000e+00> : vector<128x128xf32>
    %79 = tpu.matmul %76, %78, %cst_88 {dimension_numbers = #tpu.dot_dimension_numbers<[1], [0], [0], [1], [0, 0, 1, 1], [], []>} : vector<128x128xf32>, vector<128x128xf32>, vector<128x128xf32> -> vector<128x128xf32>
    %c0_89 = arith.constant 0 : index
    %c1_90 = arith.constant 1 : index
    %c0_91 = arith.constant 0 : index
    %80 = vector.load %arg9[%c0_89, %c1_90, %c0_91] : memref<10x24x128xf32, #tpu.memory_space<vmem>>, vector<8x16x128xf32>
    %81 = vector.shape_cast %80 : vector<8x16x128xf32> to vector<128x128xf32>
    %c1_92 = arith.constant 1 : index
    %c0_93 = arith.constant 0 : index
    %c0_94 = arith.constant 0 : index
    %82 = vector.load %arg5[%c1_92, %c0_93, %c0_94] : memref<9x128x128xf32, #tpu.memory_space<vmem>>, vector<1x128x128xf32>
    %83 = vector.shape_cast %82 : vector<1x128x128xf32> to vector<128x128xf32>
    %cst_95 = arith.constant dense<0.000000e+00> : vector<128x128xf32>
    %84 = tpu.matmul %81, %83, %cst_95 {dimension_numbers = #tpu.dot_dimension_numbers<[1], [0], [0], [1], [0, 0, 1, 1], [], []>} : vector<128x128xf32>, vector<128x128xf32>, vector<128x128xf32> -> vector<128x128xf32>
    %85 = arith.addf %79, %84 : vector<128x128xf32>
    %c0_96 = arith.constant 0 : index
    %c2_97 = arith.constant 2 : index
    %c0_98 = arith.constant 0 : index
    %86 = vector.load %arg9[%c0_96, %c2_97, %c0_98] : memref<10x24x128xf32, #tpu.memory_space<vmem>>, vector<8x16x128xf32>
    %87 = vector.shape_cast %86 : vector<8x16x128xf32> to vector<128x128xf32>
    %c2_99 = arith.constant 2 : index
    %c0_100 = arith.constant 0 : index
    %c0_101 = arith.constant 0 : index
    %88 = vector.load %arg5[%c2_99, %c0_100, %c0_101] : memref<9x128x128xf32, #tpu.memory_space<vmem>>, vector<1x128x128xf32>
    %89 = vector.shape_cast %88 : vector<1x128x128xf32> to vector<128x128xf32>
    %cst_102 = arith.constant dense<0.000000e+00> : vector<128x128xf32>
    %90 = tpu.matmul %87, %89, %cst_102 {dimension_numbers = #tpu.dot_dimension_numbers<[1], [0], [0], [1], [0, 0, 1, 1], [], []>} : vector<128x128xf32>, vector<128x128xf32>, vector<128x128xf32> -> vector<128x128xf32>
    %91 = arith.addf %85, %90 : vector<128x128xf32>
    %c1_103 = arith.constant 1 : index
    %c0_104 = arith.constant 0 : index
    %c0_105 = arith.constant 0 : index
    %92 = vector.load %arg9[%c1_103, %c0_104, %c0_105] : memref<10x24x128xf32, #tpu.memory_space<vmem>>, vector<8x16x128xf32>
    %93 = vector.shape_cast %92 : vector<8x16x128xf32> to vector<128x128xf32>
    %c3_106 = arith.constant 3 : index
    %c0_107 = arith.constant 0 : index
    %c0_108 = arith.constant 0 : index
    %94 = vector.load %arg5[%c3_106, %c0_107, %c0_108] : memref<9x128x128xf32, #tpu.memory_space<vmem>>, vector<1x128x128xf32>
    %95 = vector.shape_cast %94 : vector<1x128x128xf32> to vector<128x128xf32>
    %cst_109 = arith.constant dense<0.000000e+00> : vector<128x128xf32>
    %96 = tpu.matmul %93, %95, %cst_109 {dimension_numbers = #tpu.dot_dimension_numbers<[1], [0], [0], [1], [0, 0, 1, 1], [], []>} : vector<128x128xf32>, vector<128x128xf32>, vector<128x128xf32> -> vector<128x128xf32>
    %97 = arith.addf %91, %96 : vector<128x128xf32>
    %c1_110 = arith.constant 1 : index
    %c1_111 = arith.constant 1 : index
    %c0_112 = arith.constant 0 : index
    %98 = vector.load %arg9[%c1_110, %c1_111, %c0_112] : memref<10x24x128xf32, #tpu.memory_space<vmem>>, vector<8x16x128xf32>
    %99 = vector.shape_cast %98 : vector<8x16x128xf32> to vector<128x128xf32>
    %c4_113 = arith.constant 4 : index
    %c0_114 = arith.constant 0 : index
    %c0_115 = arith.constant 0 : index
    %100 = vector.load %arg5[%c4_113, %c0_114, %c0_115] : memref<9x128x128xf32, #tpu.memory_space<vmem>>, vector<1x128x128xf32>
    %101 = vector.shape_cast %100 : vector<1x128x128xf32> to vector<128x128xf32>
    %cst_116 = arith.constant dense<0.000000e+00> : vector<128x128xf32>
    %102 = tpu.matmul %99, %101, %cst_116 {dimension_numbers = #tpu.dot_dimension_numbers<[1], [0], [0], [1], [0, 0, 1, 1], [], []>} : vector<128x128xf32>, vector<128x128xf32>, vector<128x128xf32> -> vector<128x128xf32>
    %103 = arith.addf %97, %102 : vector<128x128xf32>
    %c1_117 = arith.constant 1 : index
    %c2_118 = arith.constant 2 : index
    %c0_119 = arith.constant 0 : index
    %104 = vector.load %arg9[%c1_117, %c2_118, %c0_119] : memref<10x24x128xf32, #tpu.memory_space<vmem>>, vector<8x16x128xf32>
    %105 = vector.shape_cast %104 : vector<8x16x128xf32> to vector<128x128xf32>
    %c5_120 = arith.constant 5 : index
    %c0_121 = arith.constant 0 : index
    %c0_122 = arith.constant 0 : index
    %106 = vector.load %arg5[%c5_120, %c0_121, %c0_122] : memref<9x128x128xf32, #tpu.memory_space<vmem>>, vector<1x128x128xf32>
    %107 = vector.shape_cast %106 : vector<1x128x128xf32> to vector<128x128xf32>
    %cst_123 = arith.constant dense<0.000000e+00> : vector<128x128xf32>
    %108 = tpu.matmul %105, %107, %cst_123 {dimension_numbers = #tpu.dot_dimension_numbers<[1], [0], [0], [1], [0, 0, 1, 1], [], []>} : vector<128x128xf32>, vector<128x128xf32>, vector<128x128xf32> -> vector<128x128xf32>
    %109 = arith.addf %103, %108 : vector<128x128xf32>
    %c2_124 = arith.constant 2 : index
    %c0_125 = arith.constant 0 : index
    %c0_126 = arith.constant 0 : index
    %110 = vector.load %arg9[%c2_124, %c0_125, %c0_126] : memref<10x24x128xf32, #tpu.memory_space<vmem>>, vector<8x16x128xf32>
    %111 = vector.shape_cast %110 : vector<8x16x128xf32> to vector<128x128xf32>
    %c6_127 = arith.constant 6 : index
    %c0_128 = arith.constant 0 : index
    %c0_129 = arith.constant 0 : index
    %112 = vector.load %arg5[%c6_127, %c0_128, %c0_129] : memref<9x128x128xf32, #tpu.memory_space<vmem>>, vector<1x128x128xf32>
    %113 = vector.shape_cast %112 : vector<1x128x128xf32> to vector<128x128xf32>
    %cst_130 = arith.constant dense<0.000000e+00> : vector<128x128xf32>
    %114 = tpu.matmul %111, %113, %cst_130 {dimension_numbers = #tpu.dot_dimension_numbers<[1], [0], [0], [1], [0, 0, 1, 1], [], []>} : vector<128x128xf32>, vector<128x128xf32>, vector<128x128xf32> -> vector<128x128xf32>
    %115 = arith.addf %109, %114 : vector<128x128xf32>
    %c2_131 = arith.constant 2 : index
    %c1_132 = arith.constant 1 : index
    %c0_133 = arith.constant 0 : index
    %116 = vector.load %arg9[%c2_131, %c1_132, %c0_133] : memref<10x24x128xf32, #tpu.memory_space<vmem>>, vector<8x16x128xf32>
    %117 = vector.shape_cast %116 : vector<8x16x128xf32> to vector<128x128xf32>
    %c7_134 = arith.constant 7 : index
    %c0_135 = arith.constant 0 : index
    %c0_136 = arith.constant 0 : index
    %118 = vector.load %arg5[%c7_134, %c0_135, %c0_136] : memref<9x128x128xf32, #tpu.memory_space<vmem>>, vector<1x128x128xf32>
    %119 = vector.shape_cast %118 : vector<1x128x128xf32> to vector<128x128xf32>
    %cst_137 = arith.constant dense<0.000000e+00> : vector<128x128xf32>
    %120 = tpu.matmul %117, %119, %cst_137 {dimension_numbers = #tpu.dot_dimension_numbers<[1], [0], [0], [1], [0, 0, 1, 1], [], []>} : vector<128x128xf32>, vector<128x128xf32>, vector<128x128xf32> -> vector<128x128xf32>
    %121 = arith.addf %115, %120 : vector<128x128xf32>
    %c2_138 = arith.constant 2 : index
    %c2_139 = arith.constant 2 : index
    %c0_140 = arith.constant 0 : index
    %122 = vector.load %arg9[%c2_138, %c2_139, %c0_140] : memref<10x24x128xf32, #tpu.memory_space<vmem>>, vector<8x16x128xf32>
    %123 = vector.shape_cast %122 : vector<8x16x128xf32> to vector<128x128xf32>
    %c8_141 = arith.constant 8 : index
    %c0_142 = arith.constant 0 : index
    %c0_143 = arith.constant 0 : index
    %124 = vector.load %arg5[%c8_141, %c0_142, %c0_143] : memref<9x128x128xf32, #tpu.memory_space<vmem>>, vector<1x128x128xf32>
    %125 = vector.shape_cast %124 : vector<1x128x128xf32> to vector<128x128xf32>
    %cst_144 = arith.constant dense<0.000000e+00> : vector<128x128xf32>
    %126 = tpu.matmul %123, %125, %cst_144 {dimension_numbers = #tpu.dot_dimension_numbers<[1], [0], [0], [1], [0, 0, 1, 1], [], []>} : vector<128x128xf32>, vector<128x128xf32>, vector<128x128xf32> -> vector<128x128xf32>
    %127 = arith.addf %121, %126 : vector<128x128xf32>
    %c0_145 = arith.constant 0 : index
    %c0_146 = arith.constant 0 : index
    %128 = vector.load %arg6[%c0_145, %c0_146] : memref<1x128xf32, #tpu.memory_space<vmem>>, vector<1x128xf32>
    %129 = vector.broadcast %128 : vector<1x128xf32> to vector<128x128xf32>
    %130 = arith.addf %127, %129 : vector<128x128xf32>
    %131 = vector.extract_strided_slice %7 {offsets = [2, 0, 0], sizes = [8, 16, 128], strides = [1, 1, 1]} : vector<12x16x128xf32> to vector<8x16x128xf32>
    %132 = vector.shape_cast %131 : vector<8x16x128xf32> to vector<128x128xf32>
    %133 = arith.addf %130, %132 : vector<128x128xf32>
    %134 = vector.shape_cast %133 : vector<128x128xf32> to vector<8x16x128xf32>
    %c0_147 = arith.constant 0 : index
    %c0_148 = arith.constant 0 : index
    %c0_149 = arith.constant 0 : index
    %c0_150 = arith.constant 0 : index
    %135 = vector.load %arg7[%c0_147, %c0_148, %c0_149, %c0_150] : memref<1x8x16x128xf32, #tpu.memory_space<vmem>>, vector<1x8x16x128xf32>
    %136 = vector.shape_cast %135 : vector<1x8x16x128xf32> to vector<8x16x128xf32>
    %137 = vector.shape_cast %134 : vector<8x16x128xf32> to vector<1x8x16x128xf32>
    tpu.vector_store %arg7[%c0_147, %c0_148, %c0_149, %c0_150], %137 {strides = array<i32>} : memref<1x8x16x128xf32, #tpu.memory_space<vmem>>, vector<1x8x16x128xf32>,
    return
  }
  func.func @transform_0(%arg0: i32, %arg1: i32) -> (i32, i32, i32, i32, i32) {
    %c0_i32 = arith.constant 0 : i32
    %c0_i32_0 = arith.constant 0 : i32
    %c0_i32_1 = arith.constant 0 : i32
    %c0_i32_2 = arith.constant 0 : i32
    return %arg0, %arg1, %c0_i32, %c0_i32_0, %c0_i32_1 : i32, i32, i32, i32, i32
  }
  func.func @transform_1(%arg0: i32, %arg1: i32) -> (i32, i32, i32) {
    %c0_i32 = arith.constant 0 : i32
    %c0_i32_0 = arith.constant 0 : i32
    %c0_i32_1 = arith.constant 0 : i32
    %c0_i32_2 = arith.constant 0 : i32
    return %c0_i32, %c0_i32_0, %c0_i32_1 : i32, i32, i32
  }
  func.func @transform_2(%arg0: i32, %arg1: i32) -> (i32, i32) {
    %c0_i32 = arith.constant 0 : i32
    %c0_i32_0 = arith.constant 0 : i32
    %c0_i32_1 = arith.constant 0 : i32
    return %c0_i32, %c0_i32_0 : i32, i32
  }
  func.func @transform_3(%arg0: i32, %arg1: i32) -> (i32, i32, i32) {
    %c0_i32 = arith.constant 0 : i32
    %c0_i32_0 = arith.constant 0 : i32
    %c0_i32_1 = arith.constant 0 : i32
    %c0_i32_2 = arith.constant 0 : i32
    return %c0_i32, %c0_i32_0, %c0_i32_1 : i32, i32, i32
  }
  func.func @transform_4(%arg0: i32, %arg1: i32) -> (i32, i32) {
    %c0_i32 = arith.constant 0 : i32
    %c0_i32_0 = arith.constant 0 : i32
    %c0_i32_1 = arith.constant 0 : i32
    return %c0_i32, %c0_i32_0 : i32, i32
  }
  func.func @transform_5(%arg0: i32, %arg1: i32) -> (i32, i32, i32, i32) {
    %c0_i32 = arith.constant 0 : i32
    %c0_i32_0 = arith.constant 0 : i32
    %c0_i32_1 = arith.constant 0 : i32
    return %arg0, %arg1, %c0_i32, %c0_i32_0 : i32, i32, i32, i32
  }
}

</mosaic_0001>

<llo_original>
// kernel: basic_block_forward.1
$region0: #{basic_block_forward.1}
  #allocation0 [shape = 'u32[]', space=smem, size = 0x4, offset = 0x4, fixed_abs, tag = 'smem constant byte address 0x4 - core index']
  #allocation1 [shape = 'u32[72,128]{1,0:T(1,128)}', space=vmem, size = 0x9000, scoped, tag = 'internal scratch']
  #allocation2 [shape = 'f32[12,24,128]{2,1,0:T(8,128)}', space=vmem, size = 0x24000, scoped, tag = 'scratch operand']
  #allocation3 [shape = 'f32[10,24,128]{2,1,0:T(8,128)}', space=vmem, size = 0x1e000, scoped, tag = 'scratch operand']
  %s0 = inlined_call_operand.vmem [shape: f32[2,2,12,16,128], index: 0, kind: input, shape index: {}]
  %s1 = inlined_call_operand.vmem [shape: f32[9,128,128], index: 1, kind: input, shape index: {}]
  %s2 = inlined_call_operand.vmem [shape: f32[1,128], index: 2, kind: input, shape index: {}]
  %s3 = inlined_call_operand.vmem [shape: f32[9,128,128], index: 3, kind: input, shape index: {}]
  %s4 = inlined_call_operand.vmem [shape: f32[1,128], index: 4, kind: input, shape index: {}]
  %s5 = inlined_call_operand.vmem [shape: f32[2,16,16,128], index: 5, kind: output, shape index: {}]
  %s6 = sld [smem:[#allocation0]]
  $region61: #{basic_block_forward.1} parent=0
    _
  %s8 = ssub.s32 1, %s6
  %s9 = scalar_select 0, %s8, %s6
  loop: start=0, step=1, limit=6
  $region2: #{basic_block_forward.1} parent=0 // loop_pre_header
    _
  $region3: #{basic_block_forward.1} parent=0 // loop_header
    %s11 = sphi 0, %s15
    %p12 = scmp.ge.s32.totalorder %s11, 6
    %s18 = sphi 0, %s30
    %s19 = sphi 0, %s26
    %s20 = sphi 0, %s18
    %s21 = sphi 0, %s19
    %s22 = sphi 0, %s20
    %s23 = sphi 0, %s21
    %s35 = sphi 0, %s37
    %s38 = sphi 0, %s35
    %s39 = sphi 0, %s38
    %s55 = sphi 0, %s39
    %s59 = sphi 0, %s59
    %s61 = sphi 0, %s59
    %s62 = sphi 0, %s61
    %s76 = sphi 0, %s62
    %s80 = sphi 0, %s80
    %s82 = sphi 0, %s80
    %s83 = sphi 0, %s82
    %s97 = sphi 0, %s83
    %s101 = sphi 0, %s101
    %s103 = sphi 0, %s101
    %s104 = sphi 0, %s103
    %s118 = sphi 0, %s104
    %s122 = sphi 0, %s122
    %s124 = sphi 0, %s122
    %s125 = sphi 0, %s124
    %s139 = sphi 0, %s125
    %s147 = sphi 0, %s149
    %s150 = sphi 0, %s147
    %s151 = sphi 0, %s150
    %s167 = sphi 0, %s151
  $region4: #{basic_block_forward.1} parent=0 // loop_header_branch
    %14 = sbr.rel (%p12) target = $region8
  $region5: #{basic_block_forward.1} parent=0 // loop_body
    %s16 = ssub.s32 %s11, 1
    %s17 = ssub.s32 %s11, 2
    %s24 = sadd.s32 1, %s19
    %p25 = scmp.ge.s32.totalorder %s24, 2
    %s26 = scalar_select %p25, 0, %s24
    %s27 = sadd.s32 1, %s18
    %s28 = scalar_select %p25, %s27, %s18
    %p29 = scmp.ge.s32.totalorder %s28, 2
    %s30 = scalar_select %p29, 0, %s28
    %s31 = ssub.s32 %s18, %s30
    %s32 = ssub.s32 %s19, %s26
    %s33 = sor.u32 %s31, %s32
    %p34 = scmp.eq.s32.totalorder %s33, 0
    %s36 = sadd.s32 %s35, 1
    %s37 = scalar_select %p34, %s35, %s36
    %p40 = pneg %p34
    %p41 = scmp.eq.s32.totalorder %s11, 3
    %p42 = por %p40, %p41
    %p43 = scmp.ne.s32.totalorder %s35, %s38
    %p44 = scmp.eq.s32.totalorder %s11, 0
    %p45 = por %p43, %p44
    %p46 = scmp.ne.s32.totalorder %s35, %s38
    %p47 = scmp.eq.s32.totalorder %s16, 3
    %p48 = por %p46, %p47
    %p49 = scmp.ne.s32.totalorder %s38, %s39
    %p50 = scmp.eq.s32.totalorder %s16, 0
    %p51 = por %p49, %p50
    %p52 = scmp.ne.s32.totalorder %s38, %s39
    %p53 = scmp.eq.s32.totalorder %s17, 3
    %p54 = por %p52, %p53
    %p56 = scmp.ne.s32.totalorder %s39, %s55
    %p57 = scmp.eq.s32.totalorder %s17, 0
    %p58 = por %p56, %p57
    %s60 = sadd.s32 %s59, 1
    %p63 = scmp.eq.s32.totalorder %s11, 3
    %p64 = scmp.ne.s32.totalorder %s59, %s61
    %p65 = scmp.eq.s32.totalorder %s11, 0
    %p66 = por %p64, %p65
    %p67 = scmp.ne.s32.totalorder %s59, %s61
    %p68 = scmp.eq.s32.totalorder %s16, 3
    %p69 = por %p67, %p68
    %p70 = scmp.ne.s32.totalorder %s61, %s62
    %p71 = scmp.eq.s32.totalorder %s16, 0
    %p72 = por %p70, %p71
    %p73 = scmp.ne.s32.totalorder %s61, %s62
    %p74 = scmp.eq.s32.totalorder %s17, 3
    %p75 = por %p73, %p74
    %p77 = scmp.ne.s32.totalorder %s62, %s76
    %p78 = scmp.eq.s32.totalorder %s17, 0
    %p79 = por %p77, %p78
    %s81 = sadd.s32 %s80, 1
    %p84 = scmp.eq.s32.totalorder %s11, 3
    %p85 = scmp.ne.s32.totalorder %s80, %s82
    %p86 = scmp.eq.s32.totalorder %s11, 0
    %p87 = por %p85, %p86
    %p88 = scmp.ne.s32.totalorder %s80, %s82
    %p89 = scmp.eq.s32.totalorder %s16, 3
    %p90 = por %p88, %p89
    %p91 = scmp.ne.s32.totalorder %s82, %s83
    %p92 = scmp.eq.s32.totalorder %s16, 0
    %p93 = por %p91, %p92
    %p94 = scmp.ne.s32.totalorder %s82, %s83
    %p95 = scmp.eq.s32.totalorder %s17, 3
    %p96 = por %p94, %p95
    %p98 = scmp.ne.s32.totalorder %s83, %s97
    %p99 = scmp.eq.s32.totalorder %s17, 0
    %p100 = por %p98, %p99
    %s102 = sadd.s32 %s101, 1
    %p105 = scmp.eq.s32.totalorder %s11, 3
    %p106 = scmp.ne.s32.totalorder %s101, %s103
    %p107 = scmp.eq.s32.totalorder %s11, 0
    %p108 = por %p106, %p107
    %p109 = scmp.ne.s32.totalorder %s101, %s103
    %p110 = scmp.eq.s32.totalorder %s16, 3
    %p111 = por %p109, %p110
    %p112 = scmp.ne.s32.totalorder %s103, %s104
    %p113 = scmp.eq.s32.totalorder %s16, 0
    %p114 = por %p112, %p113
    %p115 = scmp.ne.s32.totalorder %s103, %s104
    %p116 = scmp.eq.s32.totalorder %s17, 3
    %p117 = por %p115, %p116
    %p119 = scmp.ne.s32.totalorder %s104, %s118
    %p120 = scmp.eq.s32.totalorder %s17, 0
    %p121 = por %p119, %p120
    %s123 = sadd.s32 %s122, 1
    %p126 = scmp.eq.s32.totalorder %s11, 3
    %p127 = scmp.ne.s32.totalorder %s122, %s124
    %p128 = scmp.eq.s32.totalorder %s11, 0
    %p129 = por %p127, %p128
    %p130 = scmp.ne.s32.totalorder %s122, %s124
    %p131 = scmp.eq.s32.totalorder %s16, 3
    %p132 = por %p130, %p131
    %p133 = scmp.ne.s32.totalorder %s124, %s125
    %p134 = scmp.eq.s32.totalorder %s16, 0
    %p135 = por %p133, %p134
    %p136 = scmp.ne.s32.totalorder %s124, %s125
    %p137 = scmp.eq.s32.totalorder %s17, 3
    %p138 = por %p136, %p137
    %p140 = scmp.ne.s32.totalorder %s125, %s139
    %p141 = scmp.eq.s32.totalorder %s17, 0
    %p142 = por %p140, %p141
    %s143 = ssub.s32 %s18, %s30
    %s144 = ssub.s32 %s19, %s26
    %s145 = sor.u32 %s143, %s144
    %p146 = scmp.eq.s32.totalorder %s145, 0
    %s148 = sadd.s32 %s147, 1
    %s149 = scalar_select %p146, %s147, %s148
    %p152 = pneg %p146
    %p153 = scmp.eq.s32.totalorder %s11, 3
    %p154 = por %p152, %p153
    %p155 = scmp.ne.s32.totalorder %s147, %s150
    %p156 = scmp.eq.s32.totalorder %s11, 0
    %p157 = por %p155, %p156
    %p158 = scmp.ne.s32.totalorder %s147, %s150
    %p159 = scmp.eq.s32.totalorder %s16, 3
    %p160 = por %p158, %p159
    %p161 = scmp.ne.s32.totalorder %s150, %s151
    %p162 = scmp.eq.s32.totalorder %s16, 0
    %p163 = por %p161, %p162
    %p164 = scmp.ne.s32.totalorder %s150, %s151
    %p165 = scmp.eq.s32.totalorder %s17, 3
    %p166 = por %p164, %p165
    %p168 = scmp.ne.s32.totalorder %s151, %s167
    %p169 = scmp.eq.s32.totalorder %s17, 0
    %p170 = por %p168, %p169
    %p171 = scmp.le.s32.totalorder 1, %s11
    %p172 = scmp.lt.s32.totalorder %s11, 5
    %p173 = pnand %p171, %p172
    %p174 = pneg %p173
    // Predicated region
    $region9: #{basic_block_forward.1} parent=5 // pred_check
      _
    $region10: #{basic_block_forward.1} parent=5 // pred_check_branch
      %176 = sbr.rel (%p173) target = $region12
    $region11: #{basic_block_forward.1} parent=5 // pred_region
      %s177 = ssub.s32 %s11, 1
      // Predicated region
      $region13: #{basic_block_forward.1} parent=11 // pred_check
        %p178 = pneg %p72
      $region14: #{basic_block_forward.1} parent=11 // pred_check_branch
        %180 = sbr.rel (%p178) target = $region16
      $region15: #{basic_block_forward.1} parent=11 // pred_region
        _
      $region16: #{basic_block_forward.1} parent=11 // pred_fallthru
        _
      // Predicated region
      $region17: #{basic_block_forward.1} parent=11 // pred_check
        %p181 = pneg %p93
      $region18: #{basic_block_forward.1} parent=11 // pred_check_branch
        %183 = sbr.rel (%p181) target = $region20
      $region19: #{basic_block_forward.1} parent=11 // pred_region
        _
      $region20: #{basic_block_forward.1} parent=11 // pred_fallthru
        _
      // Predicated region
      $region21: #{basic_block_forward.1} parent=11 // pred_check
        %p184 = pneg %p114
      $region22: #{basic_block_forward.1} parent=11 // pred_check_branch
        %186 = sbr.rel (%p184) target = $region24
      $region23: #{basic_block_forward.1} parent=11 // pred_region
        _
      $region24: #{basic_block_forward.1} parent=11 // pred_fallthru
        _
      // Predicated region
      $region25: #{basic_block_forward.1} parent=11 // pred_check
        %p187 = pneg %p135
      $region26: #{basic_block_forward.1} parent=11 // pred_check_branch
        %189 = sbr.rel (%p187) target = $region28
      $region27: #{basic_block_forward.1} parent=11 // pred_region
        _
      $region28: #{basic_block_forward.1} parent=11 // pred_fallthru
        _
    $region12: #{basic_block_forward.1} parent=5 // pred_fallthru
      _
    %p190 = scmp.lt.s32.totalorder %s11, 4
    // Predicated region
    $region29: #{basic_block_forward.1} parent=5 // pred_check
      %p191 = pneg %p190
    $region30: #{basic_block_forward.1} parent=5 // pred_check_branch
      %193 = sbr.rel (%p191) target = $region32
    $region31: #{basic_block_forward.1} parent=5 // pred_region
      // Predicated region
      $region33: #{basic_block_forward.1} parent=31 // pred_check
        %p194 = pneg %p45
      $region34: #{basic_block_forward.1} parent=31 // pred_check_branch
        %196 = sbr.rel (%p194) target = $region36
      $region35: #{basic_block_forward.1} parent=31 // pred_region
        %p197 = scmp.lt.s32.totalorder %s18, 1
        %s198 = scalar_select %p197, %s18, 1
        %p199 = scmp.lt.s32.totalorder %s19, 1
        %s200 = scalar_select %p199, %s19, 1
        %s201 = smul.addr %s200, 24
        %s202 = smul.addr %s198, 48
        %s203 = sadd.s32 %s201, %s202
        %s204 = smul.addr %s203, 8
        %s205 = scalar_lea.vmem %s0, %s204
      $region36: #{basic_block_forward.1} parent=31 // pred_fallthru
        _
    $region32: #{basic_block_forward.1} parent=5 // pred_fallthru
      _
    %p206 = scmp.le.s32.totalorder 1, %s11
    %p207 = scmp.lt.s32.totalorder %s11, 5
    %p208 = pnand %p206, %p207
    %p209 = pneg %p208
    // Predicated region
    $region37: #{basic_block_forward.1} parent=5 // pred_check
      _
    $region38: #{basic_block_forward.1} parent=5 // pred_check_branch
      %211 = sbr.rel (%p208) target = $region40
    $region39: #{basic_block_forward.1} parent=5 // pred_region
      %s212 = ssub.s32 %s11, 1
      %p213 = scmp.lt.s32.totalorder %s20, 1
      %s214 = scalar_select %p213, %s20, 1
      %p215 = scmp.lt.s32.totalorder %s21, 1
      %s216 = scalar_select %p215, %s21, 1
      %s217 = smul.addr %s216, 24
      %s218 = smul.addr %s214, 48
      %s219 = sadd.s32 %s217, %s218
      %s220 = smul.addr %s219, 8
      %s221 = scalar_lea.vmem %s0, %s220
      %p222 = pneg %p51
      %p223 = pneg %p48
      %p224 = pneg %p72
      %p225 = pneg %p69
      %p226 = pneg %p93
      %p227 = pneg %p90
      %p228 = pneg %p114
      %p229 = pneg %p111
      %p230 = pneg %p135
      %p231 = pneg %p132
      %p232 = pneg %p163
      %p233 = pneg %p160
      %s234 = smul.u32 8, %s21
      %p235 = scmp.lt.s32.totalorder %s20, 1
      %s236 = scalar_select %p235, %s20, 1
      %p237 = scmp.lt.s32.totalorder %s234, 15
      %s238 = scalar_select %p237, %s234, 15
      %s239 = smul.addr %s238, 2
      %s240 = smul.addr %s236, 32
      %s241 = sadd.s32 %s239, %s240
      %s242 = smul.addr %s241, 8
      %s243 = scalar_lea.vmem %s5, %s242
      %p244 = scmp.lt.s32.totalorder %s20, 1
      %s245 = scalar_select %p244, %s20, 1
      %p246 = scmp.lt.s32.totalorder %s21, 1
      %s247 = scalar_select %p246, %s21, 1
      %s248 = smul.addr %s247, 24
      %s249 = smul.addr %s245, 48
      %s250 = sadd.s32 %s248, %s249
      %s251 = smul.addr %s250, 8
      %s252 = scalar_lea.vmem %s0, %s251
      %s253 = smul.u32 8, %s21
      %p254 = scmp.lt.s32.totalorder %s20, 1
      %s255 = scalar_select %p254, %s20, 1
      %p256 = scmp.lt.s32.totalorder %s253, 15
      %s257 = scalar_select %p256, %s253, 15
      %s258 = smul.addr %s257, 2
      %s259 = smul.addr %s255, 32
      %s260 = sadd.s32 %s258, %s259
      %s261 = smul.addr %s260, 8
      %s262 = scalar_lea.vmem %s5, %s261
      %s263 = smul.u32 8, %s21
      %264 = vst [vmem:[#allocation2] sm:$0x1] 0.0
      %265 = vst [vmem:[#allocation2 + $0x18] sm:$0x1] 0.0
      %266 = vst [vmem:[#allocation2 + $0x30] sm:$0x1] 0.0
      %267 = vst [vmem:[#allocation2 + $0x48] sm:$0x1] 0.0
      %268 = vst [vmem:[#allocation2 + $0x60] sm:$0x1] 0.0
      %269 = vst [vmem:[#allocation2 + $0x78] sm:$0x1] 0.0
      %270 = vst [vmem:[#allocation2 + $0x90] sm:$0x1] 0.0
      %271 = vst [vmem:[#allocation2 + $0xa8] sm:$0x1] 0.0
      %272 = vst [vmem:[#allocation2 + $0xc0] sm:$0x1] 0.0
      %273 = vst [vmem:[#allocation2 + $0xd8] sm:$0x1] 0.0
      %274 = vst [vmem:[#allocation2 + $0xf0] sm:$0x1] 0.0
      %275 = vst [vmem:[#allocation2 + $0x108] sm:$0x1] 0.0
      %276 = vst [vmem:[#allocation2 + $0x11] sm:$0x1] 0.0
      %277 = vst [vmem:[#allocation2 + $0x29] sm:$0x1] 0.0
      %278 = vst [vmem:[#allocation2 + $0x41] sm:$0x1] 0.0
      %279 = vst [vmem:[#allocation2 + $0x59] sm:$0x1] 0.0
      %280 = vst [vmem:[#allocation2 + $0x71] sm:$0x1] 0.0
      %281 = vst [vmem:[#allocation2 + $0x89] sm:$0x1] 0.0
      %282 = vst [vmem:[#allocation2 + $0xa1] sm:$0x1] 0.0
      %283 = vst [vmem:[#allocation2 + $0xb9] sm:$0x1] 0.0
      %284 = vst [vmem:[#allocation2 + $0xd1] sm:$0x1] 0.0
      %285 = vst [vmem:[#allocation2 + $0xe9] sm:$0x1] 0.0
      %286 = vst [vmem:[#allocation2 + $0x101] sm:$0x1] 0.0
      %287 = vst [vmem:[#allocation2 + $0x119] sm:$0x1] 0.0
      %288 = vst [vmem:[#allocation3] sm:$0x1] 0.0
      %289 = vst [vmem:[#allocation3 + $0x18] sm:$0x1] 0.0
      %290 = vst [vmem:[#allocation3 + $0x30] sm:$0x1] 0.0
      %291 = vst [vmem:[#allocation3 + $0x48] sm:$0x1] 0.0
      %292 = vst [vmem:[#allocation3 + $0x60] sm:$0x1] 0.0
      %293 = vst [vmem:[#allocation3 + $0x78] sm:$0x1] 0.0
      %294 = vst [vmem:[#allocation3 + $0x90] sm:$0x1] 0.0
      %295 = vst [vmem:[#allocation3 + $0xa8] sm:$0x1] 0.0
      %296 = vst [vmem:[#allocation3 + $0xc0] sm:$0x1] 0.0
      %297 = vst [vmem:[#allocation3 + $0xd8] sm:$0x1] 0.0
      %298 = vst [vmem:[#allocation3 + $0x11] sm:$0x1] 0.0
      %299 = vst [vmem:[#allocation3 + $0x29] sm:$0x1] 0.0
      %300 = vst [vmem:[#allocation3 + $0x41] sm:$0x1] 0.0
      %301 = vst [vmem:[#allocation3 + $0x59] sm:$0x1] 0.0
      %302 = vst [vmem:[#allocation3 + $0x71] sm:$0x1] 0.0
      %303 = vst [vmem:[#allocation3 + $0x89] sm:$0x1] 0.0
      %304 = vst [vmem:[#allocation3 + $0xa1] sm:$0x1] 0.0
      %305 = vst [vmem:[#allocation3 + $0xb9] sm:$0x1] 0.0
      %306 = vst [vmem:[#allocation3 + $0xd1] sm:$0x1] 0.0
      %307 = vst [vmem:[#allocation3 + $0xe9] sm:$0x1] 0.0
      %v308 = vld [vmem:[%s252] sm:$0xff]
      %v309 = vld [vmem:[%s252 + $0x8] sm:$0xff]
      %v310 = vld [vmem:[%s252 + $0x10] sm:$0xff]
      %v311 = vld [vmem:[%s252 + $0x18] sm:$0xff]
      %v312 = vld [vmem:[%s252 + $0x20] sm:$0xff]
      %v313 = vld [vmem:[%s252 + $0x28] sm:$0xff]
      %v314 = vld [vmem:[%s252 + $0x30] sm:$0xff]
      %v315 = vld [vmem:[%s252 + $0x38] sm:$0xff]
      %v316 = vld [vmem:[%s252 + $0x40] sm:$0xff]
      %v317 = vld [vmem:[%s252 + $0x48] sm:$0xff]
      %v318 = vld [vmem:[%s252 + $0x50] sm:$0xff]
      %v319 = vld [vmem:[%s252 + $0x58] sm:$0xff]
      %v320 = vld [vmem:[%s252 + $0x60] sm:$0xff]
      %v321 = vld [vmem:[%s252 + $0x68] sm:$0xff]
      %v322 = vld [vmem:[%s252 + $0x70] sm:$0xff]
      %v323 = vld [vmem:[%s252 + $0x78] sm:$0xff]
      %v324 = vld [vmem:[%s252 + $0x80] sm:$0xff]
      %v325 = vld [vmem:[%s252 + $0x88] sm:$0xff]
      %v326 = vld [vmem:[%s252 + $0x90] sm:$0xff]
      %v327 = vld [vmem:[%s252 + $0x98] sm:$0xff]
      %v328 = vld [vmem:[%s252 + $0xa0] sm:$0xff]
      %v329 = vld [vmem:[%s252 + $0xa8] sm:$0xff]
      %v330 = vld [vmem:[%s252 + $0xb0] sm:$0xff]
      %v331 = vld [vmem:[%s252 + $0xb8] sm:$0xff]
      %332 = vst [vmem:[#allocation2 + $0x1] sm:$0xff] %v308
      %333 = vst [vmem:[#allocation2 + $0x9] sm:$0xff] %v309
      %334 = vst [vmem:[#allocation2 + $0x19] sm:$0xff] %v310
      %335 = vst [vmem:[#allocation2 + $0x21] sm:$0xff] %v311
      %336 = vst [vmem:[#allocation2 + $0x31] sm:$0xff] %v312
      %337 = vst [vmem:[#allocation2 + $0x39] sm:$0xff] %v313
      %338 = vst [vmem:[#allocation2 + $0x49] sm:$0xff] %v314
      %339 = vst [vmem:[#allocation2 + $0x51] sm:$0xff] %v315
      %340 = vst [vmem:[#allocation2 + $0x61] sm:$0xff] %v316
      %341 = vst [vmem:[#allocation2 + $0x69] sm:$0xff] %v317
      %342 = vst [vmem:[#allocation2 + $0x79] sm:$0xff] %v318
      %343 = vst [vmem:[#allocation2 + $0x81] sm:$0xff] %v319
      %344 = vst [vmem:[#allocation2 + $0x91] sm:$0xff] %v320
      %345 = vst [vmem:[#allocation2 + $0x99] sm:$0xff] %v321
      %346 = vst [vmem:[#allocation2 + $0xa9] sm:$0xff] %v322
      %347 = vst [vmem:[#allocation2 + $0xb1] sm:$0xff] %v323
      %348 = vst [vmem:[#allocation2 + $0xc1] sm:$0xff] %v324
      %349 = vst [vmem:[#allocation2 + $0xc9] sm:$0xff] %v325
      %350 = vst [vmem:[#allocation2 + $0xd9] sm:$0xff] %v326
      %351 = vst [vmem:[#allocation2 + $0xe1] sm:$0xff] %v327
      %352 = vst [vmem:[#allocation2 + $0xf1] sm:$0xff] %v328
      %353 = vst [vmem:[#allocation2 + $0xf9] sm:$0xff] %v329
      %354 = vst [vmem:[#allocation2 + $0x109] sm:$0xff] %v330
      %355 = vst [vmem:[#allocation2 + $0x111] sm:$0xff] %v331
      %v356 = vld [vmem:[#allocation2] sm:$0xff]
      %v357 = vld [vmem:[#allocation2 + $0x8] sm:$0xff]
      %v358 = vld [vmem:[#allocation2 + $0x18] sm:$0xff]
      %v359 = vld [vmem:[#allocation2 + $0x20] sm:$0xff]
      %v360 = vld [vmem:[#allocation2 + $0x30] sm:$0xff]
      %v361 = vld [vmem:[#allocation2 + $0x38] sm:$0xff]
      %v362 = vld [vmem:[#allocation2 + $0x48] sm:$0xff]
      %v363 = vld [vmem:[#allocation2 + $0x50] sm:$0xff]
      %v364 = vld [vmem:[#allocation2 + $0x60] sm:$0xff]
      %v365 = vld [vmem:[#allocation2 + $0x68] sm:$0xff]
      %v366 = vld [vmem:[#allocation2 + $0x78] sm:$0xff]
      %v367 = vld [vmem:[#allocation2 + $0x80] sm:$0xff]
      %v368 = vld [vmem:[#allocation2 + $0x90] sm:$0xff]
      %v369 = vld [vmem:[#allocation2 + $0x98] sm:$0xff]
      %v370 = vld [vmem:[#allocation2 + $0xa8] sm:$0xff]
      %v371 = vld [vmem:[#allocation2 + $0xb0] sm:$0xff]
      %v372 = vld [vmem:[#allocation2 + $0xc0] sm:$0xff]
      %v373 = vld [vmem:[#allocation2 + $0xc8] sm:$0xff]
      %v374 = vld [vmem:[#allocation2 + $0xd8] sm:$0xff]
      %v375 = vld [vmem:[#allocation2 + $0xe0] sm:$0xff]
      %v376 = vld [vmem:[%s1] sm:$0xff]
      %v377 = vld [vmem:[%s1 + $0x8] sm:$0xff]
      %v378 = vld [vmem:[%s1 + $0x10] sm:$0xff]
      %v379 = vld [vmem:[%s1 + $0x18] sm:$0xff]
      %v380 = vld [vmem:[%s1 + $0x20] sm:$0xff]
      %v381 = vld [vmem:[%s1 + $0x28] sm:$0xff]
      %v382 = vld [vmem:[%s1 + $0x30] sm:$0xff]
      %v383 = vld [vmem:[%s1 + $0x38] sm:$0xff]
      %v384 = vld [vmem:[%s1 + $0x40] sm:$0xff]
      %v385 = vld [vmem:[%s1 + $0x48] sm:$0xff]
      %v386 = vld [vmem:[%s1 + $0x50] sm:$0xff]
      %v387 = vld [vmem:[%s1 + $0x58] sm:$0xff]
      %v388 = vld [vmem:[%s1 + $0x60] sm:$0xff]
      %v389 = vld [vmem:[%s1 + $0x68] sm:$0xff]
      %v390 = vld [vmem:[%s1 + $0x70] sm:$0xff]
      %v391 = vld [vmem:[%s1 + $0x78] sm:$0xff]
      %v392 = vld [vmem:[#allocation2 + $0x1] sm:$0xff]
      %v393 = vld [vmem:[#allocation2 + $0x9] sm:$0xff]
      %v394 = vld [vmem:[#allocation2 + $0x19] sm:$0xff]
      %v395 = vld [vmem:[#allocation2 + $0x21] sm:$0xff]
      %v396 = vld [vmem:[#allocation2 + $0x31] sm:$0xff]
      %v397 = vld [vmem:[#allocation2 + $0x39] sm:$0xff]
      %v398 = vld [vmem:[#allocation2 + $0x49] sm:$0xff]
      %v399 = vld [vmem:[#allocation2 + $0x51] sm:$0xff]
      %v400 = vld [vmem:[#allocation2 + $0x61] sm:$0xff]
      %v401 = vld [vmem:[#allocation2 + $0x69] sm:$0xff]
      %v402 = vld [vmem:[#allocation2 + $0x79] sm:$0xff]
      %v403 = vld [vmem:[#allocation2 + $0x81] sm:$0xff]
      %v404 = vld [vmem:[#allocation2 + $0x91] sm:$0xff]
      %v405 = vld [vmem:[#allocation2 + $0x99] sm:$0xff]
      %v406 = vld [vmem:[#allocation2 + $0xa9] sm:$0xff]
      %v407 = vld [vmem:[#allocation2 + $0xb1] sm:$0xff]
      %v408 = vld [vmem:[#allocation2 + $0xc1] sm:$0xff]
      %v409 = vld [vmem:[#allocation2 + $0xc9] sm:$0xff]
      %v410 = vld [vmem:[#allocation2 + $0xd9] sm:$0xff]
      %v411 = vld [vmem:[#allocation2 + $0xe1] sm:$0xff]
      %s412 = scalar_lea.vmem %s1, 128
      %v413 = vld [vmem:[%s412] sm:$0xff]
      %v414 = vld [vmem:[%s412 + $0x8] sm:$0xff]
      %v415 = vld [vmem:[%s412 + $0x10] sm:$0xff]
      %v416 = vld [vmem:[%s412 + $0x18] sm:$0xff]
      %v417 = vld [vmem:[%s412 + $0x20] sm:$0xff]
      %v418 = vld [vmem:[%s412 + $0x28] sm:$0xff]
      %v419 = vld [vmem:[%s412 + $0x30] sm:$0xff]
      %v420 = vld [vmem:[%s412 + $0x38] sm:$0xff]
      %v421 = vld [vmem:[%s412 + $0x40] sm:$0xff]
      %v422 = vld [vmem:[%s412 + $0x48] sm:$0xff]
      %v423 = vld [vmem:[%s412 + $0x50] sm:$0xff]
      %v424 = vld [vmem:[%s412 + $0x58] sm:$0xff]
      %v425 = vld [vmem:[%s412 + $0x60] sm:$0xff]
      %v426 = vld [vmem:[%s412 + $0x68] sm:$0xff]
      %v427 = vld [vmem:[%s412 + $0x70] sm:$0xff]
      %v428 = vld [vmem:[%s412 + $0x78] sm:$0xff]
      %429 = vmatpush.msra.mxu0 %v428
      %430 = vmatpush.msra.mxu0 %v427
      %431 = vmatpush.msra.mxu0 %v426
      %432 = vmatpush.msra.mxu0 %v425
      %433 = vmatpush.msra.mxu0 %v424
      %434 = vmatpush.msra.mxu0 %v423
      %435 = vmatpush.msra.mxu0 %v422
      %436 = vmatpush.msra.mxu0 %v421
      %437 = vmatpush.msra.mxu0 %v420
      %438 = vmatpush.msra.mxu0 %v419
      %439 = vmatpush.msra.mxu0 %v418
      %440 = vmatpush.msra.mxu0 %v417
      %441 = vmatpush.msra.mxu0 %v416
      %442 = vmatpush.msra.mxu0 %v415
      %443 = vmatpush.msra.mxu0 %v414
      %444 = vmatpush.msra.mxu0 %v413
      %445 = vmatmul.f32.gmra.mxu0 %v392
      %v446 = vpop.f32.mrf.mxu0
      %v447 = vadd.f32 0.0, %v446
      %448 = vmatmul.f32.gmra.mxu0 %v393
      %v449 = vpop.f32.mrf.mxu0
      %v450 = vadd.f32 0.0, %v449
      %451 = vmatmul.f32.gmra.mxu0 %v394
      %v452 = vpop.f32.mrf.mxu0
      %v453 = vadd.f32 0.0, %v452
      %454 = vmatmul.f32.gmra.mxu0 %v395
      %v455 = vpop.f32.mrf.mxu0
      %v456 = vadd.f32 0.0, %v455
      %457 = vmatmul.f32.gmra.mxu0 %v396
      %v458 = vpop.f32.mrf.mxu0
      %v459 = vadd.f32 0.0, %v458
      %460 = vmatmul.f32.gmra.mxu0 %v397
      %v461 = vpop.f32.mrf.mxu0
      %v462 = vadd.f32 0.0, %v461
      %463 = vmatmul.f32.gmra.mxu0 %v398
      %v464 = vpop.f32.mrf.mxu0
      %v465 = vadd.f32 0.0, %v464
      %466 = vmatmul.f32.gmra.mxu0 %v399
      %v467 = vpop.f32.mrf.mxu0
      %v468 = vadd.f32 0.0, %v467
      %469 = vmatmul.f32.gmra.mxu0 %v400
      %v470 = vpop.f32.mrf.mxu0
      %v471 = vadd.f32 0.0, %v470
      %472 = vmatmul.f32.gmra.mxu0 %v401
      %v473 = vpop.f32.mrf.mxu0
      %v474 = vadd.f32 0.0, %v473
      %475 = vmatmul.f32.gmra.mxu0 %v402
      %v476 = vpop.f32.mrf.mxu0
      %v477 = vadd.f32 0.0, %v476
      %478 = vmatmul.f32.gmra.mxu0 %v403
      %v479 = vpop.f32.mrf.mxu0
      %v480 = vadd.f32 0.0, %v479
      %481 = vmatmul.f32.gmra.mxu0 %v404
      %v482 = vpop.f32.mrf.mxu0
      %v483 = vadd.f32 0.0, %v482
      %484 = vmatmul.f32.gmra.mxu0 %v405
      %v485 = vpop.f32.mrf.mxu0
      %v486 = vadd.f32 0.0, %v485
      %487 = vmatmul.f32.gmra.mxu0 %v406
      %v488 = vpop.f32.mrf.mxu0
      %v489 = vadd.f32 0.0, %v488
      %490 = vmatmul.f32.gmra.mxu0 %v407
      %v491 = vpop.f32.mrf.mxu0
      %v492 = vadd.f32 0.0, %v491
      %493 = vmatmul.f32.gmra.mxu0 %v408
      %v494 = vpop.f32.mrf.mxu0
      %v495 = vadd.f32 0.0, %v494
      %496 = vmatmul.f32.gmra.mxu0 %v409
      %v497 = vpop.f32.mrf.mxu0
      %v498 = vadd.f32 0.0, %v497
      %499 = vmatmul.f32.gmra.mxu0 %v410
      %v500 = vpop.f32.mrf.mxu0
      %v501 = vadd.f32 0.0, %v500
      %502 = vmatmul.f32.gmra.mxu0 %v411
      %v503 = vpop.f32.mrf.mxu0
      %v504 = vadd.f32 0.0, %v503
      %505 = vdwg.mxu0
      %506 = vmatpush.msra.mxu0 %v391
      %507 = vmatpush.msra.mxu0 %v390
      %508 = vmatpush.msra.mxu0 %v389
      %509 = vmatpush.msra.mxu0 %v388
      %510 = vmatpush.msra.mxu0 %v387
      %511 = vmatpush.msra.mxu0 %v386
      %512 = vmatpush.msra.mxu0 %v385
      %513 = vmatpush.msra.mxu0 %v384
      %514 = vmatpush.msra.mxu0 %v383
      %515 = vmatpush.msra.mxu0 %v382
      %516 = vmatpush.msra.mxu0 %v381
      %517 = vmatpush.msra.mxu0 %v380
      %518 = vmatpush.msra.mxu0 %v379
      %519 = vmatpush.msra.mxu0 %v378
      %520 = vmatpush.msra.mxu0 %v377
      %521 = vmatpush.msra.mxu0 %v376
      %522 = vmatmul.f32.gmra.mxu0 %v356
      %v523 = vpop.f32.mrf.mxu0
      %v524 = vadd.f32 %v447, %v523
      %525 = vmatmul.f32.gmra.mxu0 %v357
      %v526 = vpop.f32.mrf.mxu0
      %v527 = vadd.f32 %v450, %v526
      %528 = vmatmul.f32.gmra.mxu0 %v358
      %v529 = vpop.f32.mrf.mxu0
      %v530 = vadd.f32 %v453, %v529
      %531 = vmatmul.f32.gmra.mxu0 %v359
      %v532 = vpop.f32.mrf.mxu0
      %v533 = vadd.f32 %v456, %v532
      %534 = vmatmul.f32.gmra.mxu0 %v360
      %v535 = vpop.f32.mrf.mxu0
      %v536 = vadd.f32 %v459, %v535
      %537 = vmatmul.f32.gmra.mxu0 %v361
      %v538 = vpop.f32.mrf.mxu0
      %v539 = vadd.f32 %v462, %v538
      %540 = vmatmul.f32.gmra.mxu0 %v362
      %v541 = vpop.f32.mrf.mxu0
      %v542 = vadd.f32 %v465, %v541
      %543 = vmatmul.f32.gmra.mxu0 %v363
      %v544 = vpop.f32.mrf.mxu0
      %v545 = vadd.f32 %v468, %v544
      %546 = vmatmul.f32.gmra.mxu0 %v364
      %v547 = vpop.f32.mrf.mxu0
      %v548 = vadd.f32 %v471, %v547
      %549 = vmatmul.f32.gmra.mxu0 %v365
      %v550 = vpop.f32.mrf.mxu0
      %v551 = vadd.f32 %v474, %v550
      %552 = vmatmul.f32.gmra.mxu0 %v366
      %v553 = vpop.f32.mrf.mxu0
      %v554 = vadd.f32 %v477, %v553
      %555 = vmatmul.f32.gmra.mxu0 %v367
      %v556 = vpop.f32.mrf.mxu0
      %v557 = vadd.f32 %v480, %v556
      %558 = vmatmul.f32.gmra.mxu0 %v368
      %v559 = vpop.f32.mrf.mxu0
      %v560 = vadd.f32 %v483, %v559
      %561 = vmatmul.f32.gmra.mxu0 %v369
      %v562 = vpop.f32.mrf.mxu0
      %v563 = vadd.f32 %v486, %v562
      %564 = vmatmul.f32.gmra.mxu0 %v370
      %v565 = vpop.f32.mrf.mxu0
      %v566 = vadd.f32 %v489, %v565
      %567 = vmatmul.f32.gmra.mxu0 %v371
      %v568 = vpop.f32.mrf.mxu0
      %v569 = vadd.f32 %v492, %v568
      %570 = vmatmul.f32.gmra.mxu0 %v372
      %v571 = vpop.f32.mrf.mxu0
      %v572 = vadd.f32 %v495, %v571
      %573 = vmatmul.f32.gmra.mxu0 %v373
      %v574 = vpop.f32.mrf.mxu0
      %v575 = vadd.f32 %v498, %v574
      %576 = vmatmul.f32.gmra.mxu0 %v374
      %v577 = vpop.f32.mrf.mxu0
      %v578 = vadd.f32 %v501, %v577
      %579 = vmatmul.f32.gmra.mxu0 %v375
      %v580 = vpop.f32.mrf.mxu0
      %v581 = vadd.f32 %v504, %v580
      %582 = vdwg.mxu0
      %v583 = vld [vmem:[#allocation2 + $0x2] sm:$0xff]
      %v584 = vld [vmem:[#allocation2 + $0xa] sm:$0xff]
      %v585 = vld [vmem:[#allocation2 + $0x1a] sm:$0xff]
      %v586 = vld [vmem:[#allocation2 + $0x22] sm:$0xff]
      %v587 = vld [vmem:[#allocation2 + $0x32] sm:$0xff]
      %v588 = vld [vmem:[#allocation2 + $0x3a] sm:$0xff]
      %v589 = vld [vmem:[#allocation2 + $0x4a] sm:$0xff]
      %v590 = vld [vmem:[#allocation2 + $0x52] sm:$0xff]
      %v591 = vld [vmem:[#allocation2 + $0x62] sm:$0xff]
      %v592 = vld [vmem:[#allocation2 + $0x6a] sm:$0xff]
      %v593 = vld [vmem:[#allocation2 + $0x7a] sm:$0xff]
      %v594 = vld [vmem:[#allocation2 + $0x82] sm:$0xff]
      %v595 = vld [vmem:[#allocation2 + $0x92] sm:$0xff]
      %v596 = vld [vmem:[#allocation2 + $0x9a] sm:$0xff]
      %v597 = vld [vmem:[#allocation2 + $0xaa] sm:$0xff]
      %v598 = vld [vmem:[#allocation2 + $0xb2] sm:$0xff]
      %v599 = vld [vmem:[#allocation2 + $0xc2] sm:$0xff]
      %v600 = vld [vmem:[#allocation2 + $0xca] sm:$0xff]
      %v601 = vld [vmem:[#allocation2 + $0xda] sm:$0xff]
      %v602 = vld [vmem:[#allocation2 + $0xe2] sm:$0xff]
      %s603 = scalar_lea.vmem %s1, 256
      %v604 = vld [vmem:[%s603] sm:$0xff]
      %v605 = vld [vmem:[%s603 + $0x8] sm:$0xff]
      %v606 = vld [vmem:[%s603 + $0x10] sm:$0xff]
      %v607 = vld [vmem:[%s603 + $0x18] sm:$0xff]
      %v608 = vld [vmem:[%s603 + $0x20] sm:$0xff]
      %v609 = vld [vmem:[%s603 + $0x28] sm:$0xff]
      %v610 = vld [vmem:[%s603 + $0x30] sm:$0xff]
      %v611 = vld [vmem:[%s603 + $0x38] sm:$0xff]
      %v612 = vld [vmem:[%s603 + $0x40] sm:$0xff]
      %v613 = vld [vmem:[%s603 + $0x48] sm:$0xff]
      %v614 = vld [vmem:[%s603 + $0x50] sm:$0xff]
      %v615 = vld [vmem:[%s603 + $0x58] sm:$0xff]
      %v616 = vld [vmem:[%s603 + $0x60] sm:$0xff]
      %v617 = vld [vmem:[%s603 + $0x68] sm:$0xff]
      %v618 = vld [vmem:[%s603 + $0x70] sm:$0xff]
      %v619 = vld [vmem:[%s603 + $0x78] sm:$0xff]
      %620 = vmatpush.msra.mxu0 %v619
      %621 = vmatpush.msra.mxu0 %v618
      %622 = vmatpush.msra.mxu0 %v617
      %623 = vmatpush.msra.mxu0 %v616
      %624 = vmatpush.msra.mxu0 %v615
      %625 = vmatpush.msra.mxu0 %v614
      %626 = vmatpush.msra.mxu0 %v613
      %627 = vmatpush.msra.mxu0 %v612
      %628 = vmatpush.msra.mxu0 %v611
      %629 = vmatpush.msra.mxu0 %v610
      %630 = vmatpush.msra.mxu0 %v609
      %631 = vmatpush.msra.mxu0 %v608
      %632 = vmatpush.msra.mxu0 %v607
      %633 = vmatpush.msra.mxu0 %v606
      %634 = vmatpush.msra.mxu0 %v605
      %635 = vmatpush.msra.mxu0 %v604
      %636 = vmatmul.f32.gmra.mxu0 %v583
      %v637 = vpop.f32.mrf.mxu0
      %v638 = vadd.f32 0.0, %v637
      %639 = vmatmul.f32.gmra.mxu0 %v584
      %v640 = vpop.f32.mrf.mxu0
      %v641 = vadd.f32 0.0, %v640
      %642 = vmatmul.f32.gmra.mxu0 %v585
      %v643 = vpop.f32.mrf.mxu0
      %v644 = vadd.f32 0.0, %v643
      %645 = vmatmul.f32.gmra.mxu0 %v586
      %v646 = vpop.f32.mrf.mxu0
      %v647 = vadd.f32 0.0, %v646
      %648 = vmatmul.f32.gmra.mxu0 %v587
      %v649 = vpop.f32.mrf.mxu0
      %v650 = vadd.f32 0.0, %v649
      %651 = vmatmul.f32.gmra.mxu0 %v588
      %v652 = vpop.f32.mrf.mxu0
      %v653 = vadd.f32 0.0, %v652
      %654 = vmatmul.f32.gmra.mxu0 %v589
      %v655 = vpop.f32.mrf.mxu0
      %v656 = vadd.f32 0.0, %v655
      %657 = vmatmul.f32.gmra.mxu0 %v590
      %v658 = vpop.f32.mrf.mxu0
      %v659 = vadd.f32 0.0, %v658
      %660 = vmatmul.f32.gmra.mxu0 %v591
      %v661 = vpop.f32.mrf.mxu0
      %v662 = vadd.f32 0.0, %v661
      %663 = vmatmul.f32.gmra.mxu0 %v592
      %v664 = vpop.f32.mrf.mxu0
      %v665 = vadd.f32 0.0, %v664
      %666 = vmatmul.f32.gmra.mxu0 %v593
      %v667 = vpop.f32.mrf.mxu0
      %v668 = vadd.f32 0.0, %v667
      %669 = vmatmul.f32.gmra.mxu0 %v594
      %v670 = vpop.f32.mrf.mxu0
      %v671 = vadd.f32 0.0, %v670
      %672 = vmatmul.f32.gmra.mxu0 %v595
      %v673 = vpop.f32.mrf.mxu0
      %v674 = vadd.f32 0.0, %v673
      %675 = vmatmul.f32.gmra.mxu0 %v596
      %v676 = vpop.f32.mrf.mxu0
      %v677 = vadd.f32 0.0, %v676
      %678 = vmatmul.f32.gmra.mxu0 %v597
      %v679 = vpop.f32.mrf.mxu0
      %v680 = vadd.f32 0.0, %v679
      %681 = vmatmul.f32.gmra.mxu0 %v598
      %v682 = vpop.f32.mrf.mxu0
      %v683 = vadd.f32 0.0, %v682
      %684 = vmatmul.f32.gmra.mxu0 %v599
      %v685 = vpop.f32.mrf.mxu0
      %v686 = vadd.f32 0.0, %v685
      %687 = vmatmul.f32.gmra.mxu0 %v600
      %v688 = vpop.f32.mrf.mxu0
      %v689 = vadd.f32 0.0, %v688
      %690 = vmatmul.f32.gmra.mxu0 %v601
      %v691 = vpop.f32.mrf.mxu0
      %v692 = vadd.f32 0.0, %v691
      %693 = vmatmul.f32.gmra.mxu0 %v602
      %v694 = vpop.f32.mrf.mxu0
      %v695 = vadd.f32 0.0, %v694
      %696 = vdwg.mxu0
      %v697 = vadd.f32 %v524, %v638
      %v698 = vadd.f32 %v527, %v641
      %v699 = vadd.f32 %v530, %v644
      %v700 = vadd.f32 %v533, %v647
      %v701 = vadd.f32 %v536, %v650
      %v702 = vadd.f32 %v539, %v653
      %v703 = vadd.f32 %v542, %v656
      %v704 = vadd.f32 %v545, %v659
      %v705 = vadd.f32 %v548, %v662
      %v706 = vadd.f32 %v551, %v665
      %v707 = vadd.f32 %v554, %v668
      %v708 = vadd.f32 %v557, %v671
      %v709 = vadd.f32 %v560, %v674
      %v710 = vadd.f32 %v563, %v677
      %v711 = vadd.f32 %v566, %v680
      %v712 = vadd.f32 %v569, %v683
      %v713 = vadd.f32 %v572, %v686
      %v714 = vadd.f32 %v575, %v689
      %v715 = vadd.f32 %v578, %v692
      %v716 = vadd.f32 %v581, %v695
      %s717 = scalar_lea.vmem [#allocation2], 24
      %v718 = vld [vmem:[%s717] sm:$0xff]
      %v719 = vld [vmem:[%s717 + $0x8] sm:$0xff]
      %v720 = vld [vmem:[%s717 + $0x18] sm:$0xff]
      %v721 = vld [vmem:[%s717 + $0x20] sm:$0xff]
      %v722 = vld [vmem:[%s717 + $0x30] sm:$0xff]
      %v723 = vld [vmem:[%s717 + $0x38] sm:$0xff]
      %v724 = vld [vmem:[%s717 + $0x48] sm:$0xff]
      %v725 = vld [vmem:[%s717 + $0x50] sm:$0xff]
      %v726 = vld [vmem:[%s717 + $0x60] sm:$0xff]
      %v727 = vld [vmem:[%s717 + $0x68] sm:$0xff]
      %v728 = vld [vmem:[%s717 + $0x78] sm:$0xff]
      %v729 = vld [vmem:[%s717 + $0x80] sm:$0xff]
      %v730 = vld [vmem:[%s717 + $0x90] sm:$0xff]
      %v731 = vld [vmem:[%s717 + $0x98] sm:$0xff]
      %v732 = vld [vmem:[%s717 + $0xa8] sm:$0xff]
      %v733 = vld [vmem:[%s717 + $0xb0] sm:$0xff]
      %v734 = vld [vmem:[%s717 + $0xc0] sm:$0xff]
      %v735 = vld [vmem:[%s717 + $0xc8] sm:$0xff]
      %v736 = vld [vmem:[%s717 + $0xd8] sm:$0xff]
      %v737 = vld [vmem:[%s717 + $0xe0] sm:$0xff]
      %s738 = scalar_lea.vmem %s1, 384
      %v739 = vld [vmem:[%s738] sm:$0xff]
      %v740 = vld [vmem:[%s738 + $0x8] sm:$0xff]
      %v741 = vld [vmem:[%s738 + $0x10] sm:$0xff]
      %v742 = vld [vmem:[%s738 + $0x18] sm:$0xff]
      %v743 = vld [vmem:[%s738 + $0x20] sm:$0xff]
      %v744 = vld [vmem:[%s738 + $0x28] sm:$0xff]
      %v745 = vld [vmem:[%s738 + $0x30] sm:$0xff]
      %v746 = vld [vmem:[%s738 + $0x38] sm:$0xff]
      %v747 = vld [vmem:[%s738 + $0x40] sm:$0xff]
      %v748 = vld [vmem:[%s738 + $0x48] sm:$0xff]
      %v749 = vld [vmem:[%s738 + $0x50] sm:$0xff]
      %v750 = vld [vmem:[%s738 + $0x58] sm:$0xff]
      %v751 = vld [vmem:[%s738 + $0x60] sm:$0xff]
      %v752 = vld [vmem:[%s738 + $0x68] sm:$0xff]
      %v753 = vld [vmem:[%s738 + $0x70] sm:$0xff]
      %v754 = vld [vmem:[%s738 + $0x78] sm:$0xff]
      %755 = vmatpush.msra.mxu0 %v754
      %756 = vmatpush.msra.mxu0 %v753
      %757 = vmatpush.msra.mxu0 %v752
      %758 = vmatpush.msra.mxu0 %v751
      %759 = vmatpush.msra.mxu0 %v750
      %760 = vmatpush.msra.mxu0 %v749
      %761 = vmatpush.msra.mxu0 %v748
      %762 = vmatpush.msra.mxu0 %v747
      %763 = vmatpush.msra.mxu0 %v746
      %764 = vmatpush.msra.mxu0 %v745
      %765 = vmatpush.msra.mxu0 %v744
      %766 = vmatpush.msra.mxu0 %v743
      %767 = vmatpush.msra.mxu0 %v742
      %768 = vmatpush.msra.mxu0 %v741
      %769 = vmatpush.msra.mxu0 %v740
      %770 = vmatpush.msra.mxu0 %v739
      %771 = vmatmul.f32.gmra.mxu0 %v718
      %v772 = vpop.f32.mrf.mxu0
      %v773 = vadd.f32 0.0, %v772
      %774 = vmatmul.f32.gmra.mxu0 %v719
      %v775 = vpop.f32.mrf.mxu0
      %v776 = vadd.f32 0.0, %v775
      %777 = vmatmul.f32.gmra.mxu0 %v720
      %v778 = vpop.f32.mrf.mxu0
      %v779 = vadd.f32 0.0, %v778
      %780 = vmatmul.f32.gmra.mxu0 %v721
      %v781 = vpop.f32.mrf.mxu0
      %v782 = vadd.f32 0.0, %v781
      %783 = vmatmul.f32.gmra.mxu0 %v722
      %v784 = vpop.f32.mrf.mxu0
      %v785 = vadd.f32 0.0, %v784
      %786 = vmatmul.f32.gmra.mxu0 %v723
      %v787 = vpop.f32.mrf.mxu0
      %v788 = vadd.f32 0.0, %v787
      %789 = vmatmul.f32.gmra.mxu0 %v724
      %v790 = vpop.f32.mrf.mxu0
      %v791 = vadd.f32 0.0, %v790
      %792 = vmatmul.f32.gmra.mxu0 %v725
      %v793 = vpop.f32.mrf.mxu0
      %v794 = vadd.f32 0.0, %v793
      %795 = vmatmul.f32.gmra.mxu0 %v726
      %v796 = vpop.f32.mrf.mxu0
      %v797 = vadd.f32 0.0, %v796
      %798 = vmatmul.f32.gmra.mxu0 %v727
      %v799 = vpop.f32.mrf.mxu0
      %v800 = vadd.f32 0.0, %v799
      %801 = vmatmul.f32.gmra.mxu0 %v728
      %v802 = vpop.f32.mrf.mxu0
      %v803 = vadd.f32 0.0, %v802
      %804 = vmatmul.f32.gmra.mxu0 %v729
      %v805 = vpop.f32.mrf.mxu0
      %v806 = vadd.f32 0.0, %v805
      %807 = vmatmul.f32.gmra.mxu0 %v730
      %v808 = vpop.f32.mrf.mxu0
      %v809 = vadd.f32 0.0, %v808
      %810 = vmatmul.f32.gmra.mxu0 %v731
      %v811 = vpop.f32.mrf.mxu0
      %v812 = vadd.f32 0.0, %v811
      %813 = vmatmul.f32.gmra.mxu0 %v732
      %v814 = vpop.f32.mrf.mxu0
      %v815 = vadd.f32 0.0, %v814
      %816 = vmatmul.f32.gmra.mxu0 %v733
      %v817 = vpop.f32.mrf.mxu0
      %v818 = vadd.f32 0.0, %v817
      %819 = vmatmul.f32.gmra.mxu0 %v734
      %v820 = vpop.f32.mrf.mxu0
      %v821 = vadd.f32 0.0, %v820
      %822 = vmatmul.f32.gmra.mxu0 %v735
      %v823 = vpop.f32.mrf.mxu0
      %v824 = vadd.f32 0.0, %v823
      %825 = vmatmul.f32.gmra.mxu0 %v736
      %v826 = vpop.f32.mrf.mxu0
      %v827 = vadd.f32 0.0, %v826
      %828 = vmatmul.f32.gmra.mxu0 %v737
      %v829 = vpop.f32.mrf.mxu0
      %v830 = vadd.f32 0.0, %v829
      %831 = vdwg.mxu0
      %v832 = vadd.f32 %v697, %v773
      %v833 = vadd.f32 %v698, %v776
      %v834 = vadd.f32 %v699, %v779
      %v835 = vadd.f32 %v700, %v782
      %v836 = vadd.f32 %v701, %v785
      %v837 = vadd.f32 %v702, %v788
      %v838 = vadd.f32 %v703, %v791
      %v839 = vadd.f32 %v704, %v794
      %v840 = vadd.f32 %v705, %v797
      %v841 = vadd.f32 %v706, %v800
      %v842 = vadd.f32 %v707, %v803
      %v843 = vadd.f32 %v708, %v806
      %v844 = vadd.f32 %v709, %v809
      %v845 = vadd.f32 %v710, %v812
      %v846 = vadd.f32 %v711, %v815
      %v847 = vadd.f32 %v712, %v818
      %v848 = vadd.f32 %v713, %v821
      %v849 = vadd.f32 %v714, %v824
      %v850 = vadd.f32 %v715, %v827
      %v851 = vadd.f32 %v716, %v830
      %v852 = vld [vmem:[%s717 + $0x1] sm:$0xff]
      %v853 = vld [vmem:[%s717 + $0x9] sm:$0xff]
      %v854 = vld [vmem:[%s717 + $0x19] sm:$0xff]
      %v855 = vld [vmem:[%s717 + $0x21] sm:$0xff]
      %v856 = vld [vmem:[%s717 + $0x31] sm:$0xff]
      %v857 = vld [vmem:[%s717 + $0x39] sm:$0xff]
      %v858 = vld [vmem:[%s717 + $0x49] sm:$0xff]
      %v859 = vld [vmem:[%s717 + $0x51] sm:$0xff]
      %v860 = vld [vmem:[%s717 + $0x61] sm:$0xff]
      %v861 = vld [vmem:[%s717 + $0x69] sm:$0xff]
      %v862 = vld [vmem:[%s717 + $0x79] sm:$0xff]
      %v863 = vld [vmem:[%s717 + $0x81] sm:$0xff]
      %v864 = vld [vmem:[%s717 + $0x91] sm:$0xff]
      %v865 = vld [vmem:[%s717 + $0x99] sm:$0xff]
      %v866 = vld [vmem:[%s717 + $0xa9] sm:$0xff]
      %v867 = vld [vmem:[%s717 + $0xb1] sm:$0xff]
      %v868 = vld [vmem:[%s717 + $0xc1] sm:$0xff]
      %v869 = vld [vmem:[%s717 + $0xc9] sm:$0xff]
      %v870 = vld [vmem:[%s717 + $0xd9] sm:$0xff]
      %v871 = vld [vmem:[%s717 + $0xe1] sm:$0xff]
      %s872 = scalar_lea.vmem %s1, 512
      %v873 = vld [vmem:[%s872] sm:$0xff]
      %v874 = vld [vmem:[%s872 + $0x8] sm:$0xff]
      %v875 = vld [vmem:[%s872 + $0x10] sm:$0xff]
      %v876 = vld [vmem:[%s872 + $0x18] sm:$0xff]
      %v877 = vld [vmem:[%s872 + $0x20] sm:$0xff]
      %v878 = vld [vmem:[%s872 + $0x28] sm:$0xff]
      %v879 = vld [vmem:[%s872 + $0x30] sm:$0xff]
      %v880 = vld [vmem:[%s872 + $0x38] sm:$0xff]
      %v881 = vld [vmem:[%s872 + $0x40] sm:$0xff]
      %v882 = vld [vmem:[%s872 + $0x48] sm:$0xff]
      %v883 = vld [vmem:[%s872 + $0x50] sm:$0xff]
      %v884 = vld [vmem:[%s872 + $0x58] sm:$0xff]
      %v885 = vld [vmem:[%s872 + $0x60] sm:$0xff]
      %v886 = vld [vmem:[%s872 + $0x68] sm:$0xff]
      %v887 = vld [vmem:[%s872 + $0x70] sm:$0xff]
      %v888 = vld [vmem:[%s872 + $0x78] sm:$0xff]
      %889 = vmatpush.msra.mxu0 %v888
      %890 = vmatpush.msra.mxu0 %v887
      %891 = vmatpush.msra.mxu0 %v886
      %892 = vmatpush.msra.mxu0 %v885
      %893 = vmatpush.msra.mxu0 %v884
      %894 = vmatpush.msra.mxu0 %v883
      %895 = vmatpush.msra.mxu0 %v882
      %896 = vmatpush.msra.mxu0 %v881
      %897 = vmatpush.msra.mxu0 %v880
      %898 = vmatpush.msra.mxu0 %v879
      %899 = vmatpush.msra.mxu0 %v878
      %900 = vmatpush.msra.mxu0 %v877
      %901 = vmatpush.msra.mxu0 %v876
      %902 = vmatpush.msra.mxu0 %v875
      %903 = vmatpush.msra.mxu0 %v874
      %904 = vmatpush.msra.mxu0 %v873
      %905 = vmatmul.f32.gmra.mxu0 %v852
      %v906 = vpop.f32.mrf.mxu0
      %v907 = vadd.f32 0.0, %v906
      %908 = vmatmul.f32.gmra.mxu0 %v853
      %v909 = vpop.f32.mrf.mxu0
      %v910 = vadd.f32 0.0, %v909
      %911 = vmatmul.f32.gmra.mxu0 %v854
      %v912 = vpop.f32.mrf.mxu0
      %v913 = vadd.f32 0.0, %v912
      %914 = vmatmul.f32.gmra.mxu0 %v855
      %v915 = vpop.f32.mrf.mxu0
      %v916 = vadd.f32 0.0, %v915
      %917 = vmatmul.f32.gmra.mxu0 %v856
      %v918 = vpop.f32.mrf.mxu0
      %v919 = vadd.f32 0.0, %v918
      %920 = vmatmul.f32.gmra.mxu0 %v857
      %v921 = vpop.f32.mrf.mxu0
      %v922 = vadd.f32 0.0, %v921
      %923 = vmatmul.f32.gmra.mxu0 %v858
      %v924 = vpop.f32.mrf.mxu0
      %v925 = vadd.f32 0.0, %v924
      %926 = vmatmul.f32.gmra.mxu0 %v859
      %v927 = vpop.f32.mrf.mxu0
      %v928 = vadd.f32 0.0, %v927
      %929 = vmatmul.f32.gmra.mxu0 %v860
      %v930 = vpop.f32.mrf.mxu0
      %v931 = vadd.f32 0.0, %v930
      %932 = vmatmul.f32.gmra.mxu0 %v861
      %v933 = vpop.f32.mrf.mxu0
      %v934 = vadd.f32 0.0, %v933
      %935 = vmatmul.f32.gmra.mxu0 %v862
      %v936 = vpop.f32.mrf.mxu0
      %v937 = vadd.f32 0.0, %v936
      %938 = vmatmul.f32.gmra.mxu0 %v863
      %v939 = vpop.f32.mrf.mxu0
      %v940 = vadd.f32 0.0, %v939
      %941 = vmatmul.f32.gmra.mxu0 %v864
      %v942 = vpop.f32.mrf.mxu0
      %v943 = vadd.f32 0.0, %v942
      %944 = vmatmul.f32.gmra.mxu0 %v865
      %v945 = vpop.f32.mrf.mxu0
      %v946 = vadd.f32 0.0, %v945
      %947 = vmatmul.f32.gmra.mxu0 %v866
      %v948 = vpop.f32.mrf.mxu0
      %v949 = vadd.f32 0.0, %v948
      %950 = vmatmul.f32.gmra.mxu0 %v867
      %v951 = vpop.f32.mrf.mxu0
      %v952 = vadd.f32 0.0, %v951
      %953 = vmatmul.f32.gmra.mxu0 %v868
      %v954 = vpop.f32.mrf.mxu0
      %v955 = vadd.f32 0.0, %v954
      %956 = vmatmul.f32.gmra.mxu0 %v869
      %v957 = vpop.f32.mrf.mxu0
      %v958 = vadd.f32 0.0, %v957
      %959 = vmatmul.f32.gmra.mxu0 %v870
      %v960 = vpop.f32.mrf.mxu0
      %v961 = vadd.f32 0.0, %v960
      %962 = vmatmul.f32.gmra.mxu0 %v871
      %v963 = vpop.f32.mrf.mxu0
      %v964 = vadd.f32 0.0, %v963
      %965 = vdwg.mxu0
      %v966 = vadd.f32 %v832, %v907
      %v967 = vadd.f32 %v833, %v910
      %v968 = vadd.f32 %v834, %v913
      %v969 = vadd.f32 %v835, %v916
      %v970 = vadd.f32 %v836, %v919
      %v971 = vadd.f32 %v837, %v922
      %v972 = vadd.f32 %v838, %v925
      %v973 = vadd.f32 %v839, %v928
      %v974 = vadd.f32 %v840, %v931
      %v975 = vadd.f32 %v841, %v934
      %v976 = vadd.f32 %v842, %v937
      %v977 = vadd.f32 %v843, %v940
      %v978 = vadd.f32 %v844, %v943
      %v979 = vadd.f32 %v845, %v946
      %v980 = vadd.f32 %v846, %v949
      %v981 = vadd.f32 %v847, %v952
      %v982 = vadd.f32 %v848, %v955
      %v983 = vadd.f32 %v849, %v958
      %v984 = vadd.f32 %v850, %v961
      %v985 = vadd.f32 %v851, %v964
      %v986 = vld [vmem:[%s717 + $0x2] sm:$0xff]
      %v987 = vld [vmem:[%s717 + $0xa] sm:$0xff]
      %v988 = vld [vmem:[%s717 + $0x1a] sm:$0xff]
      %v989 = vld [vmem:[%s717 + $0x22] sm:$0xff]
      %v990 = vld [vmem:[%s717 + $0x32] sm:$0xff]
      %v991 = vld [vmem:[%s717 + $0x3a] sm:$0xff]
      %v992 = vld [vmem:[%s717 + $0x4a] sm:$0xff]
      %v993 = vld [vmem:[%s717 + $0x52] sm:$0xff]
      %v994 = vld [vmem:[%s717 + $0x62] sm:$0xff]
      %v995 = vld [vmem:[%s717 + $0x6a] sm:$0xff]
      %v996 = vld [vmem:[%s717 + $0x7a] sm:$0xff]
      %v997 = vld [vmem:[%s717 + $0x82] sm:$0xff]
      %v998 = vld [vmem:[%s717 + $0x92] sm:$0xff]
      %v999 = vld [vmem:[%s717 + $0x9a] sm:$0xff]
      %v1000 = vld [vmem:[%s717 + $0xaa] sm:$0xff]
      %v1001 = vld [vmem:[%s717 + $0xb2] sm:$0xff]
      %v1002 = vld [vmem:[%s717 + $0xc2] sm:$0xff]
      %v1003 = vld [vmem:[%s717 + $0xca] sm:$0xff]
      %v1004 = vld [vmem:[%s717 + $0xda] sm:$0xff]
      %v1005 = vld [vmem:[%s717 + $0xe2] sm:$0xff]
      %s1006 = scalar_lea.vmem %s1, 640
      %v1007 = vld [vmem:[%s1006] sm:$0xff]
      %v1008 = vld [vmem:[%s1006 + $0x8] sm:$0xff]
      %v1009 = vld [vmem:[%s1006 + $0x10] sm:$0xff]
      %v1010 = vld [vmem:[%s1006 + $0x18] sm:$0xff]
      %v1011 = vld [vmem:[%s1006 + $0x20] sm:$0xff]
      %v1012 = vld [vmem:[%s1006 + $0x28] sm:$0xff]
      %v1013 = vld [vmem:[%s1006 + $0x30] sm:$0xff]
      %v1014 = vld [vmem:[%s1006 + $0x38] sm:$0xff]
      %v1015 = vld [vmem:[%s1006 + $0x40] sm:$0xff]
      %v1016 = vld [vmem:[%s1006 + $0x48] sm:$0xff]
      %v1017 = vld [vmem:[%s1006 + $0x50] sm:$0xff]
      %v1018 = vld [vmem:[%s1006 + $0x58] sm:$0xff]
      %v1019 = vld [vmem:[%s1006 + $0x60] sm:$0xff]
      %v1020 = vld [vmem:[%s1006 + $0x68] sm:$0xff]
      %v1021 = vld [vmem:[%s1006 + $0x70] sm:$0xff]
      %v1022 = vld [vmem:[%s1006 + $0x78] sm:$0xff]
      %1023 = vmatpush.msra.mxu0 %v1022
      %1024 = vmatpush.msra.mxu0 %v1021
      %1025 = vmatpush.msra.mxu0 %v1020
      %1026 = vmatpush.msra.mxu0 %v1019
      %1027 = vmatpush.msra.mxu0 %v1018
      %1028 = vmatpush.msra.mxu0 %v1017
      %1029 = vmatpush.msra.mxu0 %v1016
      %1030 = vmatpush.msra.mxu0 %v1015
      %1031 = vmatpush.msra.mxu0 %v1014
      %1032 = vmatpush.msra.mxu0 %v1013
      %1033 = vmatpush.msra.mxu0 %v1012
      %1034 = vmatpush.msra.mxu0 %v1011
      %1035 = vmatpush.msra.mxu0 %v1010
      %1036 = vmatpush.msra.mxu0 %v1009
      %1037 = vmatpush.msra.mxu0 %v1008
      %1038 = vmatpush.msra.mxu0 %v1007
      %1039 = vmatmul.f32.gmra.mxu0 %v986
      %v1040 = vpop.f32.mrf.mxu0
      %v1041 = vadd.f32 0.0, %v1040
      %1042 = vmatmul.f32.gmra.mxu0 %v987
      %v1043 = vpop.f32.mrf.mxu0
      %v1044 = vadd.f32 0.0, %v1043
      %1045 = vmatmul.f32.gmra.mxu0 %v988
      %v1046 = vpop.f32.mrf.mxu0
      %v1047 = vadd.f32 0.0, %v1046
      %1048 = vmatmul.f32.gmra.mxu0 %v989
      %v1049 = vpop.f32.mrf.mxu0
      %v1050 = vadd.f32 0.0, %v1049
      %1051 = vmatmul.f32.gmra.mxu0 %v990
      %v1052 = vpop.f32.mrf.mxu0
      %v1053 = vadd.f32 0.0, %v1052
      %1054 = vmatmul.f32.gmra.mxu0 %v991
      %v1055 = vpop.f32.mrf.mxu0
      %v1056 = vadd.f32 0.0, %v1055
      %1057 = vmatmul.f32.gmra.mxu0 %v992
      %v1058 = vpop.f32.mrf.mxu0
      %v1059 = vadd.f32 0.0, %v1058
      %1060 = vmatmul.f32.gmra.mxu0 %v993
      %v1061 = vpop.f32.mrf.mxu0
      %v1062 = vadd.f32 0.0, %v1061
      %1063 = vmatmul.f32.gmra.mxu0 %v994
      %v1064 = vpop.f32.mrf.mxu0
      %v1065 = vadd.f32 0.0, %v1064
      %1066 = vmatmul.f32.gmra.mxu0 %v995
      %v1067 = vpop.f32.mrf.mxu0
      %v1068 = vadd.f32 0.0, %v1067
      %1069 = vmatmul.f32.gmra.mxu0 %v996
      %v1070 = vpop.f32.mrf.mxu0
      %v1071 = vadd.f32 0.0, %v1070
      %1072 = vmatmul.f32.gmra.mxu0 %v997
      %v1073 = vpop.f32.mrf.mxu0
      %v1074 = vadd.f32 0.0, %v1073
      %1075 = vmatmul.f32.gmra.mxu0 %v998
      %v1076 = vpop.f32.mrf.mxu0
      %v1077 = vadd.f32 0.0, %v1076
      %1078 = vmatmul.f32.gmra.mxu0 %v999
      %v1079 = vpop.f32.mrf.mxu0
      %v1080 = vadd.f32 0.0, %v1079
      %1081 = vmatmul.f32.gmra.mxu0 %v1000
      %v1082 = vpop.f32.mrf.mxu0
      %v1083 = vadd.f32 0.0, %v1082
      %1084 = vmatmul.f32.gmra.mxu0 %v1001
      %v1085 = vpop.f32.mrf.mxu0
      %v1086 = vadd.f32 0.0, %v1085
      %1087 = vmatmul.f32.gmra.mxu0 %v1002
      %v1088 = vpop.f32.mrf.mxu0
      %v1089 = vadd.f32 0.0, %v1088
      %1090 = vmatmul.f32.gmra.mxu0 %v1003
      %v1091 = vpop.f32.mrf.mxu0
      %v1092 = vadd.f32 0.0, %v1091
      %1093 = vmatmul.f32.gmra.mxu0 %v1004
      %v1094 = vpop.f32.mrf.mxu0
      %v1095 = vadd.f32 0.0, %v1094
      %1096 = vmatmul.f32.gmra.mxu0 %v1005
      %v1097 = vpop.f32.mrf.mxu0
      %v1098 = vadd.f32 0.0, %v1097
      %1099 = vdwg.mxu0
      %v1100 = vadd.f32 %v966, %v1041
      %v1101 = vadd.f32 %v967, %v1044
      %v1102 = vadd.f32 %v968, %v1047
      %v1103 = vadd.f32 %v969, %v1050
      %v1104 = vadd.f32 %v970, %v1053
      %v1105 = vadd.f32 %v971, %v1056
      %v1106 = vadd.f32 %v972, %v1059
      %v1107 = vadd.f32 %v973, %v1062
      %v1108 = vadd.f32 %v974, %v1065
      %v1109 = vadd.f32 %v975, %v1068
      %v1110 = vadd.f32 %v976, %v1071
      %v1111 = vadd.f32 %v977, %v1074
      %v1112 = vadd.f32 %v978, %v1077
      %v1113 = vadd.f32 %v979, %v1080
      %v1114 = vadd.f32 %v980, %v1083
      %v1115 = vadd.f32 %v981, %v1086
      %v1116 = vadd.f32 %v982, %v1089
      %v1117 = vadd.f32 %v983, %v1092
      %v1118 = vadd.f32 %v984, %v1095
      %v1119 = vadd.f32 %v985, %v1098
      %s1120 = scalar_lea.vmem [#allocation2], 48
      %v1121 = vld [vmem:[%s1120] sm:$0xff]
      %v1122 = vld [vmem:[%s1120 + $0x8] sm:$0xff]
      %v1123 = vld [vmem:[%s1120 + $0x18] sm:$0xff]
      %v1124 = vld [vmem:[%s1120 + $0x20] sm:$0xff]
      %v1125 = vld [vmem:[%s1120 + $0x30] sm:$0xff]
      %v1126 = vld [vmem:[%s1120 + $0x38] sm:$0xff]
      %v1127 = vld [vmem:[%s1120 + $0x48] sm:$0xff]
      %v1128 = vld [vmem:[%s1120 + $0x50] sm:$0xff]
      %v1129 = vld [vmem:[%s1120 + $0x60] sm:$0xff]
      %v1130 = vld [vmem:[%s1120 + $0x68] sm:$0xff]
      %v1131 = vld [vmem:[%s1120 + $0x78] sm:$0xff]
      %v1132 = vld [vmem:[%s1120 + $0x80] sm:$0xff]
      %v1133 = vld [vmem:[%s1120 + $0x90] sm:$0xff]
      %v1134 = vld [vmem:[%s1120 + $0x98] sm:$0xff]
      %v1135 = vld [vmem:[%s1120 + $0xa8] sm:$0xff]
      %v1136 = vld [vmem:[%s1120 + $0xb0] sm:$0xff]
      %v1137 = vld [vmem:[%s1120 + $0xc0] sm:$0xff]
      %v1138 = vld [vmem:[%s1120 + $0xc8] sm:$0xff]
      %v1139 = vld [vmem:[%s1120 + $0xd8] sm:$0xff]
      %v1140 = vld [vmem:[%s1120 + $0xe0] sm:$0xff]
      %s1141 = scalar_lea.vmem %s1, 768
      %v1142 = vld [vmem:[%s1141] sm:$0xff]
      %v1143 = vld [vmem:[%s1141 + $0x8] sm:$0xff]
      %v1144 = vld [vmem:[%s1141 + $0x10] sm:$0xff]
      %v1145 = vld [vmem:[%s1141 + $0x18] sm:$0xff]
      %v1146 = vld [vmem:[%s1141 + $0x20] sm:$0xff]
      %v1147 = vld [vmem:[%s1141 + $0x28] sm:$0xff]
      %v1148 = vld [vmem:[%s1141 + $0x30] sm:$0xff]
      %v1149 = vld [vmem:[%s1141 + $0x38] sm:$0xff]
      %v1150 = vld [vmem:[%s1141 + $0x40] sm:$0xff]
      %v1151 = vld [vmem:[%s1141 + $0x48] sm:$0xff]
      %v1152 = vld [vmem:[%s1141 + $0x50] sm:$0xff]
      %v1153 = vld [vmem:[%s1141 + $0x58] sm:$0xff]
      %v1154 = vld [vmem:[%s1141 + $0x60] sm:$0xff]
      %v1155 = vld [vmem:[%s1141 + $0x68] sm:$0xff]
      %v1156 = vld [vmem:[%s1141 + $0x70] sm:$0xff]
      %v1157 = vld [vmem:[%s1141 + $0x78] sm:$0xff]
      %1158 = vmatpush.msra.mxu0 %v1157
      %1159 = vmatpush.msra.mxu0 %v1156
      %1160 = vmatpush.msra.mxu0 %v1155
      %1161 = vmatpush.msra.mxu0 %v1154
      %1162 = vmatpush.msra.mxu0 %v1153
      %1163 = vmatpush.msra.mxu0 %v1152
      %1164 = vmatpush.msra.mxu0 %v1151
      %1165 = vmatpush.msra.mxu0 %v1150
      %1166 = vmatpush.msra.mxu0 %v1149
      %1167 = vmatpush.msra.mxu0 %v1148
      %1168 = vmatpush.msra.mxu0 %v1147
      %1169 = vmatpush.msra.mxu0 %v1146
      %1170 = vmatpush.msra.mxu0 %v1145
      %1171 = vmatpush.msra.mxu0 %v1144
      %1172 = vmatpush.msra.mxu0 %v1143
      %1173 = vmatpush.msra.mxu0 %v1142
      %1174 = vmatmul.f32.gmra.mxu0 %v1121
      %v1175 = vpop.f32.mrf.mxu0
      %v1176 = vadd.f32 0.0, %v1175
      %1177 = vmatmul.f32.gmra.mxu0 %v1122
      %v1178 = vpop.f32.mrf.mxu0
      %v1179 = vadd.f32 0.0, %v1178
      %1180 = vmatmul.f32.gmra.mxu0 %v1123
      %v1181 = vpop.f32.mrf.mxu0
      %v1182 = vadd.f32 0.0, %v1181
      %1183 = vmatmul.f32.gmra.mxu0 %v1124
      %v1184 = vpop.f32.mrf.mxu0
      %v1185 = vadd.f32 0.0, %v1184
      %1186 = vmatmul.f32.gmra.mxu0 %v1125
      %v1187 = vpop.f32.mrf.mxu0
      %v1188 = vadd.f32 0.0, %v1187
      %1189 = vmatmul.f32.gmra.mxu0 %v1126
      %v1190 = vpop.f32.mrf.mxu0
      %v1191 = vadd.f32 0.0, %v1190
      %1192 = vmatmul.f32.gmra.mxu0 %v1127
      %v1193 = vpop.f32.mrf.mxu0
      %v1194 = vadd.f32 0.0, %v1193
      %1195 = vmatmul.f32.gmra.mxu0 %v1128
      %v1196 = vpop.f32.mrf.mxu0
      %v1197 = vadd.f32 0.0, %v1196
      %1198 = vmatmul.f32.gmra.mxu0 %v1129
      %v1199 = vpop.f32.mrf.mxu0
      %v1200 = vadd.f32 0.0, %v1199
      %1201 = vmatmul.f32.gmra.mxu0 %v1130
      %v1202 = vpop.f32.mrf.mxu0
      %v1203 = vadd.f32 0.0, %v1202
      %1204 = vmatmul.f32.gmra.mxu0 %v1131
      %v1205 = vpop.f32.mrf.mxu0
      %v1206 = vadd.f32 0.0, %v1205
      %1207 = vmatmul.f32.gmra.mxu0 %v1132
      %v1208 = vpop.f32.mrf.mxu0
      %v1209 = vadd.f32 0.0, %v1208
      %1210 = vmatmul.f32.gmra.mxu0 %v1133
      %v1211 = vpop.f32.mrf.mxu0
      %v1212 = vadd.f32 0.0, %v1211
      %1213 = vmatmul.f32.gmra.mxu0 %v1134
      %v1214 = vpop.f32.mrf.mxu0
      %v1215 = vadd.f32 0.0, %v1214
      %1216 = vmatmul.f32.gmra.mxu0 %v1135
      %v1217 = vpop.f32.mrf.mxu0
      %v1218 = vadd.f32 0.0, %v1217
      %1219 = vmatmul.f32.gmra.mxu0 %v1136
      %v1220 = vpop.f32.mrf.mxu0
      %v1221 = vadd.f32 0.0, %v1220
      %1222 = vmatmul.f32.gmra.mxu0 %v1137
      %v1223 = vpop.f32.mrf.mxu0
      %v1224 = vadd.f32 0.0, %v1223
      %1225 = vmatmul.f32.gmra.mxu0 %v1138
      %v1226 = vpop.f32.mrf.mxu0
      %v1227 = vadd.f32 0.0, %v1226
      %1228 = vmatmul.f32.gmra.mxu0 %v1139
      %v1229 = vpop.f32.mrf.mxu0
      %v1230 = vadd.f32 0.0, %v1229
      %1231 = vmatmul.f32.gmra.mxu0 %v1140
      %v1232 = vpop.f32.mrf.mxu0
      %v1233 = vadd.f32 0.0, %v1232
      %1234 = vdwg.mxu0
      %v1235 = vadd.f32 %v1100, %v1176
      %v1236 = vadd.f32 %v1101, %v1179
      %v1237 = vadd.f32 %v1102, %v1182
      %v1238 = vadd.f32 %v1103, %v1185
      %v1239 = vadd.f32 %v1104, %v1188
      %v1240 = vadd.f32 %v1105, %v1191
      %v1241 = vadd.f32 %v1106, %v1194
      %v1242 = vadd.f32 %v1107, %v1197
      %v1243 = vadd.f32 %v1108, %v1200
      %v1244 = vadd.f32 %v1109, %v1203
      %v1245 = vadd.f32 %v1110, %v1206
      %v1246 = vadd.f32 %v1111, %v1209
      %v1247 = vadd.f32 %v1112, %v1212
      %v1248 = vadd.f32 %v1113, %v1215
      %v1249 = vadd.f32 %v1114, %v1218
      %v1250 = vadd.f32 %v1115, %v1221
      %v1251 = vadd.f32 %v1116, %v1224
      %v1252 = vadd.f32 %v1117, %v1227
      %v1253 = vadd.f32 %v1118, %v1230
      %v1254 = vadd.f32 %v1119, %v1233
      %v1255 = vld [vmem:[%s1120 + $0x1] sm:$0xff]
      %v1256 = vld [vmem:[%s1120 + $0x9] sm:$0xff]
      %v1257 = vld [vmem:[%s1120 + $0x19] sm:$0xff]
      %v1258 = vld [vmem:[%s1120 + $0x21] sm:$0xff]
      %v1259 = vld [vmem:[%s1120 + $0x31] sm:$0xff]
      %v1260 = vld [vmem:[%s1120 + $0x39] sm:$0xff]
      %v1261 = vld [vmem:[%s1120 + $0x49] sm:$0xff]
      %v1262 = vld [vmem:[%s1120 + $0x51] sm:$0xff]
      %v1263 = vld [vmem:[%s1120 + $0x61] sm:$0xff]
      %v1264 = vld [vmem:[%s1120 + $0x69] sm:$0xff]
      %v1265 = vld [vmem:[%s1120 + $0x79] sm:$0xff]
      %v1266 = vld [vmem:[%s1120 + $0x81] sm:$0xff]
      %v1267 = vld [vmem:[%s1120 + $0x91] sm:$0xff]
      %v1268 = vld [vmem:[%s1120 + $0x99] sm:$0xff]
      %v1269 = vld [vmem:[%s1120 + $0xa9] sm:$0xff]
      %v1270 = vld [vmem:[%s1120 + $0xb1] sm:$0xff]
      %v1271 = vld [vmem:[%s1120 + $0xc1] sm:$0xff]
      %v1272 = vld [vmem:[%s1120 + $0xc9] sm:$0xff]
      %v1273 = vld [vmem:[%s1120 + $0xd9] sm:$0xff]
      %v1274 = vld [vmem:[%s1120 + $0xe1] sm:$0xff]
      %s1275 = scalar_lea.vmem %s1, 896
      %v1276 = vld [vmem:[%s1275] sm:$0xff]
      %v1277 = vld [vmem:[%s1275 + $0x8] sm:$0xff]
      %v1278 = vld [vmem:[%s1275 + $0x10] sm:$0xff]
      %v1279 = vld [vmem:[%s1275 + $0x18] sm:$0xff]
      %v1280 = vld [vmem:[%s1275 + $0x20] sm:$0xff]
      %v1281 = vld [vmem:[%s1275 + $0x28] sm:$0xff]
      %v1282 = vld [vmem:[%s1275 + $0x30] sm:$0xff]
      %v1283 = vld [vmem:[%s1275 + $0x38] sm:$0xff]
      %v1284 = vld [vmem:[%s1275 + $0x40] sm:$0xff]
      %v1285 = vld [vmem:[%s1275 + $0x48] sm:$0xff]
      %v1286 = vld [vmem:[%s1275 + $0x50] sm:$0xff]
      %v1287 = vld [vmem:[%s1275 + $0x58] sm:$0xff]
      %v1288 = vld [vmem:[%s1275 + $0x60] sm:$0xff]
      %v1289 = vld [vmem:[%s1275 + $0x68] sm:$0xff]
      %v1290 = vld [vmem:[%s1275 + $0x70] sm:$0xff]
      %v1291 = vld [vmem:[%s1275 + $0x78] sm:$0xff]
      %1292 = vmatpush.msra.mxu0 %v1291
      %1293 = vmatpush.msra.mxu0 %v1290
      %1294 = vmatpush.msra.mxu0 %v1289
      %1295 = vmatpush.msra.mxu0 %v1288
      %1296 = vmatpush.msra.mxu0 %v1287
      %1297 = vmatpush.msra.mxu0 %v1286
      %1298 = vmatpush.msra.mxu0 %v1285
      %1299 = vmatpush.msra.mxu0 %v1284
      %1300 = vmatpush.msra.mxu0 %v1283
      %1301 = vmatpush.msra.mxu0 %v1282
      %1302 = vmatpush.msra.mxu0 %v1281
      %1303 = vmatpush.msra.mxu0 %v1280
      %1304 = vmatpush.msra.mxu0 %v1279
      %1305 = vmatpush.msra.mxu0 %v1278
      %1306 = vmatpush.msra.mxu0 %v1277
      %1307 = vmatpush.msra.mxu0 %v1276
      %1308 = vmatmul.f32.gmra.mxu0 %v1255
      %v1309 = vpop.f32.mrf.mxu0
      %v1310 = vadd.f32 0.0, %v1309
      %1311 = vmatmul.f32.gmra.mxu0 %v1256
      %v1312 = vpop.f32.mrf.mxu0
      %v1313 = vadd.f32 0.0, %v1312
      %1314 = vmatmul.f32.gmra.mxu0 %v1257
      %v1315 = vpop.f32.mrf.mxu0
      %v1316 = vadd.f32 0.0, %v1315
      %1317 = vmatmul.f32.gmra.mxu0 %v1258
      %v1318 = vpop.f32.mrf.mxu0
      %v1319 = vadd.f32 0.0, %v1318
      %1320 = vmatmul.f32.gmra.mxu0 %v1259
      %v1321 = vpop.f32.mrf.mxu0
      %v1322 = vadd.f32 0.0, %v1321
      %1323 = vmatmul.f32.gmra.mxu0 %v1260
      %v1324 = vpop.f32.mrf.mxu0
      %v1325 = vadd.f32 0.0, %v1324
      %1326 = vmatmul.f32.gmra.mxu0 %v1261
      %v1327 = vpop.f32.mrf.mxu0
      %v1328 = vadd.f32 0.0, %v1327
      %1329 = vmatmul.f32.gmra.mxu0 %v1262
      %v1330 = vpop.f32.mrf.mxu0
      %v1331 = vadd.f32 0.0, %v1330
      %1332 = vmatmul.f32.gmra.mxu0 %v1263
      %v1333 = vpop.f32.mrf.mxu0
      %v1334 = vadd.f32 0.0, %v1333
      %1335 = vmatmul.f32.gmra.mxu0 %v1264
      %v1336 = vpop.f32.mrf.mxu0
      %v1337 = vadd.f32 0.0, %v1336
      %1338 = vmatmul.f32.gmra.mxu0 %v1265
      %v1339 = vpop.f32.mrf.mxu0
      %v1340 = vadd.f32 0.0, %v1339
      %1341 = vmatmul.f32.gmra.mxu0 %v1266
      %v1342 = vpop.f32.mrf.mxu0
      %v1343 = vadd.f32 0.0, %v1342
      %1344 = vmatmul.f32.gmra.mxu0 %v1267
      %v1345 = vpop.f32.mrf.mxu0
      %v1346 = vadd.f32 0.0, %v1345
      %1347 = vmatmul.f32.gmra.mxu0 %v1268
      %v1348 = vpop.f32.mrf.mxu0
      %v1349 = vadd.f32 0.0, %v1348
      %1350 = vmatmul.f32.gmra.mxu0 %v1269
      %v1351 = vpop.f32.mrf.mxu0
      %v1352 = vadd.f32 0.0, %v1351
      %1353 = vmatmul.f32.gmra.mxu0 %v1270
      %v1354 = vpop.f32.mrf.mxu0
      %v1355 = vadd.f32 0.0, %v1354
      %1356 = vmatmul.f32.gmra.mxu0 %v1271
      %v1357 = vpop.f32.mrf.mxu0
      %v1358 = vadd.f32 0.0, %v1357
      %1359 = vmatmul.f32.gmra.mxu0 %v1272
      %v1360 = vpop.f32.mrf.mxu0
      %v1361 = vadd.f32 0.0, %v1360
      %1362 = vmatmul.f32.gmra.mxu0 %v1273
      %v1363 = vpop.f32.mrf.mxu0
      %v1364 = vadd.f32 0.0, %v1363
      %1365 = vmatmul.f32.gmra.mxu0 %v1274
      %v1366 = vpop.f32.mrf.mxu0
      %v1367 = vadd.f32 0.0, %v1366
      %1368 = vdwg.mxu0
      %v1369 = vadd.f32 %v1235, %v1310
      %v1370 = vadd.f32 %v1236, %v1313
      %v1371 = vadd.f32 %v1237, %v1316
      %v1372 = vadd.f32 %v1238, %v1319
      %v1373 = vadd.f32 %v1239, %v1322
      %v1374 = vadd.f32 %v1240, %v1325
      %v1375 = vadd.f32 %v1241, %v1328
      %v1376 = vadd.f32 %v1242, %v1331
      %v1377 = vadd.f32 %v1243, %v1334
      %v1378 = vadd.f32 %v1244, %v1337
      %v1379 = vadd.f32 %v1245, %v1340
      %v1380 = vadd.f32 %v1246, %v1343
      %v1381 = vadd.f32 %v1247, %v1346
      %v1382 = vadd.f32 %v1248, %v1349
      %v1383 = vadd.f32 %v1249, %v1352
      %v1384 = vadd.f32 %v1250, %v1355
      %v1385 = vadd.f32 %v1251, %v1358
      %v1386 = vadd.f32 %v1252, %v1361
      %v1387 = vadd.f32 %v1253, %v1364
      %v1388 = vadd.f32 %v1254, %v1367
      %v1389 = vld [vmem:[%s1120 + $0x2] sm:$0xff]
      %v1390 = vld [vmem:[%s1120 + $0xa] sm:$0xff]
      %v1391 = vld [vmem:[%s1120 + $0x1a] sm:$0xff]
      %v1392 = vld [vmem:[%s1120 + $0x22] sm:$0xff]
      %v1393 = vld [vmem:[%s1120 + $0x32] sm:$0xff]
      %v1394 = vld [vmem:[%s1120 + $0x3a] sm:$0xff]
      %v1395 = vld [vmem:[%s1120 + $0x4a] sm:$0xff]
      %v1396 = vld [vmem:[%s1120 + $0x52] sm:$0xff]
      %v1397 = vld [vmem:[%s1120 + $0x62] sm:$0xff]
      %v1398 = vld [vmem:[%s1120 + $0x6a] sm:$0xff]
      %v1399 = vld [vmem:[%s1120 + $0x7a] sm:$0xff]
      %v1400 = vld [vmem:[%s1120 + $0x82] sm:$0xff]
      %v1401 = vld [vmem:[%s1120 + $0x92] sm:$0xff]
      %v1402 = vld [vmem:[%s1120 + $0x9a] sm:$0xff]
      %v1403 = vld [vmem:[%s1120 + $0xaa] sm:$0xff]
      %v1404 = vld [vmem:[%s1120 + $0xb2] sm:$0xff]
      %v1405 = vld [vmem:[%s1120 + $0xc2] sm:$0xff]
      %v1406 = vld [vmem:[%s1120 + $0xca] sm:$0xff]
      %v1407 = vld [vmem:[%s1120 + $0xda] sm:$0xff]
      %v1408 = vld [vmem:[%s1120 + $0xe2] sm:$0xff]
      %s1409 = scalar_lea.vmem %s1, 1024
      %v1410 = vld [vmem:[%s1409] sm:$0xff]
      %v1411 = vld [vmem:[%s1409 + $0x8] sm:$0xff]
      %v1412 = vld [vmem:[%s1409 + $0x10] sm:$0xff]
      %v1413 = vld [vmem:[%s1409 + $0x18] sm:$0xff]
      %v1414 = vld [vmem:[%s1409 + $0x20] sm:$0xff]
      %v1415 = vld [vmem:[%s1409 + $0x28] sm:$0xff]
      %v1416 = vld [vmem:[%s1409 + $0x30] sm:$0xff]
      %v1417 = vld [vmem:[%s1409 + $0x38] sm:$0xff]
      %v1418 = vld [vmem:[%s1409 + $0x40] sm:$0xff]
      %v1419 = vld [vmem:[%s1409 + $0x48] sm:$0xff]
      %v1420 = vld [vmem:[%s1409 + $0x50] sm:$0xff]
      %v1421 = vld [vmem:[%s1409 + $0x58] sm:$0xff]
      %v1422 = vld [vmem:[%s1409 + $0x60] sm:$0xff]
      %v1423 = vld [vmem:[%s1409 + $0x68] sm:$0xff]
      %v1424 = vld [vmem:[%s1409 + $0x70] sm:$0xff]
      %v1425 = vld [vmem:[%s1409 + $0x78] sm:$0xff]
      %1426 = vmatpush.msra.mxu0 %v1425
      %1427 = vmatpush.msra.mxu0 %v1424
      %1428 = vmatpush.msra.mxu0 %v1423
      %1429 = vmatpush.msra.mxu0 %v1422
      %1430 = vmatpush.msra.mxu0 %v1421
      %1431 = vmatpush.msra.mxu0 %v1420
      %1432 = vmatpush.msra.mxu0 %v1419
      %1433 = vmatpush.msra.mxu0 %v1418
      %1434 = vmatpush.msra.mxu0 %v1417
      %1435 = vmatpush.msra.mxu0 %v1416
      %1436 = vmatpush.msra.mxu0 %v1415
      %1437 = vmatpush.msra.mxu0 %v1414
      %1438 = vmatpush.msra.mxu0 %v1413
      %1439 = vmatpush.msra.mxu0 %v1412
      %1440 = vmatpush.msra.mxu0 %v1411
      %1441 = vmatpush.msra.mxu0 %v1410
      %1442 = vmatmul.f32.gmra.mxu0 %v1389
      %v1443 = vpop.f32.mrf.mxu0
      %v1444 = vadd.f32 0.0, %v1443
      %1445 = vmatmul.f32.gmra.mxu0 %v1390
      %v1446 = vpop.f32.mrf.mxu0
      %v1447 = vadd.f32 0.0, %v1446
      %1448 = vmatmul.f32.gmra.mxu0 %v1391
      %v1449 = vpop.f32.mrf.mxu0
      %v1450 = vadd.f32 0.0, %v1449
      %1451 = vmatmul.f32.gmra.mxu0 %v1392
      %v1452 = vpop.f32.mrf.mxu0
      %v1453 = vadd.f32 0.0, %v1452
      %1454 = vmatmul.f32.gmra.mxu0 %v1393
      %v1455 = vpop.f32.mrf.mxu0
      %v1456 = vadd.f32 0.0, %v1455
      %1457 = vmatmul.f32.gmra.mxu0 %v1394
      %v1458 = vpop.f32.mrf.mxu0
      %v1459 = vadd.f32 0.0, %v1458
      %1460 = vmatmul.f32.gmra.mxu0 %v1395
      %v1461 = vpop.f32.mrf.mxu0
      %v1462 = vadd.f32 0.0, %v1461
      %1463 = vmatmul.f32.gmra.mxu0 %v1396
      %v1464 = vpop.f32.mrf.mxu0
      %v1465 = vadd.f32 0.0, %v1464
      %1466 = vmatmul.f32.gmra.mxu0 %v1397
      %v1467 = vpop.f32.mrf.mxu0
      %v1468 = vadd.f32 0.0, %v1467
      %1469 = vmatmul.f32.gmra.mxu0 %v1398
      %v1470 = vpop.f32.mrf.mxu0
      %v1471 = vadd.f32 0.0, %v1470
      %1472 = vmatmul.f32.gmra.mxu0 %v1399
      %v1473 = vpop.f32.mrf.mxu0
      %v1474 = vadd.f32 0.0, %v1473
      %1475 = vmatmul.f32.gmra.mxu0 %v1400
      %v1476 = vpop.f32.mrf.mxu0
      %v1477 = vadd.f32 0.0, %v1476
      %1478 = vmatmul.f32.gmra.mxu0 %v1401
      %v1479 = vpop.f32.mrf.mxu0
      %v1480 = vadd.f32 0.0, %v1479
      %1481 = vmatmul.f32.gmra.mxu0 %v1402
      %v1482 = vpop.f32.mrf.mxu0
      %v1483 = vadd.f32 0.0, %v1482
      %1484 = vmatmul.f32.gmra.mxu0 %v1403
      %v1485 = vpop.f32.mrf.mxu0
      %v1486 = vadd.f32 0.0, %v1485
      %1487 = vmatmul.f32.gmra.mxu0 %v1404
      %v1488 = vpop.f32.mrf.mxu0
      %v1489 = vadd.f32 0.0, %v1488
      %1490 = vmatmul.f32.gmra.mxu0 %v1405
      %v1491 = vpop.f32.mrf.mxu0
      %v1492 = vadd.f32 0.0, %v1491
      %1493 = vmatmul.f32.gmra.mxu0 %v1406
      %v1494 = vpop.f32.mrf.mxu0
      %v1495 = vadd.f32 0.0, %v1494
      %1496 = vmatmul.f32.gmra.mxu0 %v1407
      %v1497 = vpop.f32.mrf.mxu0
      %v1498 = vadd.f32 0.0, %v1497
      %1499 = vmatmul.f32.gmra.mxu0 %v1408
      %v1500 = vpop.f32.mrf.mxu0
      %v1501 = vadd.f32 0.0, %v1500
      %1502 = vdwg.mxu0
      %v1503 = vadd.f32 %v1369, %v1444
      %v1504 = vadd.f32 %v1370, %v1447
      %v1505 = vadd.f32 %v1371, %v1450
      %v1506 = vadd.f32 %v1372, %v1453
      %v1507 = vadd.f32 %v1373, %v1456
      %v1508 = vadd.f32 %v1374, %v1459
      %v1509 = vadd.f32 %v1375, %v1462
      %v1510 = vadd.f32 %v1376, %v1465
      %v1511 = vadd.f32 %v1377, %v1468
      %v1512 = vadd.f32 %v1378, %v1471
      %v1513 = vadd.f32 %v1379, %v1474
      %v1514 = vadd.f32 %v1380, %v1477
      %v1515 = vadd.f32 %v1381, %v1480
      %v1516 = vadd.f32 %v1382, %v1483
      %v1517 = vadd.f32 %v1383, %v1486
      %v1518 = vadd.f32 %v1384, %v1489
      %v1519 = vadd.f32 %v1385, %v1492
      %v1520 = vadd.f32 %v1386, %v1495
      %v1521 = vadd.f32 %v1387, %v1498
      %v1522 = vadd.f32 %v1388, %v1501
      %v1523 = vld [vmem:[%s2] sm:$0x1]
      %v1525 = vperm.slane %v1523, 0
      %v1527 = vadd.f32 %v1503, %v1525
      %v1528 = vadd.f32 %v1504, %v1525
      %v1529 = vadd.f32 %v1505, %v1525
      %v1530 = vadd.f32 %v1506, %v1525
      %v1531 = vadd.f32 %v1507, %v1525
      %v1532 = vadd.f32 %v1508, %v1525
      %v1533 = vadd.f32 %v1509, %v1525
      %v1534 = vadd.f32 %v1510, %v1525
      %v1535 = vadd.f32 %v1511, %v1525
      %v1536 = vadd.f32 %v1512, %v1525
      %v1537 = vadd.f32 %v1513, %v1525
      %v1538 = vadd.f32 %v1514, %v1525
      %v1539 = vadd.f32 %v1515, %v1525
      %v1540 = vadd.f32 %v1516, %v1525
      %v1541 = vadd.f32 %v1517, %v1525
      %v1542 = vadd.f32 %v1518, %v1525
      %v1543 = vadd.f32 %v1519, %v1525
      %v1544 = vadd.f32 %v1520, %v1525
      %v1545 = vadd.f32 %v1521, %v1525
      %v1546 = vadd.f32 %v1522, %v1525
      %v1547 = vmax.f32 %v1527, 0.0
      %v1548 = vmax.f32 %v1528, 0.0
      %v1549 = vmax.f32 %v1529, 0.0
      %v1550 = vmax.f32 %v1530, 0.0
      %v1551 = vmax.f32 %v1531, 0.0
      %v1552 = vmax.f32 %v1532, 0.0
      %v1553 = vmax.f32 %v1533, 0.0
      %v1554 = vmax.f32 %v1534, 0.0
      %v1555 = vmax.f32 %v1535, 0.0
      %v1556 = vmax.f32 %v1536, 0.0
      %v1557 = vmax.f32 %v1537, 0.0
      %v1558 = vmax.f32 %v1538, 0.0
      %v1559 = vmax.f32 %v1539, 0.0
      %v1560 = vmax.f32 %v1540, 0.0
      %v1561 = vmax.f32 %v1541, 0.0
      %v1562 = vmax.f32 %v1542, 0.0
      %v1563 = vmax.f32 %v1543, 0.0
      %v1564 = vmax.f32 %v1544, 0.0
      %v1565 = vmax.f32 %v1545, 0.0
      %v1566 = vmax.f32 %v1546, 0.0
      %1567 = vst [vmem:[#allocation3 + $0x1] sm:$0xff] %v1547
      %1568 = vst [vmem:[#allocation3 + $0x9] sm:$0xff] %v1548
      %1569 = vst [vmem:[#allocation3 + $0x19] sm:$0xff] %v1549
      %1570 = vst [vmem:[#allocation3 + $0x21] sm:$0xff] %v1550
      %1571 = vst [vmem:[#allocation3 + $0x31] sm:$0xff] %v1551
      %1572 = vst [vmem:[#allocation3 + $0x39] sm:$0xff] %v1552
      %1573 = vst [vmem:[#allocation3 + $0x49] sm:$0xff] %v1553
      %1574 = vst [vmem:[#allocation3 + $0x51] sm:$0xff] %v1554
      %1575 = vst [vmem:[#allocation3 + $0x61] sm:$0xff] %v1555
      %1576 = vst [vmem:[#allocation3 + $0x69] sm:$0xff] %v1556
      %1577 = vst [vmem:[#allocation3 + $0x79] sm:$0xff] %v1557
      %1578 = vst [vmem:[#allocation3 + $0x81] sm:$0xff] %v1558
      %1579 = vst [vmem:[#allocation3 + $0x91] sm:$0xff] %v1559
      %1580 = vst [vmem:[#allocation3 + $0x99] sm:$0xff] %v1560
      %1581 = vst [vmem:[#allocation3 + $0xa9] sm:$0xff] %v1561
      %1582 = vst [vmem:[#allocation3 + $0xb1] sm:$0xff] %v1562
      %1583 = vst [vmem:[#allocation3 + $0xc1] sm:$0xff] %v1563
      %1584 = vst [vmem:[#allocation3 + $0xc9] sm:$0xff] %v1564
      %1585 = vst [vmem:[#allocation3 + $0xd9] sm:$0xff] %v1565
      %1586 = vst [vmem:[#allocation3 + $0xe1] sm:$0xff] %v1566
      %p1587 = scmp.eq.s32.totalorder %s21, 0
      // Predicated region
      $region41: #{basic_block_forward.1} parent=39 // pred_check
        %p1588 = pneg %p1587
      $region42: #{basic_block_forward.1} parent=39 // pred_check_branch
        %1590 = sbr.rel (%p1588) target = $region44
      $region43: #{basic_block_forward.1} parent=39 // pred_region
        %1591 = vst [vmem:[#allocation3] sm:$0xff] 0.0
        %1592 = vst [vmem:[#allocation3 + $0x8] sm:$0xff] 0.0
        %1593 = vst [vmem:[#allocation3 + $0x10] sm:$0xff] 0.0
      $region44: #{basic_block_forward.1} parent=39 // pred_fallthru
        _
      %p1594 = scmp.eq.s32.totalorder %s21, 1
      // Predicated region
      $region45: #{basic_block_forward.1} parent=39 // pred_check
        %p1595 = pneg %p1594
      $region46: #{basic_block_forward.1} parent=39 // pred_check_branch
        %1597 = sbr.rel (%p1595) target = $region48
      $region47: #{basic_block_forward.1} parent=39 // pred_region
        %s1598 = scalar_lea.vmem [#allocation3], 216
        %1599 = vst [vmem:[%s1598] sm:$0xff] 0.0
        %1600 = vst [vmem:[%s1598 + $0x8] sm:$0xff] 0.0
        %1601 = vst [vmem:[%s1598 + $0x10] sm:$0xff] 0.0
      $region48: #{basic_block_forward.1} parent=39 // pred_fallthru
        _
      %v1602 = vld [vmem:[#allocation3] sm:$0xff]
      %v1603 = vld [vmem:[#allocation3 + $0x8] sm:$0xff]
      %v1604 = vld [vmem:[#allocation3 + $0x18] sm:$0xff]
      %v1605 = vld [vmem:[#allocation3 + $0x20] sm:$0xff]
      %v1606 = vld [vmem:[#allocation3 + $0x30] sm:$0xff]
      %v1607 = vld [vmem:[#allocation3 + $0x38] sm:$0xff]
      %v1608 = vld [vmem:[#allocation3 + $0x48] sm:$0xff]
      %v1609 = vld [vmem:[#allocation3 + $0x50] sm:$0xff]
      %v1610 = vld [vmem:[#allocation3 + $0x60] sm:$0xff]
      %v1611 = vld [vmem:[#allocation3 + $0x68] sm:$0xff]
      %v1612 = vld [vmem:[#allocation3 + $0x78] sm:$0xff]
      %v1613 = vld [vmem:[#allocation3 + $0x80] sm:$0xff]
      %v1614 = vld [vmem:[#allocation3 + $0x90] sm:$0xff]
      %v1615 = vld [vmem:[#allocation3 + $0x98] sm:$0xff]
      %v1616 = vld [vmem:[#allocation3 + $0xa8] sm:$0xff]
      %v1617 = vld [vmem:[#allocation3 + $0xb0] sm:$0xff]
      %v1618 = vld [vmem:[%s3] sm:$0xff]
      %v1619 = vld [vmem:[%s3 + $0x8] sm:$0xff]
      %v1620 = vld [vmem:[%s3 + $0x10] sm:$0xff]
      %v1621 = vld [vmem:[%s3 + $0x18] sm:$0xff]
      %v1622 = vld [vmem:[%s3 + $0x20] sm:$0xff]
      %v1623 = vld [vmem:[%s3 + $0x28] sm:$0xff]
      %v1624 = vld [vmem:[%s3 + $0x30] sm:$0xff]
      %v1625 = vld [vmem:[%s3 + $0x38] sm:$0xff]
      %v1626 = vld [vmem:[%s3 + $0x40] sm:$0xff]
      %v1627 = vld [vmem:[%s3 + $0x48] sm:$0xff]
      %v1628 = vld [vmem:[%s3 + $0x50] sm:$0xff]
      %v1629 = vld [vmem:[%s3 + $0x58] sm:$0xff]
      %v1630 = vld [vmem:[%s3 + $0x60] sm:$0xff]
      %v1631 = vld [vmem:[%s3 + $0x68] sm:$0xff]
      %v1632 = vld [vmem:[%s3 + $0x70] sm:$0xff]
      %v1633 = vld [vmem:[%s3 + $0x78] sm:$0xff]
      %v1634 = vld [vmem:[#allocation3 + $0x1] sm:$0xff]
      %v1635 = vld [vmem:[#allocation3 + $0x9] sm:$0xff]
      %v1636 = vld [vmem:[#allocation3 + $0x19] sm:$0xff]
      %v1637 = vld [vmem:[#allocation3 + $0x21] sm:$0xff]
      %v1638 = vld [vmem:[#allocation3 + $0x31] sm:$0xff]
      %v1639 = vld [vmem:[#allocation3 + $0x39] sm:$0xff]
      %v1640 = vld [vmem:[#allocation3 + $0x49] sm:$0xff]
      %v1641 = vld [vmem:[#allocation3 + $0x51] sm:$0xff]
      %v1642 = vld [vmem:[#allocation3 + $0x61] sm:$0xff]
      %v1643 = vld [vmem:[#allocation3 + $0x69] sm:$0xff]
      %v1644 = vld [vmem:[#allocation3 + $0x79] sm:$0xff]
      %v1645 = vld [vmem:[#allocation3 + $0x81] sm:$0xff]
      %v1646 = vld [vmem:[#allocation3 + $0x91] sm:$0xff]
      %v1647 = vld [vmem:[#allocation3 + $0x99] sm:$0xff]
      %v1648 = vld [vmem:[#allocation3 + $0xa9] sm:$0xff]
      %v1649 = vld [vmem:[#allocation3 + $0xb1] sm:$0xff]
      %s1650 = scalar_lea.vmem %s3, 128
      %v1651 = vld [vmem:[%s1650] sm:$0xff]
      %v1652 = vld [vmem:[%s1650 + $0x8] sm:$0xff]
      %v1653 = vld [vmem:[%s1650 + $0x10] sm:$0xff]
      %v1654 = vld [vmem:[%s1650 + $0x18] sm:$0xff]
      %v1655 = vld [vmem:[%s1650 + $0x20] sm:$0xff]
      %v1656 = vld [vmem:[%s1650 + $0x28] sm:$0xff]
      %v1657 = vld [vmem:[%s1650 + $0x30] sm:$0xff]
      %v1658 = vld [vmem:[%s1650 + $0x38] sm:$0xff]
      %v1659 = vld [vmem:[%s1650 + $0x40] sm:$0xff]
      %v1660 = vld [vmem:[%s1650 + $0x48] sm:$0xff]
      %v1661 = vld [vmem:[%s1650 + $0x50] sm:$0xff]
      %v1662 = vld [vmem:[%s1650 + $0x58] sm:$0xff]
      %v1663 = vld [vmem:[%s1650 + $0x60] sm:$0xff]
      %v1664 = vld [vmem:[%s1650 + $0x68] sm:$0xff]
      %v1665 = vld [vmem:[%s1650 + $0x70] sm:$0xff]
      %v1666 = vld [vmem:[%s1650 + $0x78] sm:$0xff]
      %1667 = vmatpush.msra.mxu0 %v1666
      %1668 = vmatpush.msra.mxu0 %v1665
      %1669 = vmatpush.msra.mxu0 %v1664
      %1670 = vmatpush.msra.mxu0 %v1663
      %1671 = vmatpush.msra.mxu0 %v1662
      %1672 = vmatpush.msra.mxu0 %v1661
      %1673 = vmatpush.msra.mxu0 %v1660
      %1674 = vmatpush.msra.mxu0 %v1659
      %1675 = vmatpush.msra.mxu0 %v1658
      %1676 = vmatpush.msra.mxu0 %v1657
      %1677 = vmatpush.msra.mxu0 %v1656
      %1678 = vmatpush.msra.mxu0 %v1655
      %1679 = vmatpush.msra.mxu0 %v1654
      %1680 = vmatpush.msra.mxu0 %v1653
      %1681 = vmatpush.msra.mxu0 %v1652
      %1682 = vmatpush.msra.mxu0 %v1651
      %1683 = vmatmul.f32.gmra.mxu0 %v1634
      %v1684 = vpop.f32.mrf.mxu0
      %v1685 = vadd.f32 0.0, %v1684
      %1686 = vmatmul.f32.gmra.mxu0 %v1635
      %v1687 = vpop.f32.mrf.mxu0
      %v1688 = vadd.f32 0.0, %v1687
      %1689 = vmatmul.f32.gmra.mxu0 %v1636
      %v1690 = vpop.f32.mrf.mxu0
      %v1691 = vadd.f32 0.0, %v1690
      %1692 = vmatmul.f32.gmra.mxu0 %v1637
      %v1693 = vpop.f32.mrf.mxu0
      %v1694 = vadd.f32 0.0, %v1693
      %1695 = vmatmul.f32.gmra.mxu0 %v1638
      %v1696 = vpop.f32.mrf.mxu0
      %v1697 = vadd.f32 0.0, %v1696
      %1698 = vmatmul.f32.gmra.mxu0 %v1639
      %v1699 = vpop.f32.mrf.mxu0
      %v1700 = vadd.f32 0.0, %v1699
      %1701 = vmatmul.f32.gmra.mxu0 %v1640
      %v1702 = vpop.f32.mrf.mxu0
      %v1703 = vadd.f32 0.0, %v1702
      %1704 = vmatmul.f32.gmra.mxu0 %v1641
      %v1705 = vpop.f32.mrf.mxu0
      %v1706 = vadd.f32 0.0, %v1705
      %1707 = vmatmul.f32.gmra.mxu0 %v1642
      %v1708 = vpop.f32.mrf.mxu0
      %v1709 = vadd.f32 0.0, %v1708
      %1710 = vmatmul.f32.gmra.mxu0 %v1643
      %v1711 = vpop.f32.mrf.mxu0
      %v1712 = vadd.f32 0.0, %v1711
      %1713 = vmatmul.f32.gmra.mxu0 %v1644
      %v1714 = vpop.f32.mrf.mxu0
      %v1715 = vadd.f32 0.0, %v1714
      %1716 = vmatmul.f32.gmra.mxu0 %v1645
      %v1717 = vpop.f32.mrf.mxu0
      %v1718 = vadd.f32 0.0, %v1717
      %1719 = vmatmul.f32.gmra.mxu0 %v1646
      %v1720 = vpop.f32.mrf.mxu0
      %v1721 = vadd.f32 0.0, %v1720
      %1722 = vmatmul.f32.gmra.mxu0 %v1647
      %v1723 = vpop.f32.mrf.mxu0
      %v1724 = vadd.f32 0.0, %v1723
      %1725 = vmatmul.f32.gmra.mxu0 %v1648
      %v1726 = vpop.f32.mrf.mxu0
      %v1727 = vadd.f32 0.0, %v1726
      %1728 = vmatmul.f32.gmra.mxu0 %v1649
      %v1729 = vpop.f32.mrf.mxu0
      %v1730 = vadd.f32 0.0, %v1729
      %1731 = vdwg.mxu0
      %1732 = vmatpush.msra.mxu0 %v1633
      %1733 = vmatpush.msra.mxu0 %v1632
      %1734 = vmatpush.msra.mxu0 %v1631
      %1735 = vmatpush.msra.mxu0 %v1630
      %1736 = vmatpush.msra.mxu0 %v1629
      %1737 = vmatpush.msra.mxu0 %v1628
      %1738 = vmatpush.msra.mxu0 %v1627
      %1739 = vmatpush.msra.mxu0 %v1626
      %1740 = vmatpush.msra.mxu0 %v1625
      %1741 = vmatpush.msra.mxu0 %v1624
      %1742 = vmatpush.msra.mxu0 %v1623
      %1743 = vmatpush.msra.mxu0 %v1622
      %1744 = vmatpush.msra.mxu0 %v1621
      %1745 = vmatpush.msra.mxu0 %v1620
      %1746 = vmatpush.msra.mxu0 %v1619
      %1747 = vmatpush.msra.mxu0 %v1618
      %1748 = vmatmul.f32.gmra.mxu0 %v1602
      %v1749 = vpop.f32.mrf.mxu0
      %v1750 = vadd.f32 %v1685, %v1749
      %1751 = vmatmul.f32.gmra.mxu0 %v1603
      %v1752 = vpop.f32.mrf.mxu0
      %v1753 = vadd.f32 %v1688, %v1752
      %1754 = vmatmul.f32.gmra.mxu0 %v1604
      %v1755 = vpop.f32.mrf.mxu0
      %v1756 = vadd.f32 %v1691, %v1755
      %1757 = vmatmul.f32.gmra.mxu0 %v1605
      %v1758 = vpop.f32.mrf.mxu0
      %v1759 = vadd.f32 %v1694, %v1758
      %1760 = vmatmul.f32.gmra.mxu0 %v1606
      %v1761 = vpop.f32.mrf.mxu0
      %v1762 = vadd.f32 %v1697, %v1761
      %1763 = vmatmul.f32.gmra.mxu0 %v1607
      %v1764 = vpop.f32.mrf.mxu0
      %v1765 = vadd.f32 %v1700, %v1764
      %1766 = vmatmul.f32.gmra.mxu0 %v1608
      %v1767 = vpop.f32.mrf.mxu0
      %v1768 = vadd.f32 %v1703, %v1767
      %1769 = vmatmul.f32.gmra.mxu0 %v1609
      %v1770 = vpop.f32.mrf.mxu0
      %v1771 = vadd.f32 %v1706, %v1770
      %1772 = vmatmul.f32.gmra.mxu0 %v1610
      %v1773 = vpop.f32.mrf.mxu0
      %v1774 = vadd.f32 %v1709, %v1773
      %1775 = vmatmul.f32.gmra.mxu0 %v1611
      %v1776 = vpop.f32.mrf.mxu0
      %v1777 = vadd.f32 %v1712, %v1776
      %1778 = vmatmul.f32.gmra.mxu0 %v1612
      %v1779 = vpop.f32.mrf.mxu0
      %v1780 = vadd.f32 %v1715, %v1779
      %1781 = vmatmul.f32.gmra.mxu0 %v1613
      %v1782 = vpop.f32.mrf.mxu0
      %v1783 = vadd.f32 %v1718, %v1782
      %1784 = vmatmul.f32.gmra.mxu0 %v1614
      %v1785 = vpop.f32.mrf.mxu0
      %v1786 = vadd.f32 %v1721, %v1785
      %1787 = vmatmul.f32.gmra.mxu0 %v1615
      %v1788 = vpop.f32.mrf.mxu0
      %v1789 = vadd.f32 %v1724, %v1788
      %1790 = vmatmul.f32.gmra.mxu0 %v1616
      %v1791 = vpop.f32.mrf.mxu0
      %v1792 = vadd.f32 %v1727, %v1791
      %1793 = vmatmul.f32.gmra.mxu0 %v1617
      %v1794 = vpop.f32.mrf.mxu0
      %v1795 = vadd.f32 %v1730, %v1794
      %1796 = vdwg.mxu0
      %v1797 = vld [vmem:[#allocation3 + $0x2] sm:$0xff]
      %v1798 = vld [vmem:[#allocation3 + $0xa] sm:$0xff]
      %v1799 = vld [vmem:[#allocation3 + $0x1a] sm:$0xff]
      %v1800 = vld [vmem:[#allocation3 + $0x22] sm:$0xff]
      %v1801 = vld [vmem:[#allocation3 + $0x32] sm:$0xff]
      %v1802 = vld [vmem:[#allocation3 + $0x3a] sm:$0xff]
      %v1803 = vld [vmem:[#allocation3 + $0x4a] sm:$0xff]
      %v1804 = vld [vmem:[#allocation3 + $0x52] sm:$0xff]
      %v1805 = vld [vmem:[#allocation3 + $0x62] sm:$0xff]
      %v1806 = vld [vmem:[#allocation3 + $0x6a] sm:$0xff]
      %v1807 = vld [vmem:[#allocation3 + $0x7a] sm:$0xff]
      %v1808 = vld [vmem:[#allocation3 + $0x82] sm:$0xff]
      %v1809 = vld [vmem:[#allocation3 + $0x92] sm:$0xff]
      %v1810 = vld [vmem:[#allocation3 + $0x9a] sm:$0xff]
      %v1811 = vld [vmem:[#allocation3 + $0xaa] sm:$0xff]
      %v1812 = vld [vmem:[#allocation3 + $0xb2] sm:$0xff]
      %s1813 = scalar_lea.vmem %s3, 256
      %v1814 = vld [vmem:[%s1813] sm:$0xff]
      %v1815 = vld [vmem:[%s1813 + $0x8] sm:$0xff]
      %v1816 = vld [vmem:[%s1813 + $0x10] sm:$0xff]
      %v1817 = vld [vmem:[%s1813 + $0x18] sm:$0xff]
      %v1818 = vld [vmem:[%s1813 + $0x20] sm:$0xff]
      %v1819 = vld [vmem:[%s1813 + $0x28] sm:$0xff]
      %v1820 = vld [vmem:[%s1813 + $0x30] sm:$0xff]
      %v1821 = vld [vmem:[%s1813 + $0x38] sm:$0xff]
      %v1822 = vld [vmem:[%s1813 + $0x40] sm:$0xff]
      %v1823 = vld [vmem:[%s1813 + $0x48] sm:$0xff]
      %v1824 = vld [vmem:[%s1813 + $0x50] sm:$0xff]
      %v1825 = vld [vmem:[%s1813 + $0x58] sm:$0xff]
      %v1826 = vld [vmem:[%s1813 + $0x60] sm:$0xff]
      %v1827 = vld [vmem:[%s1813 + $0x68] sm:$0xff]
      %v1828 = vld [vmem:[%s1813 + $0x70] sm:$0xff]
      %v1829 = vld [vmem:[%s1813 + $0x78] sm:$0xff]
      %1830 = vmatpush.msra.mxu0 %v1829
      %1831 = vmatpush.msra.mxu0 %v1828
      %1832 = vmatpush.msra.mxu0 %v1827
      %1833 = vmatpush.msra.mxu0 %v1826
      %1834 = vmatpush.msra.mxu0 %v1825
      %1835 = vmatpush.msra.mxu0 %v1824
      %1836 = vmatpush.msra.mxu0 %v1823
      %1837 = vmatpush.msra.mxu0 %v1822
      %1838 = vmatpush.msra.mxu0 %v1821
      %1839 = vmatpush.msra.mxu0 %v1820
      %1840 = vmatpush.msra.mxu0 %v1819
      %1841 = vmatpush.msra.mxu0 %v1818
      %1842 = vmatpush.msra.mxu0 %v1817
      %1843 = vmatpush.msra.mxu0 %v1816
      %1844 = vmatpush.msra.mxu0 %v1815
      %1845 = vmatpush.msra.mxu0 %v1814
      %1846 = vmatmul.f32.gmra.mxu0 %v1797
      %v1847 = vpop.f32.mrf.mxu0
      %v1848 = vadd.f32 0.0, %v1847
      %1849 = vmatmul.f32.gmra.mxu0 %v1798
      %v1850 = vpop.f32.mrf.mxu0
      %v1851 = vadd.f32 0.0, %v1850
      %1852 = vmatmul.f32.gmra.mxu0 %v1799
      %v1853 = vpop.f32.mrf.mxu0
      %v1854 = vadd.f32 0.0, %v1853
      %1855 = vmatmul.f32.gmra.mxu0 %v1800
      %v1856 = vpop.f32.mrf.mxu0
      %v1857 = vadd.f32 0.0, %v1856
      %1858 = vmatmul.f32.gmra.mxu0 %v1801
      %v1859 = vpop.f32.mrf.mxu0
      %v1860 = vadd.f32 0.0, %v1859
      %1861 = vmatmul.f32.gmra.mxu0 %v1802
      %v1862 = vpop.f32.mrf.mxu0
      %v1863 = vadd.f32 0.0, %v1862
      %1864 = vmatmul.f32.gmra.mxu0 %v1803
      %v1865 = vpop.f32.mrf.mxu0
      %v1866 = vadd.f32 0.0, %v1865
      %1867 = vmatmul.f32.gmra.mxu0 %v1804
      %v1868 = vpop.f32.mrf.mxu0
      %v1869 = vadd.f32 0.0, %v1868
      %1870 = vmatmul.f32.gmra.mxu0 %v1805
      %v1871 = vpop.f32.mrf.mxu0
      %v1872 = vadd.f32 0.0, %v1871
      %1873 = vmatmul.f32.gmra.mxu0 %v1806
      %v1874 = vpop.f32.mrf.mxu0
      %v1875 = vadd.f32 0.0, %v1874
      %1876 = vmatmul.f32.gmra.mxu0 %v1807
      %v1877 = vpop.f32.mrf.mxu0
      %v1878 = vadd.f32 0.0, %v1877
      %1879 = vmatmul.f32.gmra.mxu0 %v1808
      %v1880 = vpop.f32.mrf.mxu0
      %v1881 = vadd.f32 0.0, %v1880
      %1882 = vmatmul.f32.gmra.mxu0 %v1809
      %v1883 = vpop.f32.mrf.mxu0
      %v1884 = vadd.f32 0.0, %v1883
      %1885 = vmatmul.f32.gmra.mxu0 %v1810
      %v1886 = vpop.f32.mrf.mxu0
      %v1887 = vadd.f32 0.0, %v1886
      %1888 = vmatmul.f32.gmra.mxu0 %v1811
      %v1889 = vpop.f32.mrf.mxu0
      %v1890 = vadd.f32 0.0, %v1889
      %1891 = vmatmul.f32.gmra.mxu0 %v1812
      %v1892 = vpop.f32.mrf.mxu0
      %v1893 = vadd.f32 0.0, %v1892
      %1894 = vdwg.mxu0
      %v1895 = vadd.f32 %v1750, %v1848
      %v1896 = vadd.f32 %v1753, %v1851
      %v1897 = vadd.f32 %v1756, %v1854
      %v1898 = vadd.f32 %v1759, %v1857
      %v1899 = vadd.f32 %v1762, %v1860
      %v1900 = vadd.f32 %v1765, %v1863
      %v1901 = vadd.f32 %v1768, %v1866
      %v1902 = vadd.f32 %v1771, %v1869
      %v1903 = vadd.f32 %v1774, %v1872
      %v1904 = vadd.f32 %v1777, %v1875
      %v1905 = vadd.f32 %v1780, %v1878
      %v1906 = vadd.f32 %v1783, %v1881
      %v1907 = vadd.f32 %v1786, %v1884
      %v1908 = vadd.f32 %v1789, %v1887
      %v1909 = vadd.f32 %v1792, %v1890
      %v1910 = vadd.f32 %v1795, %v1893
      %s1911 = scalar_lea.vmem [#allocation3], 24
      %v1912 = vld [vmem:[%s1911] sm:$0xff]
      %v1913 = vld [vmem:[%s1911 + $0x8] sm:$0xff]
      %v1914 = vld [vmem:[%s1911 + $0x18] sm:$0xff]
      %v1915 = vld [vmem:[%s1911 + $0x20] sm:$0xff]
      %v1916 = vld [vmem:[%s1911 + $0x30] sm:$0xff]
      %v1917 = vld [vmem:[%s1911 + $0x38] sm:$0xff]
      %v1918 = vld [vmem:[%s1911 + $0x48] sm:$0xff]
      %v1919 = vld [vmem:[%s1911 + $0x50] sm:$0xff]
      %v1920 = vld [vmem:[%s1911 + $0x60] sm:$0xff]
      %v1921 = vld [vmem:[%s1911 + $0x68] sm:$0xff]
      %v1922 = vld [vmem:[%s1911 + $0x78] sm:$0xff]
      %v1923 = vld [vmem:[%s1911 + $0x80] sm:$0xff]
      %v1924 = vld [vmem:[%s1911 + $0x90] sm:$0xff]
      %v1925 = vld [vmem:[%s1911 + $0x98] sm:$0xff]
      %v1926 = vld [vmem:[%s1911 + $0xa8] sm:$0xff]
      %v1927 = vld [vmem:[%s1911 + $0xb0] sm:$0xff]
      %s1928 = scalar_lea.vmem %s3, 384
      %v1929 = vld [vmem:[%s1928] sm:$0xff]
      %v1930 = vld [vmem:[%s1928 + $0x8] sm:$0xff]
      %v1931 = vld [vmem:[%s1928 + $0x10] sm:$0xff]
      %v1932 = vld [vmem:[%s1928 + $0x18] sm:$0xff]
      %v1933 = vld [vmem:[%s1928 + $0x20] sm:$0xff]
      %v1934 = vld [vmem:[%s1928 + $0x28] sm:$0xff]
      %v1935 = vld [vmem:[%s1928 + $0x30] sm:$0xff]
      %v1936 = vld [vmem:[%s1928 + $0x38] sm:$0xff]
      %v1937 = vld [vmem:[%s1928 + $0x40] sm:$0xff]
      %v1938 = vld [vmem:[%s1928 + $0x48] sm:$0xff]
      %v1939 = vld [vmem:[%s1928 + $0x50] sm:$0xff]
      %v1940 = vld [vmem:[%s1928 + $0x58] sm:$0xff]
      %v1941 = vld [vmem:[%s1928 + $0x60] sm:$0xff]
      %v1942 = vld [vmem:[%s1928 + $0x68] sm:$0xff]
      %v1943 = vld [vmem:[%s1928 + $0x70] sm:$0xff]
      %v1944 = vld [vmem:[%s1928 + $0x78] sm:$0xff]
      %1945 = vmatpush.msra.mxu0 %v1944
      %1946 = vmatpush.msra.mxu0 %v1943
      %1947 = vmatpush.msra.mxu0 %v1942
      %1948 = vmatpush.msra.mxu0 %v1941
      %1949 = vmatpush.msra.mxu0 %v1940
      %1950 = vmatpush.msra.mxu0 %v1939
      %1951 = vmatpush.msra.mxu0 %v1938
      %1952 = vmatpush.msra.mxu0 %v1937
      %1953 = vmatpush.msra.mxu0 %v1936
      %1954 = vmatpush.msra.mxu0 %v1935
      %1955 = vmatpush.msra.mxu0 %v1934
      %1956 = vmatpush.msra.mxu0 %v1933
      %1957 = vmatpush.msra.mxu0 %v1932
      %1958 = vmatpush.msra.mxu0 %v1931
      %1959 = vmatpush.msra.mxu0 %v1930
      %1960 = vmatpush.msra.mxu0 %v1929
      %1961 = vmatmul.f32.gmra.mxu0 %v1912
      %v1962 = vpop.f32.mrf.mxu0
      %v1963 = vadd.f32 0.0, %v1962
      %1964 = vmatmul.f32.gmra.mxu0 %v1913
      %v1965 = vpop.f32.mrf.mxu0
      %v1966 = vadd.f32 0.0, %v1965
      %1967 = vmatmul.f32.gmra.mxu0 %v1914
      %v1968 = vpop.f32.mrf.mxu0
      %v1969 = vadd.f32 0.0, %v1968
      %1970 = vmatmul.f32.gmra.mxu0 %v1915
      %v1971 = vpop.f32.mrf.mxu0
      %v1972 = vadd.f32 0.0, %v1971
      %1973 = vmatmul.f32.gmra.mxu0 %v1916
      %v1974 = vpop.f32.mrf.mxu0
      %v1975 = vadd.f32 0.0, %v1974
      %1976 = vmatmul.f32.gmra.mxu0 %v1917
      %v1977 = vpop.f32.mrf.mxu0
      %v1978 = vadd.f32 0.0, %v1977
      %1979 = vmatmul.f32.gmra.mxu0 %v1918
      %v1980 = vpop.f32.mrf.mxu0
      %v1981 = vadd.f32 0.0, %v1980
      %1982 = vmatmul.f32.gmra.mxu0 %v1919
      %v1983 = vpop.f32.mrf.mxu0
      %v1984 = vadd.f32 0.0, %v1983
      %1985 = vmatmul.f32.gmra.mxu0 %v1920
      %v1986 = vpop.f32.mrf.mxu0
      %v1987 = vadd.f32 0.0, %v1986
      %1988 = vmatmul.f32.gmra.mxu0 %v1921
      %v1989 = vpop.f32.mrf.mxu0
      %v1990 = vadd.f32 0.0, %v1989
      %1991 = vmatmul.f32.gmra.mxu0 %v1922
      %v1992 = vpop.f32.mrf.mxu0
      %v1993 = vadd.f32 0.0, %v1992
      %1994 = vmatmul.f32.gmra.mxu0 %v1923
      %v1995 = vpop.f32.mrf.mxu0
      %v1996 = vadd.f32 0.0, %v1995
      %1997 = vmatmul.f32.gmra.mxu0 %v1924
      %v1998 = vpop.f32.mrf.mxu0
      %v1999 = vadd.f32 0.0, %v1998
      %2000 = vmatmul.f32.gmra.mxu0 %v1925
      %v2001 = vpop.f32.mrf.mxu0
      %v2002 = vadd.f32 0.0, %v2001
      %2003 = vmatmul.f32.gmra.mxu0 %v1926
      %v2004 = vpop.f32.mrf.mxu0
      %v2005 = vadd.f32 0.0, %v2004
      %2006 = vmatmul.f32.gmra.mxu0 %v1927
      %v2007 = vpop.f32.mrf.mxu0
      %v2008 = vadd.f32 0.0, %v2007
      %2009 = vdwg.mxu0
      %v2010 = vadd.f32 %v1895, %v1963
      %v2011 = vadd.f32 %v1896, %v1966
      %v2012 = vadd.f32 %v1897, %v1969
      %v2013 = vadd.f32 %v1898, %v1972
      %v2014 = vadd.f32 %v1899, %v1975
      %v2015 = vadd.f32 %v1900, %v1978
      %v2016 = vadd.f32 %v1901, %v1981
      %v2017 = vadd.f32 %v1902, %v1984
      %v2018 = vadd.f32 %v1903, %v1987
      %v2019 = vadd.f32 %v1904, %v1990
      %v2020 = vadd.f32 %v1905, %v1993
      %v2021 = vadd.f32 %v1906, %v1996
      %v2022 = vadd.f32 %v1907, %v1999
      %v2023 = vadd.f32 %v1908, %v2002
      %v2024 = vadd.f32 %v1909, %v2005
      %v2025 = vadd.f32 %v1910, %v2008
      %v2026 = vld [vmem:[%s1911 + $0x1] sm:$0xff]
      %v2027 = vld [vmem:[%s1911 + $0x9] sm:$0xff]
      %v2028 = vld [vmem:[%s1911 + $0x19] sm:$0xff]
      %v2029 = vld [vmem:[%s1911 + $0x21] sm:$0xff]
      %v2030 = vld [vmem:[%s1911 + $0x31] sm:$0xff]
      %v2031 = vld [vmem:[%s1911 + $0x39] sm:$0xff]
      %v2032 = vld [vmem:[%s1911 + $0x49] sm:$0xff]
      %v2033 = vld [vmem:[%s1911 + $0x51] sm:$0xff]
      %v2034 = vld [vmem:[%s1911 + $0x61] sm:$0xff]
      %v2035 = vld [vmem:[%s1911 + $0x69] sm:$0xff]
      %v2036 = vld [vmem:[%s1911 + $0x79] sm:$0xff]
      %v2037 = vld [vmem:[%s1911 + $0x81] sm:$0xff]
      %v2038 = vld [vmem:[%s1911 + $0x91] sm:$0xff]
      %v2039 = vld [vmem:[%s1911 + $0x99] sm:$0xff]
      %v2040 = vld [vmem:[%s1911 + $0xa9] sm:$0xff]
      %v2041 = vld [vmem:[%s1911 + $0xb1] sm:$0xff]
      %s2042 = scalar_lea.vmem %s3, 512
      %v2043 = vld [vmem:[%s2042] sm:$0xff]
      %v2044 = vld [vmem:[%s2042 + $0x8] sm:$0xff]
      %v2045 = vld [vmem:[%s2042 + $0x10] sm:$0xff]
      %v2046 = vld [vmem:[%s2042 + $0x18] sm:$0xff]
      %v2047 = vld [vmem:[%s2042 + $0x20] sm:$0xff]
      %v2048 = vld [vmem:[%s2042 + $0x28] sm:$0xff]
      %v2049 = vld [vmem:[%s2042 + $0x30] sm:$0xff]
      %v2050 = vld [vmem:[%s2042 + $0x38] sm:$0xff]
      %v2051 = vld [vmem:[%s2042 + $0x40] sm:$0xff]
      %v2052 = vld [vmem:[%s2042 + $0x48] sm:$0xff]
      %v2053 = vld [vmem:[%s2042 + $0x50] sm:$0xff]
      %v2054 = vld [vmem:[%s2042 + $0x58] sm:$0xff]
      %v2055 = vld [vmem:[%s2042 + $0x60] sm:$0xff]
      %v2056 = vld [vmem:[%s2042 + $0x68] sm:$0xff]
      %v2057 = vld [vmem:[%s2042 + $0x70] sm:$0xff]
      %v2058 = vld [vmem:[%s2042 + $0x78] sm:$0xff]
      %2059 = vmatpush.msra.mxu0 %v2058
      %2060 = vmatpush.msra.mxu0 %v2057
      %2061 = vmatpush.msra.mxu0 %v2056
      %2062 = vmatpush.msra.mxu0 %v2055
      %2063 = vmatpush.msra.mxu0 %v2054
      %2064 = vmatpush.msra.mxu0 %v2053
      %2065 = vmatpush.msra.mxu0 %v2052
      %2066 = vmatpush.msra.mxu0 %v2051
      %2067 = vmatpush.msra.mxu0 %v2050
      %2068 = vmatpush.msra.mxu0 %v2049
      %2069 = vmatpush.msra.mxu0 %v2048
      %2070 = vmatpush.msra.mxu0 %v2047
      %2071 = vmatpush.msra.mxu0 %v2046
      %2072 = vmatpush.msra.mxu0 %v2045
      %2073 = vmatpush.msra.mxu0 %v2044
      %2074 = vmatpush.msra.mxu0 %v2043
      %2075 = vmatmul.f32.gmra.mxu0 %v2026
      %v2076 = vpop.f32.mrf.mxu0
      %v2077 = vadd.f32 0.0, %v2076
      %2078 = vmatmul.f32.gmra.mxu0 %v2027
      %v2079 = vpop.f32.mrf.mxu0
      %v2080 = vadd.f32 0.0, %v2079
      %2081 = vmatmul.f32.gmra.mxu0 %v2028
      %v2082 = vpop.f32.mrf.mxu0
      %v2083 = vadd.f32 0.0, %v2082
      %2084 = vmatmul.f32.gmra.mxu0 %v2029
      %v2085 = vpop.f32.mrf.mxu0
      %v2086 = vadd.f32 0.0, %v2085
      %2087 = vmatmul.f32.gmra.mxu0 %v2030
      %v2088 = vpop.f32.mrf.mxu0
      %v2089 = vadd.f32 0.0, %v2088
      %2090 = vmatmul.f32.gmra.mxu0 %v2031
      %v2091 = vpop.f32.mrf.mxu0
      %v2092 = vadd.f32 0.0, %v2091
      %2093 = vmatmul.f32.gmra.mxu0 %v2032
      %v2094 = vpop.f32.mrf.mxu0
      %v2095 = vadd.f32 0.0, %v2094
      %2096 = vmatmul.f32.gmra.mxu0 %v2033
      %v2097 = vpop.f32.mrf.mxu0
      %v2098 = vadd.f32 0.0, %v2097
      %2099 = vmatmul.f32.gmra.mxu0 %v2034
      %v2100 = vpop.f32.mrf.mxu0
      %v2101 = vadd.f32 0.0, %v2100
      %2102 = vmatmul.f32.gmra.mxu0 %v2035
      %v2103 = vpop.f32.mrf.mxu0
      %v2104 = vadd.f32 0.0, %v2103
      %2105 = vmatmul.f32.gmra.mxu0 %v2036
      %v2106 = vpop.f32.mrf.mxu0
      %v2107 = vadd.f32 0.0, %v2106
      %2108 = vmatmul.f32.gmra.mxu0 %v2037
      %v2109 = vpop.f32.mrf.mxu0
      %v2110 = vadd.f32 0.0, %v2109
      %2111 = vmatmul.f32.gmra.mxu0 %v2038
      %v2112 = vpop.f32.mrf.mxu0
      %v2113 = vadd.f32 0.0, %v2112
      %2114 = vmatmul.f32.gmra.mxu0 %v2039
      %v2115 = vpop.f32.mrf.mxu0
      %v2116 = vadd.f32 0.0, %v2115
      %2117 = vmatmul.f32.gmra.mxu0 %v2040
      %v2118 = vpop.f32.mrf.mxu0
      %v2119 = vadd.f32 0.0, %v2118
      %2120 = vmatmul.f32.gmra.mxu0 %v2041
      %v2121 = vpop.f32.mrf.mxu0
      %v2122 = vadd.f32 0.0, %v2121
      %2123 = vdwg.mxu0
      %v2124 = vadd.f32 %v2010, %v2077
      %v2125 = vadd.f32 %v2011, %v2080
      %v2126 = vadd.f32 %v2012, %v2083
      %v2127 = vadd.f32 %v2013, %v2086
      %v2128 = vadd.f32 %v2014, %v2089
      %v2129 = vadd.f32 %v2015, %v2092
      %v2130 = vadd.f32 %v2016, %v2095
      %v2131 = vadd.f32 %v2017, %v2098
      %v2132 = vadd.f32 %v2018, %v2101
      %v2133 = vadd.f32 %v2019, %v2104
      %v2134 = vadd.f32 %v2020, %v2107
      %v2135 = vadd.f32 %v2021, %v2110
      %v2136 = vadd.f32 %v2022, %v2113
      %v2137 = vadd.f32 %v2023, %v2116
      %v2138 = vadd.f32 %v2024, %v2119
      %v2139 = vadd.f32 %v2025, %v2122
      %v2140 = vld [vmem:[%s1911 + $0x2] sm:$0xff]
      %v2141 = vld [vmem:[%s1911 + $0xa] sm:$0xff]
      %v2142 = vld [vmem:[%s1911 + $0x1a] sm:$0xff]
      %v2143 = vld [vmem:[%s1911 + $0x22] sm:$0xff]
      %v2144 = vld [vmem:[%s1911 + $0x32] sm:$0xff]
      %v2145 = vld [vmem:[%s1911 + $0x3a] sm:$0xff]
      %v2146 = vld [vmem:[%s1911 + $0x4a] sm:$0xff]
      %v2147 = vld [vmem:[%s1911 + $0x52] sm:$0xff]
      %v2148 = vld [vmem:[%s1911 + $0x62] sm:$0xff]
      %v2149 = vld [vmem:[%s1911 + $0x6a] sm:$0xff]
      %v2150 = vld [vmem:[%s1911 + $0x7a] sm:$0xff]
      %v2151 = vld [vmem:[%s1911 + $0x82] sm:$0xff]
      %v2152 = vld [vmem:[%s1911 + $0x92] sm:$0xff]
      %v2153 = vld [vmem:[%s1911 + $0x9a] sm:$0xff]
      %v2154 = vld [vmem:[%s1911 + $0xaa] sm:$0xff]
      %v2155 = vld [vmem:[%s1911 + $0xb2] sm:$0xff]
      %s2156 = scalar_lea.vmem %s3, 640
      %v2157 = vld [vmem:[%s2156] sm:$0xff]
      %v2158 = vld [vmem:[%s2156 + $0x8] sm:$0xff]
      %v2159 = vld [vmem:[%s2156 + $0x10] sm:$0xff]
      %v2160 = vld [vmem:[%s2156 + $0x18] sm:$0xff]
      %v2161 = vld [vmem:[%s2156 + $0x20] sm:$0xff]
      %v2162 = vld [vmem:[%s2156 + $0x28] sm:$0xff]
      %v2163 = vld [vmem:[%s2156 + $0x30] sm:$0xff]
      %v2164 = vld [vmem:[%s2156 + $0x38] sm:$0xff]
      %v2165 = vld [vmem:[%s2156 + $0x40] sm:$0xff]
      %v2166 = vld [vmem:[%s2156 + $0x48] sm:$0xff]
      %v2167 = vld [vmem:[%s2156 + $0x50] sm:$0xff]
      %v2168 = vld [vmem:[%s2156 + $0x58] sm:$0xff]
      %v2169 = vld [vmem:[%s2156 + $0x60] sm:$0xff]
      %v2170 = vld [vmem:[%s2156 + $0x68] sm:$0xff]
      %v2171 = vld [vmem:[%s2156 + $0x70] sm:$0xff]
      %v2172 = vld [vmem:[%s2156 + $0x78] sm:$0xff]
      %2173 = vmatpush.msra.mxu0 %v2172
      %2174 = vmatpush.msra.mxu0 %v2171
      %2175 = vmatpush.msra.mxu0 %v2170
      %2176 = vmatpush.msra.mxu0 %v2169
      %2177 = vmatpush.msra.mxu0 %v2168
      %2178 = vmatpush.msra.mxu0 %v2167
      %2179 = vmatpush.msra.mxu0 %v2166
      %2180 = vmatpush.msra.mxu0 %v2165
      %2181 = vmatpush.msra.mxu0 %v2164
      %2182 = vmatpush.msra.mxu0 %v2163
      %2183 = vmatpush.msra.mxu0 %v2162
      %2184 = vmatpush.msra.mxu0 %v2161
      %2185 = vmatpush.msra.mxu0 %v2160
      %2186 = vmatpush.msra.mxu0 %v2159
      %2187 = vmatpush.msra.mxu0 %v2158
      %2188 = vmatpush.msra.mxu0 %v2157
      %2189 = vmatmul.f32.gmra.mxu0 %v2140
      %v2190 = vpop.f32.mrf.mxu0
      %v2191 = vadd.f32 0.0, %v2190
      %2192 = vmatmul.f32.gmra.mxu0 %v2141
      %v2193 = vpop.f32.mrf.mxu0
      %v2194 = vadd.f32 0.0, %v2193
      %2195 = vmatmul.f32.gmra.mxu0 %v2142
      %v2196 = vpop.f32.mrf.mxu0
      %v2197 = vadd.f32 0.0, %v2196
      %2198 = vmatmul.f32.gmra.mxu0 %v2143
      %v2199 = vpop.f32.mrf.mxu0
      %v2200 = vadd.f32 0.0, %v2199
      %2201 = vmatmul.f32.gmra.mxu0 %v2144
      %v2202 = vpop.f32.mrf.mxu0
      %v2203 = vadd.f32 0.0, %v2202
      %2204 = vmatmul.f32.gmra.mxu0 %v2145
      %v2205 = vpop.f32.mrf.mxu0
      %v2206 = vadd.f32 0.0, %v2205
      %2207 = vmatmul.f32.gmra.mxu0 %v2146
      %v2208 = vpop.f32.mrf.mxu0
      %v2209 = vadd.f32 0.0, %v2208
      %2210 = vmatmul.f32.gmra.mxu0 %v2147
      %v2211 = vpop.f32.mrf.mxu0
      %v2212 = vadd.f32 0.0, %v2211
      %2213 = vmatmul.f32.gmra.mxu0 %v2148
      %v2214 = vpop.f32.mrf.mxu0
      %v2215 = vadd.f32 0.0, %v2214
      %2216 = vmatmul.f32.gmra.mxu0 %v2149
      %v2217 = vpop.f32.mrf.mxu0
      %v2218 = vadd.f32 0.0, %v2217
      %2219 = vmatmul.f32.gmra.mxu0 %v2150
      %v2220 = vpop.f32.mrf.mxu0
      %v2221 = vadd.f32 0.0, %v2220
      %2222 = vmatmul.f32.gmra.mxu0 %v2151
      %v2223 = vpop.f32.mrf.mxu0
      %v2224 = vadd.f32 0.0, %v2223
      %2225 = vmatmul.f32.gmra.mxu0 %v2152
      %v2226 = vpop.f32.mrf.mxu0
      %v2227 = vadd.f32 0.0, %v2226
      %2228 = vmatmul.f32.gmra.mxu0 %v2153
      %v2229 = vpop.f32.mrf.mxu0
      %v2230 = vadd.f32 0.0, %v2229
      %2231 = vmatmul.f32.gmra.mxu0 %v2154
      %v2232 = vpop.f32.mrf.mxu0
      %v2233 = vadd.f32 0.0, %v2232
      %2234 = vmatmul.f32.gmra.mxu0 %v2155
      %v2235 = vpop.f32.mrf.mxu0
      %v2236 = vadd.f32 0.0, %v2235
      %2237 = vdwg.mxu0
      %v2238 = vadd.f32 %v2124, %v2191
      %v2239 = vadd.f32 %v2125, %v2194
      %v2240 = vadd.f32 %v2126, %v2197
      %v2241 = vadd.f32 %v2127, %v2200
      %v2242 = vadd.f32 %v2128, %v2203
      %v2243 = vadd.f32 %v2129, %v2206
      %v2244 = vadd.f32 %v2130, %v2209
      %v2245 = vadd.f32 %v2131, %v2212
      %v2246 = vadd.f32 %v2132, %v2215
      %v2247 = vadd.f32 %v2133, %v2218
      %v2248 = vadd.f32 %v2134, %v2221
      %v2249 = vadd.f32 %v2135, %v2224
      %v2250 = vadd.f32 %v2136, %v2227
      %v2251 = vadd.f32 %v2137, %v2230
      %v2252 = vadd.f32 %v2138, %v2233
      %v2253 = vadd.f32 %v2139, %v2236
      %s2254 = scalar_lea.vmem [#allocation3], 48
      %v2255 = vld [vmem:[%s2254] sm:$0xff]
      %v2256 = vld [vmem:[%s2254 + $0x8] sm:$0xff]
      %v2257 = vld [vmem:[%s2254 + $0x18] sm:$0xff]
      %v2258 = vld [vmem:[%s2254 + $0x20] sm:$0xff]
      %v2259 = vld [vmem:[%s2254 + $0x30] sm:$0xff]
      %v2260 = vld [vmem:[%s2254 + $0x38] sm:$0xff]
      %v2261 = vld [vmem:[%s2254 + $0x48] sm:$0xff]
      %v2262 = vld [vmem:[%s2254 + $0x50] sm:$0xff]
      %v2263 = vld [vmem:[%s2254 + $0x60] sm:$0xff]
      %v2264 = vld [vmem:[%s2254 + $0x68] sm:$0xff]
      %v2265 = vld [vmem:[%s2254 + $0x78] sm:$0xff]
      %v2266 = vld [vmem:[%s2254 + $0x80] sm:$0xff]
      %v2267 = vld [vmem:[%s2254 + $0x90] sm:$0xff]
      %v2268 = vld [vmem:[%s2254 + $0x98] sm:$0xff]
      %v2269 = vld [vmem:[%s2254 + $0xa8] sm:$0xff]
      %v2270 = vld [vmem:[%s2254 + $0xb0] sm:$0xff]
      %s2271 = scalar_lea.vmem %s3, 768
      %v2272 = vld [vmem:[%s2271] sm:$0xff]
      %v2273 = vld [vmem:[%s2271 + $0x8] sm:$0xff]
      %v2274 = vld [vmem:[%s2271 + $0x10] sm:$0xff]
      %v2275 = vld [vmem:[%s2271 + $0x18] sm:$0xff]
      %v2276 = vld [vmem:[%s2271 + $0x20] sm:$0xff]
      %v2277 = vld [vmem:[%s2271 + $0x28] sm:$0xff]
      %v2278 = vld [vmem:[%s2271 + $0x30] sm:$0xff]
      %v2279 = vld [vmem:[%s2271 + $0x38] sm:$0xff]
      %v2280 = vld [vmem:[%s2271 + $0x40] sm:$0xff]
      %v2281 = vld [vmem:[%s2271 + $0x48] sm:$0xff]
      %v2282 = vld [vmem:[%s2271 + $0x50] sm:$0xff]
      %v2283 = vld [vmem:[%s2271 + $0x58] sm:$0xff]
      %v2284 = vld [vmem:[%s2271 + $0x60] sm:$0xff]
      %v2285 = vld [vmem:[%s2271 + $0x68] sm:$0xff]
      %v2286 = vld [vmem:[%s2271 + $0x70] sm:$0xff]
      %v2287 = vld [vmem:[%s2271 + $0x78] sm:$0xff]
      %2288 = vmatpush.msra.mxu0 %v2287
      %2289 = vmatpush.msra.mxu0 %v2286
      %2290 = vmatpush.msra.mxu0 %v2285
      %2291 = vmatpush.msra.mxu0 %v2284
      %2292 = vmatpush.msra.mxu0 %v2283
      %2293 = vmatpush.msra.mxu0 %v2282
      %2294 = vmatpush.msra.mxu0 %v2281
      %2295 = vmatpush.msra.mxu0 %v2280
      %2296 = vmatpush.msra.mxu0 %v2279
      %2297 = vmatpush.msra.mxu0 %v2278
      %2298 = vmatpush.msra.mxu0 %v2277
      %2299 = vmatpush.msra.mxu0 %v2276
      %2300 = vmatpush.msra.mxu0 %v2275
      %2301 = vmatpush.msra.mxu0 %v2274
      %2302 = vmatpush.msra.mxu0 %v2273
      %2303 = vmatpush.msra.mxu0 %v2272
      %2304 = vmatmul.f32.gmra.mxu0 %v2255
      %v2305 = vpop.f32.mrf.mxu0
      %v2306 = vadd.f32 0.0, %v2305
      %2307 = vmatmul.f32.gmra.mxu0 %v2256
      %v2308 = vpop.f32.mrf.mxu0
      %v2309 = vadd.f32 0.0, %v2308
      %2310 = vmatmul.f32.gmra.mxu0 %v2257
      %v2311 = vpop.f32.mrf.mxu0
      %v2312 = vadd.f32 0.0, %v2311
      %2313 = vmatmul.f32.gmra.mxu0 %v2258
      %v2314 = vpop.f32.mrf.mxu0
      %v2315 = vadd.f32 0.0, %v2314
      %2316 = vmatmul.f32.gmra.mxu0 %v2259
      %v2317 = vpop.f32.mrf.mxu0
      %v2318 = vadd.f32 0.0, %v2317
      %2319 = vmatmul.f32.gmra.mxu0 %v2260
      %v2320 = vpop.f32.mrf.mxu0
      %v2321 = vadd.f32 0.0, %v2320
      %2322 = vmatmul.f32.gmra.mxu0 %v2261
      %v2323 = vpop.f32.mrf.mxu0
      %v2324 = vadd.f32 0.0, %v2323
      %2325 = vmatmul.f32.gmra.mxu0 %v2262
      %v2326 = vpop.f32.mrf.mxu0
      %v2327 = vadd.f32 0.0, %v2326
      %2328 = vmatmul.f32.gmra.mxu0 %v2263
      %v2329 = vpop.f32.mrf.mxu0
      %v2330 = vadd.f32 0.0, %v2329
      %2331 = vmatmul.f32.gmra.mxu0 %v2264
      %v2332 = vpop.f32.mrf.mxu0
      %v2333 = vadd.f32 0.0, %v2332
      %2334 = vmatmul.f32.gmra.mxu0 %v2265
      %v2335 = vpop.f32.mrf.mxu0
      %v2336 = vadd.f32 0.0, %v2335
      %2337 = vmatmul.f32.gmra.mxu0 %v2266
      %v2338 = vpop.f32.mrf.mxu0
      %v2339 = vadd.f32 0.0, %v2338
      %2340 = vmatmul.f32.gmra.mxu0 %v2267
      %v2341 = vpop.f32.mrf.mxu0
      %v2342 = vadd.f32 0.0, %v2341
      %2343 = vmatmul.f32.gmra.mxu0 %v2268
      %v2344 = vpop.f32.mrf.mxu0
      %v2345 = vadd.f32 0.0, %v2344
      %2346 = vmatmul.f32.gmra.mxu0 %v2269
      %v2347 = vpop.f32.mrf.mxu0
      %v2348 = vadd.f32 0.0, %v2347
      %2349 = vmatmul.f32.gmra.mxu0 %v2270
      %v2350 = vpop.f32.mrf.mxu0
      %v2351 = vadd.f32 0.0, %v2350
      %2352 = vdwg.mxu0
      %v2353 = vadd.f32 %v2238, %v2306
      %v2354 = vadd.f32 %v2239, %v2309
      %v2355 = vadd.f32 %v2240, %v2312
      %v2356 = vadd.f32 %v2241, %v2315
      %v2357 = vadd.f32 %v2242, %v2318
      %v2358 = vadd.f32 %v2243, %v2321
      %v2359 = vadd.f32 %v2244, %v2324
      %v2360 = vadd.f32 %v2245, %v2327
      %v2361 = vadd.f32 %v2246, %v2330
      %v2362 = vadd.f32 %v2247, %v2333
      %v2363 = vadd.f32 %v2248, %v2336
      %v2364 = vadd.f32 %v2249, %v2339
      %v2365 = vadd.f32 %v2250, %v2342
      %v2366 = vadd.f32 %v2251, %v2345
      %v2367 = vadd.f32 %v2252, %v2348
      %v2368 = vadd.f32 %v2253, %v2351
      %v2369 = vld [vmem:[%s2254 + $0x1] sm:$0xff]
      %v2370 = vld [vmem:[%s2254 + $0x9] sm:$0xff]
      %v2371 = vld [vmem:[%s2254 + $0x19] sm:$0xff]
      %v2372 = vld [vmem:[%s2254 + $0x21] sm:$0xff]
      %v2373 = vld [vmem:[%s2254 + $0x31] sm:$0xff]
      %v2374 = vld [vmem:[%s2254 + $0x39] sm:$0xff]
      %v2375 = vld [vmem:[%s2254 + $0x49] sm:$0xff]
      %v2376 = vld [vmem:[%s2254 + $0x51] sm:$0xff]
      %v2377 = vld [vmem:[%s2254 + $0x61] sm:$0xff]
      %v2378 = vld [vmem:[%s2254 + $0x69] sm:$0xff]
      %v2379 = vld [vmem:[%s2254 + $0x79] sm:$0xff]
      %v2380 = vld [vmem:[%s2254 + $0x81] sm:$0xff]
      %v2381 = vld [vmem:[%s2254 + $0x91] sm:$0xff]
      %v2382 = vld [vmem:[%s2254 + $0x99] sm:$0xff]
      %v2383 = vld [vmem:[%s2254 + $0xa9] sm:$0xff]
      %v2384 = vld [vmem:[%s2254 + $0xb1] sm:$0xff]
      %s2385 = scalar_lea.vmem %s3, 896
      %v2386 = vld [vmem:[%s2385] sm:$0xff]
      %v2387 = vld [vmem:[%s2385 + $0x8] sm:$0xff]
      %v2388 = vld [vmem:[%s2385 + $0x10] sm:$0xff]
      %v2389 = vld [vmem:[%s2385 + $0x18] sm:$0xff]
      %v2390 = vld [vmem:[%s2385 + $0x20] sm:$0xff]
      %v2391 = vld [vmem:[%s2385 + $0x28] sm:$0xff]
      %v2392 = vld [vmem:[%s2385 + $0x30] sm:$0xff]
      %v2393 = vld [vmem:[%s2385 + $0x38] sm:$0xff]
      %v2394 = vld [vmem:[%s2385 + $0x40] sm:$0xff]
      %v2395 = vld [vmem:[%s2385 + $0x48] sm:$0xff]
      %v2396 = vld [vmem:[%s2385 + $0x50] sm:$0xff]
      %v2397 = vld [vmem:[%s2385 + $0x58] sm:$0xff]
      %v2398 = vld [vmem:[%s2385 + $0x60] sm:$0xff]
      %v2399 = vld [vmem:[%s2385 + $0x68] sm:$0xff]
      %v2400 = vld [vmem:[%s2385 + $0x70] sm:$0xff]
      %v2401 = vld [vmem:[%s2385 + $0x78] sm:$0xff]
      %2402 = vmatpush.msra.mxu0 %v2401
      %2403 = vmatpush.msra.mxu0 %v2400
      %2404 = vmatpush.msra.mxu0 %v2399
      %2405 = vmatpush.msra.mxu0 %v2398
      %2406 = vmatpush.msra.mxu0 %v2397
      %2407 = vmatpush.msra.mxu0 %v2396
      %2408 = vmatpush.msra.mxu0 %v2395
      %2409 = vmatpush.msra.mxu0 %v2394
      %2410 = vmatpush.msra.mxu0 %v2393
      %2411 = vmatpush.msra.mxu0 %v2392
      %2412 = vmatpush.msra.mxu0 %v2391
      %2413 = vmatpush.msra.mxu0 %v2390
      %2414 = vmatpush.msra.mxu0 %v2389
      %2415 = vmatpush.msra.mxu0 %v2388
      %2416 = vmatpush.msra.mxu0 %v2387
      %2417 = vmatpush.msra.mxu0 %v2386
      %2418 = vmatmul.f32.gmra.mxu0 %v2369
      %v2419 = vpop.f32.mrf.mxu0
      %v2420 = vadd.f32 0.0, %v2419
      %2421 = vmatmul.f32.gmra.mxu0 %v2370
      %v2422 = vpop.f32.mrf.mxu0
      %v2423 = vadd.f32 0.0, %v2422
      %2424 = vmatmul.f32.gmra.mxu0 %v2371
      %v2425 = vpop.f32.mrf.mxu0
      %v2426 = vadd.f32 0.0, %v2425
      %2427 = vmatmul.f32.gmra.mxu0 %v2372
      %v2428 = vpop.f32.mrf.mxu0
      %v2429 = vadd.f32 0.0, %v2428
      %2430 = vmatmul.f32.gmra.mxu0 %v2373
      %v2431 = vpop.f32.mrf.mxu0
      %v2432 = vadd.f32 0.0, %v2431
      %2433 = vmatmul.f32.gmra.mxu0 %v2374
      %v2434 = vpop.f32.mrf.mxu0
      %v2435 = vadd.f32 0.0, %v2434
      %2436 = vmatmul.f32.gmra.mxu0 %v2375
      %v2437 = vpop.f32.mrf.mxu0
      %v2438 = vadd.f32 0.0, %v2437
      %2439 = vmatmul.f32.gmra.mxu0 %v2376
      %v2440 = vpop.f32.mrf.mxu0
      %v2441 = vadd.f32 0.0, %v2440
      %2442 = vmatmul.f32.gmra.mxu0 %v2377
      %v2443 = vpop.f32.mrf.mxu0
      %v2444 = vadd.f32 0.0, %v2443
      %2445 = vmatmul.f32.gmra.mxu0 %v2378
      %v2446 = vpop.f32.mrf.mxu0
      %v2447 = vadd.f32 0.0, %v2446
      %2448 = vmatmul.f32.gmra.mxu0 %v2379
      %v2449 = vpop.f32.mrf.mxu0
      %v2450 = vadd.f32 0.0, %v2449
      %2451 = vmatmul.f32.gmra.mxu0 %v2380
      %v2452 = vpop.f32.mrf.mxu0
      %v2453 = vadd.f32 0.0, %v2452
      %2454 = vmatmul.f32.gmra.mxu0 %v2381
      %v2455 = vpop.f32.mrf.mxu0
      %v2456 = vadd.f32 0.0, %v2455
      %2457 = vmatmul.f32.gmra.mxu0 %v2382
      %v2458 = vpop.f32.mrf.mxu0
      %v2459 = vadd.f32 0.0, %v2458
      %2460 = vmatmul.f32.gmra.mxu0 %v2383
      %v2461 = vpop.f32.mrf.mxu0
      %v2462 = vadd.f32 0.0, %v2461
      %2463 = vmatmul.f32.gmra.mxu0 %v2384
      %v2464 = vpop.f32.mrf.mxu0
      %v2465 = vadd.f32 0.0, %v2464
      %2466 = vdwg.mxu0
      %v2467 = vadd.f32 %v2353, %v2420
      %v2468 = vadd.f32 %v2354, %v2423
      %v2469 = vadd.f32 %v2355, %v2426
      %v2470 = vadd.f32 %v2356, %v2429
      %v2471 = vadd.f32 %v2357, %v2432
      %v2472 = vadd.f32 %v2358, %v2435
      %v2473 = vadd.f32 %v2359, %v2438
      %v2474 = vadd.f32 %v2360, %v2441
      %v2475 = vadd.f32 %v2361, %v2444
      %v2476 = vadd.f32 %v2362, %v2447
      %v2477 = vadd.f32 %v2363, %v2450
      %v2478 = vadd.f32 %v2364, %v2453
      %v2479 = vadd.f32 %v2365, %v2456
      %v2480 = vadd.f32 %v2366, %v2459
      %v2481 = vadd.f32 %v2367, %v2462
      %v2482 = vadd.f32 %v2368, %v2465
      %v2483 = vld [vmem:[%s2254 + $0x2] sm:$0xff]
      %v2484 = vld [vmem:[%s2254 + $0xa] sm:$0xff]
      %v2485 = vld [vmem:[%s2254 + $0x1a] sm:$0xff]
      %v2486 = vld [vmem:[%s2254 + $0x22] sm:$0xff]
      %v2487 = vld [vmem:[%s2254 + $0x32] sm:$0xff]
      %v2488 = vld [vmem:[%s2254 + $0x3a] sm:$0xff]
      %v2489 = vld [vmem:[%s2254 + $0x4a] sm:$0xff]
      %v2490 = vld [vmem:[%s2254 + $0x52] sm:$0xff]
      %v2491 = vld [vmem:[%s2254 + $0x62] sm:$0xff]
      %v2492 = vld [vmem:[%s2254 + $0x6a] sm:$0xff]
      %v2493 = vld [vmem:[%s2254 + $0x7a] sm:$0xff]
      %v2494 = vld [vmem:[%s2254 + $0x82] sm:$0xff]
      %v2495 = vld [vmem:[%s2254 + $0x92] sm:$0xff]
      %v2496 = vld [vmem:[%s2254 + $0x9a] sm:$0xff]
      %v2497 = vld [vmem:[%s2254 + $0xaa] sm:$0xff]
      %v2498 = vld [vmem:[%s2254 + $0xb2] sm:$0xff]
      %s2499 = scalar_lea.vmem %s3, 1024
      %v2500 = vld [vmem:[%s2499] sm:$0xff]
      %v2501 = vld [vmem:[%s2499 + $0x8] sm:$0xff]
      %v2502 = vld [vmem:[%s2499 + $0x10] sm:$0xff]
      %v2503 = vld [vmem:[%s2499 + $0x18] sm:$0xff]
      %v2504 = vld [vmem:[%s2499 + $0x20] sm:$0xff]
      %v2505 = vld [vmem:[%s2499 + $0x28] sm:$0xff]
      %v2506 = vld [vmem:[%s2499 + $0x30] sm:$0xff]
      %v2507 = vld [vmem:[%s2499 + $0x38] sm:$0xff]
      %v2508 = vld [vmem:[%s2499 + $0x40] sm:$0xff]
      %v2509 = vld [vmem:[%s2499 + $0x48] sm:$0xff]
      %v2510 = vld [vmem:[%s2499 + $0x50] sm:$0xff]
      %v2511 = vld [vmem:[%s2499 + $0x58] sm:$0xff]
      %v2512 = vld [vmem:[%s2499 + $0x60] sm:$0xff]
      %v2513 = vld [vmem:[%s2499 + $0x68] sm:$0xff]
      %v2514 = vld [vmem:[%s2499 + $0x70] sm:$0xff]
      %v2515 = vld [vmem:[%s2499 + $0x78] sm:$0xff]
      %2516 = vmatpush.msra.mxu0 %v2515
      %2517 = vmatpush.msra.mxu0 %v2514
      %2518 = vmatpush.msra.mxu0 %v2513
      %2519 = vmatpush.msra.mxu0 %v2512
      %2520 = vmatpush.msra.mxu0 %v2511
      %2521 = vmatpush.msra.mxu0 %v2510
      %2522 = vmatpush.msra.mxu0 %v2509
      %2523 = vmatpush.msra.mxu0 %v2508
      %2524 = vmatpush.msra.mxu0 %v2507
      %2525 = vmatpush.msra.mxu0 %v2506
      %2526 = vmatpush.msra.mxu0 %v2505
      %2527 = vmatpush.msra.mxu0 %v2504
      %2528 = vmatpush.msra.mxu0 %v2503
      %2529 = vmatpush.msra.mxu0 %v2502
      %2530 = vmatpush.msra.mxu0 %v2501
      %2531 = vmatpush.msra.mxu0 %v2500
      %2532 = vmatmul.f32.gmra.mxu0 %v2483
      %v2533 = vpop.f32.mrf.mxu0
      %v2534 = vadd.f32 0.0, %v2533
      %2535 = vmatmul.f32.gmra.mxu0 %v2484
      %v2536 = vpop.f32.mrf.mxu0
      %v2537 = vadd.f32 0.0, %v2536
      %2538 = vmatmul.f32.gmra.mxu0 %v2485
      %v2539 = vpop.f32.mrf.mxu0
      %v2540 = vadd.f32 0.0, %v2539
      %2541 = vmatmul.f32.gmra.mxu0 %v2486
      %v2542 = vpop.f32.mrf.mxu0
      %v2543 = vadd.f32 0.0, %v2542
      %2544 = vmatmul.f32.gmra.mxu0 %v2487
      %v2545 = vpop.f32.mrf.mxu0
      %v2546 = vadd.f32 0.0, %v2545
      %2547 = vmatmul.f32.gmra.mxu0 %v2488
      %v2548 = vpop.f32.mrf.mxu0
      %v2549 = vadd.f32 0.0, %v2548
      %2550 = vmatmul.f32.gmra.mxu0 %v2489
      %v2551 = vpop.f32.mrf.mxu0
      %v2552 = vadd.f32 0.0, %v2551
      %2553 = vmatmul.f32.gmra.mxu0 %v2490
      %v2554 = vpop.f32.mrf.mxu0
      %v2555 = vadd.f32 0.0, %v2554
      %2556 = vmatmul.f32.gmra.mxu0 %v2491
      %v2557 = vpop.f32.mrf.mxu0
      %v2558 = vadd.f32 0.0, %v2557
      %2559 = vmatmul.f32.gmra.mxu0 %v2492
      %v2560 = vpop.f32.mrf.mxu0
      %v2561 = vadd.f32 0.0, %v2560
      %2562 = vmatmul.f32.gmra.mxu0 %v2493
      %v2563 = vpop.f32.mrf.mxu0
      %v2564 = vadd.f32 0.0, %v2563
      %2565 = vmatmul.f32.gmra.mxu0 %v2494
      %v2566 = vpop.f32.mrf.mxu0
      %v2567 = vadd.f32 0.0, %v2566
      %2568 = vmatmul.f32.gmra.mxu0 %v2495
      %v2569 = vpop.f32.mrf.mxu0
      %v2570 = vadd.f32 0.0, %v2569
      %2571 = vmatmul.f32.gmra.mxu0 %v2496
      %v2572 = vpop.f32.mrf.mxu0
      %v2573 = vadd.f32 0.0, %v2572
      %2574 = vmatmul.f32.gmra.mxu0 %v2497
      %v2575 = vpop.f32.mrf.mxu0
      %v2576 = vadd.f32 0.0, %v2575
      %2577 = vmatmul.f32.gmra.mxu0 %v2498
      %v2578 = vpop.f32.mrf.mxu0
      %v2579 = vadd.f32 0.0, %v2578
      %2580 = vdwg.mxu0
      %v2581 = vadd.f32 %v2467, %v2534
      %v2582 = vadd.f32 %v2468, %v2537
      %v2583 = vadd.f32 %v2469, %v2540
      %v2584 = vadd.f32 %v2470, %v2543
      %v2585 = vadd.f32 %v2471, %v2546
      %v2586 = vadd.f32 %v2472, %v2549
      %v2587 = vadd.f32 %v2473, %v2552
      %v2588 = vadd.f32 %v2474, %v2555
      %v2589 = vadd.f32 %v2475, %v2558
      %v2590 = vadd.f32 %v2476, %v2561
      %v2591 = vadd.f32 %v2477, %v2564
      %v2592 = vadd.f32 %v2478, %v2567
      %v2593 = vadd.f32 %v2479, %v2570
      %v2594 = vadd.f32 %v2480, %v2573
      %v2595 = vadd.f32 %v2481, %v2576
      %v2596 = vadd.f32 %v2482, %v2579
      %v2597 = vld [vmem:[%s4] sm:$0x1]
      %v2599 = vperm.slane %v2597, 0
      %v2601 = vadd.f32 %v2581, %v2599
      %v2602 = vadd.f32 %v2582, %v2599
      %v2603 = vadd.f32 %v2583, %v2599
      %v2604 = vadd.f32 %v2584, %v2599
      %v2605 = vadd.f32 %v2585, %v2599
      %v2606 = vadd.f32 %v2586, %v2599
      %v2607 = vadd.f32 %v2587, %v2599
      %v2608 = vadd.f32 %v2588, %v2599
      %v2609 = vadd.f32 %v2589, %v2599
      %v2610 = vadd.f32 %v2590, %v2599
      %v2611 = vadd.f32 %v2591, %v2599
      %v2612 = vadd.f32 %v2592, %v2599
      %v2613 = vadd.f32 %v2593, %v2599
      %v2614 = vadd.f32 %v2594, %v2599
      %v2615 = vadd.f32 %v2595, %v2599
      %v2616 = vadd.f32 %v2596, %v2599
      %v2617 = vadd.f32 %v2601, %v312
      %v2618 = vadd.f32 %v2602, %v313
      %v2619 = vadd.f32 %v2603, %v314
      %v2620 = vadd.f32 %v2604, %v315
      %v2621 = vadd.f32 %v2605, %v316
      %v2622 = vadd.f32 %v2606, %v317
      %v2623 = vadd.f32 %v2607, %v318
      %v2624 = vadd.f32 %v2608, %v319
      %v2625 = vadd.f32 %v2609, %v320
      %v2626 = vadd.f32 %v2610, %v321
      %v2627 = vadd.f32 %v2611, %v322
      %v2628 = vadd.f32 %v2612, %v323
      %v2629 = vadd.f32 %v2613, %v324
      %v2630 = vadd.f32 %v2614, %v325
      %v2631 = vadd.f32 %v2615, %v326
      %v2632 = vadd.f32 %v2616, %v327
      %2633 = vst [vmem:[%s262] sm:$0xff] %v2617
      %2634 = vst [vmem:[%s262 + $0x8] sm:$0xff] %v2618
      %2635 = vst [vmem:[%s262 + $0x10] sm:$0xff] %v2619
      %2636 = vst [vmem:[%s262 + $0x18] sm:$0xff] %v2620
      %2637 = vst [vmem:[%s262 + $0x20] sm:$0xff] %v2621
      %2638 = vst [vmem:[%s262 + $0x28] sm:$0xff] %v2622
      %2639 = vst [vmem:[%s262 + $0x30] sm:$0xff] %v2623
      %2640 = vst [vmem:[%s262 + $0x38] sm:$0xff] %v2624
      %2641 = vst [vmem:[%s262 + $0x40] sm:$0xff] %v2625
      %2642 = vst [vmem:[%s262 + $0x48] sm:$0xff] %v2626
      %2643 = vst [vmem:[%s262 + $0x50] sm:$0xff] %v2627
      %2644 = vst [vmem:[%s262 + $0x58] sm:$0xff] %v2628
      %2645 = vst [vmem:[%s262 + $0x60] sm:$0xff] %v2629
      %2646 = vst [vmem:[%s262 + $0x68] sm:$0xff] %v2630
      %2647 = vst [vmem:[%s262 + $0x70] sm:$0xff] %v2631
      %2648 = vst [vmem:[%s262 + $0x78] sm:$0xff] %v2632
      %s2649 = smul.u32 8, %s21
      %p2650 = scmp.lt.s32.totalorder %s20, 1
      %s2651 = scalar_select %p2650, %s20, 1
      %p2652 = scmp.lt.s32.totalorder %s2649, 15
      %s2653 = scalar_select %p2652, %s2649, 15
      %s2654 = smul.addr %s2653, 2
      %s2655 = smul.addr %s2651, 32
      %s2656 = sadd.s32 %s2654, %s2655
      %s2657 = smul.addr %s2656, 8
      %s2658 = scalar_lea.vmem %s5, %s2657
      // Predicated region
      $region49: #{basic_block_forward.1} parent=39 // pred_check
        %p2659 = pneg %p160
      $region50: #{basic_block_forward.1} parent=39 // pred_check_branch
        %2661 = sbr.rel (%p2659) target = $region52
      $region51: #{basic_block_forward.1} parent=39 // pred_region
        %s2662 = smul.u32 8, %s21
      $region52: #{basic_block_forward.1} parent=39 // pred_fallthru
        _
    $region40: #{basic_block_forward.1} parent=5 // pred_fallthru
      _
    %p2663 = scmp.le.s32.totalorder 2, %s11
    // Predicated region
    $region53: #{basic_block_forward.1} parent=5 // pred_check
      %p2664 = pneg %p2663
    $region54: #{basic_block_forward.1} parent=5 // pred_check_branch
      %2666 = sbr.rel (%p2664) target = $region56
    $region55: #{basic_block_forward.1} parent=5 // pred_region
      %s2667 = ssub.s32 %s11, 2
      // Predicated region
      $region57: #{basic_block_forward.1} parent=55 // pred_check
        %p2668 = pneg %p166
      $region58: #{basic_block_forward.1} parent=55 // pred_check_branch
        %2670 = sbr.rel (%p2668) target = $region60
      $region59: #{basic_block_forward.1} parent=55 // pred_region
        %s2671 = smul.u32 8, %s23
        %p2672 = scmp.lt.s32.totalorder %s22, 1
        %s2673 = scalar_select %p2672, %s22, 1
        %p2674 = scmp.lt.s32.totalorder %s2671, 15
        %s2675 = scalar_select %p2674, %s2671, 15
        %s2676 = smul.addr %s2675, 2
        %s2677 = smul.addr %s2673, 32
        %s2678 = sadd.s32 %s2676, %s2677
        %s2679 = smul.addr %s2678, 8
        %s2680 = scalar_lea.vmem %s5, %s2679
      $region60: #{basic_block_forward.1} parent=55 // pred_fallthru
        _
    $region56: #{basic_block_forward.1} parent=5 // pred_fallthru
      _
  $region6: #{basic_block_forward.1} parent=0 // loop_footer
    %s15 = sadd.s32 1, %s11
  $region7: #{basic_block_forward.1} parent=0 // loop_footer_branch
    %10 = sbr.rel target = $region3
  $region8: #{basic_block_forward.1} parent=0 // loop_exit
    _

</llo_original>
